<compile_context>
chip_gen: v7x
topology: tpu7x:2x2x1
jax: 0.10.0
libtpu: 0.0.40
codegen_flags: <defaults>
</compile_context>

<pallas_src>
import functools

import jax
import jax.numpy as jnp
from jax.experimental import pallas as pl
from jax.experimental.pallas import tpu as pltpu

INPUT_SIZE = 640
HIDDEN1 = 128
HIDDEN2 = 128
HIDDEN3 = 64
HIDDEN4 = 64
LATENT = 30

LATENT_PAD = 128               # 128-lane-aligned latent / eps width
HEAD_W = 2 * LATENT_PAD        # fused head: mean lanes [0,128), logvar [128,256)
PACK_W = 128                   # packed [latent | mean | logvar | pad] f32 output

# 128-lane-aligned slots inside the packed bias array.
OFF_EB1, OFF_EB2, OFF_EB3, OFF_EB4, OFF_EBH = 0, 128, 256, 384, 512
OFF_DB1, OFF_DB2, OFF_DB3, OFF_DB4, OFF_DB5 = 768, 896, 1024, 1152, 1280
BIAS_TOTAL = OFF_DB5 + INPUT_SIZE   # 1920


# ---------------------------------------------------------------------------
# Kernel
# ---------------------------------------------------------------------------
def vae_kernel(
    # inputs -------------------------------------------------------------
    x_ref, eps_ref,
    ew1, ew2, ew3, ew4, ehead,                 # encoder weights (bf16)
    dw1, dw2, dw3, dw4, dw5,                   # decoder weights (bf16)
    bias_ref,                                  # packed f32 biases (1, 1920)
    # outputs ------------------------------------------------------------
    xr_ref, packed_ref,
):
    def lin(a_bf16, w_ref, off, n):
        # bf16 operands, f32 accumulation on the MXU; bias add in f32.
        y = jnp.dot(a_bf16, w_ref[...], preferred_element_type=jnp.float32)
        return y + bias_ref[:, off:off + n]

    def relu_bf16(v):
        # Single cast per layer: keep inter-layer activations bf16.
        return jnp.maximum(v, 0.0).astype(jnp.bfloat16)

    # ---- Encoder --------------------------------------------------------
    h1 = relu_bf16(lin(x_ref[...], ew1, OFF_EB1, HIDDEN1))
    h2 = relu_bf16(lin(h1, ew2, OFF_EB2, HIDDEN2))
    h3 = relu_bf16(lin(h2, ew3, OFF_EB3, HIDDEN3))
    h4 = relu_bf16(lin(h3, ew4, OFF_EB4, HIDDEN4))

    # Fused, 128-lane-aligned mean/logvar head: one (64, 256) matmul.
    head = lin(h4, ehead, OFF_EBH, HEAD_W)            # (TB, 256) f32
    mean128 = head[:, :LATENT_PAD]                    # mean in lanes [0, 30)
    logvar128 = head[:, LATENT_PAD:]                  # logvar in lanes [0, 30)

    # ---- Reparameterization (f32, full-vreg): latent = eps*exp(0.5*lv)+mean.
    # Padded lanes: eps==0, logvar==0 -> 0*exp(0)+0 == 0, so latent128 is
    # exact zero outside [0, LATENT) and the padded-K decoder matmul is exact.
    std128 = jnp.exp(0.5 * logvar128)
    latent128 = eps_ref[...].astype(jnp.float32) * std128 + mean128

    # ---- Decoder ----------------------------------------------------------
    g4 = relu_bf16(lin(latent128.astype(jnp.bfloat16), dw1, OFF_DB1, HIDDEN4))
    g3 = relu_bf16(lin(g4, dw2, OFF_DB2, HIDDEN3))
    g2 = relu_bf16(lin(g3, dw3, OFF_DB3, HIDDEN2))
    g1 = relu_bf16(lin(g2, dw4, OFF_DB4, HIDDEN1))
    xr_ref[...] = lin(g1, dw5, OFF_DB5, INPUT_SIZE).astype(xr_ref.dtype)

    # Lane-dense packed f32 small outputs: [latent | mean | logvar | zeros].
    pad = jnp.zeros((latent128.shape[0], PACK_W - 3 * LATENT), jnp.float32)
    packed_ref[...] = jnp.concatenate(
        [latent128[:, :LATENT], mean128[:, :LATENT], logvar128[:, :LATENT], pad],
        axis=-1)


# ---------------------------------------------------------------------------
# Parameters (PyTorch-Linear-like init, stored as (in, out) / (1, out))
# ---------------------------------------------------------------------------
def init_linear_params(key, fan_in, fan_out, xavier=False):
    kw, kb = jax.random.split(key)
    if xavier:
        bound_w = (6.0 / (fan_in + fan_out)) ** 0.5
    else:
        bound_w = 1.0 / (fan_in ** 0.5)
    bound_b = 1.0 / (fan_in ** 0.5)
    w = jax.random.uniform(kw, (fan_in, fan_out), jnp.float32, -bound_w, bound_w)
    b = jax.random.uniform(kb, (1, fan_out), jnp.float32, -bound_b, bound_b)
    return w, b


def make_params(key):
    keys = jax.random.split(key, 11)
    ew1, eb1 = init_linear_params(keys[0], INPUT_SIZE, HIDDEN1)
    ew2, eb2 = init_linear_params(keys[1], HIDDEN1, HIDDEN2)
    ew3, eb3 = init_linear_params(keys[2], HIDDEN2, HIDDEN3)
    ew4, eb4 = init_linear_params(keys[3], HIDDEN3, HIDDEN4)
    ewm, ebm = init_linear_params(keys[4], HIDDEN4, LATENT, xavier=True)
    ewv, ebv = init_linear_params(keys[5], HIDDEN4, LATENT, xavier=True)
    dw1, db1 = init_linear_params(keys[6], LATENT, HIDDEN4)
    dw2, db2 = init_linear_params(keys[7], HIDDEN4, HIDDEN3)
    dw3, db3 = init_linear_params(keys[8], HIDDEN3, HIDDEN2)
    dw4, db4 = init_linear_params(keys[9], HIDDEN2, HIDDEN1)
    dw5, db5 = init_linear_params(keys[10], HIDDEN1, INPUT_SIZE)
    return (ew1, eb1, ew2, eb2, ew3, eb3, ew4, eb4, ewm, ebm, ewv, ebv,
            dw1, db1, dw2, db2, dw3, db3, dw4, db4, dw5, db5)


def pack_params(params):
    """f32 per-layer params -> (bf16 kernel weights, packed f32 biases)."""
    (ew1, eb1, ew2, eb2, ew3, eb3, ew4, eb4, ewm, ebm, ewv, ebv,
     dw1, db1, dw2, db2, dw3, db3, dw4, db4, dw5, db5) = params

    # Fused 128-lane-aligned mean/logvar head weight: (HIDDEN4, 256).
    ehead = jnp.zeros((HIDDEN4, HEAD_W), jnp.float32)
    ehead = ehead.at[:, :LATENT].set(ewm)
    ehead = ehead.at[:, LATENT_PAD:LATENT_PAD + LATENT].set(ewv)

    # First decoder weight zero-padded on the (lane-aligned) latent axis.
    dw1p = jnp.zeros((LATENT_PAD, HIDDEN4), jnp.float32).at[:LATENT, :].set(dw1)

    bf16 = lambda w: w.astype(jnp.bfloat16)
    weights = (bf16(ew1), bf16(ew2), bf16(ew3), bf16(ew4), bf16(ehead),
               bf16(dw1p), bf16(dw2), bf16(dw3), bf16(dw4), bf16(dw5))

    bias_pack = jnp.zeros((1, BIAS_TOTAL), jnp.float32)
    put = lambda bp, off, b: bp.at[:, off:off + b.shape[1]].set(b)
    bias_pack = put(bias_pack, OFF_EB1, eb1)
    bias_pack = put(bias_pack, OFF_EB2, eb2)
    bias_pack = put(bias_pack, OFF_EB3, eb3)
    bias_pack = put(bias_pack, OFF_EB4, eb4)
    bias_pack = put(bias_pack, OFF_EBH, ebm)                  # mean bias @ 512
    bias_pack = put(bias_pack, OFF_EBH + LATENT_PAD, ebv)     # logvar bias @ 640
    bias_pack = put(bias_pack, OFF_DB1, db1)
    bias_pack = put(bias_pack, OFF_DB2, db2)
    bias_pack = put(bias_pack, OFF_DB3, db3)
    bias_pack = put(bias_pack, OFF_DB4, db4)
    bias_pack = put(bias_pack, OFF_DB5, db5)
    return weights, bias_pack


# ---------------------------------------------------------------------------
# Wrapper
# ---------------------------------------------------------------------------
def _pick_block_batch(batch):
    # >= 2 grid steps whenever possible so the "parallel" batch axis shards
    # across both v7x TensorCores; cap at 1024 rows/block (near HBM roofline,
    # ~<12 MiB VMEM with bf16 I/O); 8-row granularity keeps tail padding small.
    tb = min(1024, pl.cdiv(batch, 2))
    return max(8, pl.cdiv(tb, 8) * 8)


@functools.partial(jax.jit, static_argnames=("block_batch",))
def autoencoder_forward(x, eps, weights, bias_pack, *, block_batch=None):
    B = x.shape[0]
    if block_batch is None:
        block_batch = _pick_block_batch(B)
    n_blocks = pl.cdiv(B, block_batch)
    Bp = n_blocks * block_batch

    # End-to-end bf16 contract for the wide activations (no-op if caller
    # already supplies bf16, which __main__ does).
    x = x.astype(jnp.bfloat16)
    if Bp != B:  # pad tail rows; they compute garbage that is sliced off below
        x = jnp.pad(x, ((0, Bp - B), (0, 0)))
    # eps: bf16, zero-padded to 128 lanes (full-vreg reparam in the kernel).
    eps = jnp.pad(eps.astype(jnp.bfloat16),
                  ((0, Bp - B), (0, LATENT_PAD - LATENT)))

    # Advisory cost estimate so XLA can overlap this small call.
    per_row_mac = (INPUT_SIZE * HIDDEN1 + HIDDEN1 * HIDDEN2 + HIDDEN2 * HIDDEN3
                   + HIDDEN3 * HIDDEN4 + HIDDEN4 * HEAD_W + LATENT_PAD * HIDDEN4
                   + HIDDEN4 * HIDDEN3 + HIDDEN3 * HIDDEN2 + HIDDEN2 * HIDDEN1
                   + HIDDEN1 * INPUT_SIZE)
    weight_bytes = 2 * per_row_mac + 4 * BIAS_TOTAL
    io_bytes = Bp * (2 * INPUT_SIZE + 2 * LATENT_PAD + 2 * INPUT_SIZE + 4 * PACK_W)
    cost = pl.CostEstimate(flops=2 * Bp * per_row_mac,
                           transcendentals=Bp * LATENT_PAD,
                           bytes_accessed=weight_bytes + io_bytes)

    # Weights/biases: full blocks with constant index_maps -> fetched once and
    # VMEM-resident across all batch blocks (<0.5 MiB total, so the default
    # double-buffering is a negligible VMEM cost).
    # TODO(synk): for repeated tiny-batch inference, keep weights resident
    # across calls (cross-pallas_call VMEM/semaphore future, P10) or fold the
    # 10 weights + bias into one slab to cut DMA-descriptor setup.
    w_specs = [pl.BlockSpec(w.shape, lambda i: (0, 0)) for w in weights]
    in_specs = (
        [pl.BlockSpec((block_batch, INPUT_SIZE), lambda i: (i, 0)),
         pl.BlockSpec((block_batch, LATENT_PAD), lambda i: (i, 0))]
        + w_specs
        + [pl.BlockSpec((1, BIAS_TOTAL), lambda i: (0, 0))]
    )
    out_specs = [
        pl.BlockSpec((block_batch, INPUT_SIZE), lambda i: (i, 0)),
        pl.BlockSpec((block_batch, PACK_W), lambda i: (i, 0)),
    ]
    out_shape = (
        jax.ShapeDtypeStruct((Bp, INPUT_SIZE), jnp.bfloat16),  # x_recon (bf16 I/O)
        jax.ShapeDtypeStruct((Bp, PACK_W), jnp.float32),       # packed latents
    )

    xr_p, packed = pl.pallas_call(
        vae_kernel,
        grid=(n_blocks,),
        in_specs=in_specs,
        out_specs=out_specs,
        out_shape=out_shape,
        compiler_params=pltpu.CompilerParams(
            dimension_semantics=("parallel",),
            vmem_limit_bytes=32 * 1024 * 1024),
        cost_estimate=cost,
    )(x, eps, *weights, bias_pack)

    x_recon = xr_p[:B]                                  # bf16
    latent = packed[:B, :LATENT]                        # f32
    latent_mean = packed[:B, LATENT:2 * LATENT]         # f32
    latent_logvar = packed[:B, 2 * LATENT:3 * LATENT]   # f32
    return x_recon, latent, latent_mean, latent_logvar


# ---------------------------------------------------------------------------
# Pure-JAX reference (same bf16-weight / f32-accumulation numerics)
# ---------------------------------------------------------------------------
def reference_forward(x, eps, params):
    (ew1, eb1, ew2, eb2, ew3, eb3, ew4, eb4, ewm, ebm, ewv, ebv,
     dw1, db1, dw2, db2, dw3, db3, dw4, db4, dw5, db5) = params

    def lin(a, w, b):
        return jnp.dot(a.astype(jnp.bfloat16), w.astype(jnp.bfloat16),
                       preferred_element_type=jnp.float32) + b

    relu = lambda v: jnp.maximum(v, 0.0)
    h1 = relu(lin(x, ew1, eb1))
    h2 = relu(lin(h1, ew2, eb2))
    h3 = relu(lin(h2, ew3, eb3))
    h4 = relu(lin(h3, ew4, eb4))
    mean = lin(h4, ewm, ebm)
    logvar = lin(h4, ewv, ebv)
    latent = eps * jnp.exp(0.5 * logvar) + mean
    g4 = relu(lin(latent, dw1, db1))
    g3 = relu(lin(g4, dw2, db2))
    g2 = relu(lin(g3, dw3, db3))
    g1 = relu(lin(g2, dw4, db4))
    x_recon = lin(g1, dw5, db5).astype(jnp.bfloat16)   # bf16 public contract
    return x_recon, latent, mean, logvar


if __name__ == "__main__":
    key = jax.random.PRNGKey(0)
    k_params, k_x, k_eps = jax.random.split(key, 3)

    B = 300  # non-multiple of the batch block -> exercises 2-block grid + tail padding
    params = make_params(k_params)
    weights, bias_pack = pack_params(params)

    # bf16 end-to-end contract for x and eps (noise precision is irrelevant).
    x_bf16 = jax.random.normal(k_x, (B, INPUT_SIZE), jnp.float32).astype(jnp.bfloat16)
    # torch.randn_like(std) noise supplied externally for determinism.
    eps_bf16 = jax.random.normal(k_eps, (B, LATENT), jnp.float32).astype(jnp.bfloat16)

    outs = autoencoder_forward(x_bf16, eps_bf16, weights, bias_pack)
    outs = jax.block_until_ready(outs)

    refs = reference_forward(x_bf16.astype(jnp.float32),
                             eps_bf16.astype(jnp.float32), params)
    names = ("x_recon", "latent", "latent_mean", "latent_logvar")
    for name, o, r in zip(names, outs, refs):
        assert o.shape == r.shape and o.dtype == r.dtype, f"shape/dtype: {name}"
        assert jnp.allclose(o.astype(jnp.float32), r.astype(jnp.float32),
                            atol=3e-2, rtol=3e-2), f"mismatch vs reference: {name}"

    print("KERNEL_OK")
</pallas_src>

<mosaic_0001>
module attributes {stable_mosaic.version = 11 : i64} {
  func.func @vae_kernel(%arg0: i32, %arg1: memref<152x640xbf16, #tpu.memory_space<vmem>>, %arg2: memref<152x128xbf16, #tpu.memory_space<vmem>>, %arg3: memref<640x128xbf16, #tpu.memory_space<vmem>>, %arg4: memref<128x128xbf16, #tpu.memory_space<vmem>>, %arg5: memref<128x64xbf16, #tpu.memory_space<vmem>>, %arg6: memref<64x64xbf16, #tpu.memory_space<vmem>>, %arg7: memref<64x256xbf16, #tpu.memory_space<vmem>>, %arg8: memref<128x64xbf16, #tpu.memory_space<vmem>>, %arg9: memref<64x64xbf16, #tpu.memory_space<vmem>>, %arg10: memref<64x128xbf16, #tpu.memory_space<vmem>>, %arg11: memref<128x128xbf16, #tpu.memory_space<vmem>>, %arg12: memref<128x640xbf16, #tpu.memory_space<vmem>>, %arg13: memref<1x1920xf32, #tpu.memory_space<vmem>>, %arg14: memref<152x640xbf16, #tpu.memory_space<vmem>>, %arg15: memref<152x128xf32, #tpu.memory_space<vmem>>) attributes {dimension_semantics = [#tpu.dimension_semantics<parallel>], iteration_bounds = array<i64: 2>, scalar_prefetch = 0 : i64, scratch_operands = 0 : i64, tpu.core_type = #tpu.core_type<tc>, window_params = [{transform_indices = @transform_0, window_bounds = array<i64: 152, 640>}, {transform_indices = @transform_1, window_bounds = array<i64: 152, 128>}, {pipeline_mode = #tpu.pipeline_mode<synchronous>, transform_indices = @transform_2, window_bounds = array<i64: 640, 128>}, {pipeline_mode = #tpu.pipeline_mode<synchronous>, transform_indices = @transform_3, window_bounds = array<i64: 128, 128>}, {pipeline_mode = #tpu.pipeline_mode<synchronous>, transform_indices = @transform_4, window_bounds = array<i64: 128, 64>}, {pipeline_mode = #tpu.pipeline_mode<synchronous>, transform_indices = @transform_5, window_bounds = array<i64: 64, 64>}, {pipeline_mode = #tpu.pipeline_mode<synchronous>, transform_indices = @transform_6, window_bounds = array<i64: 64, 256>}, {pipeline_mode = #tpu.pipeline_mode<synchronous>, transform_indices = @transform_7, window_bounds = array<i64: 128, 64>}, {pipeline_mode = #tpu.pipeline_mode<synchronous>, transform_indices = @transform_8, window_bounds = array<i64: 64, 64>}, {pipeline_mode = #tpu.pipeline_mode<synchronous>, transform_indices = @transform_9, window_bounds = array<i64: 64, 128>}, {pipeline_mode = #tpu.pipeline_mode<synchronous>, transform_indices = @transform_10, window_bounds = array<i64: 128, 128>}, {pipeline_mode = #tpu.pipeline_mode<synchronous>, transform_indices = @transform_11, window_bounds = array<i64: 128, 640>}, {pipeline_mode = #tpu.pipeline_mode<synchronous>, transform_indices = @transform_12, window_bounds = array<i64: 1, 1920>}, {transform_indices = @transform_13, window_bounds = array<i64: 152, 640>}, {transform_indices = @transform_14, window_bounds = array<i64: 152, 128>}]} {
    %c0 = arith.constant 0 : index
    %c0_0 = arith.constant 0 : index
    %0 = vector.load %arg1[%c0, %c0_0] : memref<152x640xbf16, #tpu.memory_space<vmem>>, vector<152x640xbf16>
    %c0_1 = arith.constant 0 : index
    %c0_2 = arith.constant 0 : index
    %1 = vector.load %arg3[%c0_1, %c0_2] : memref<640x128xbf16, #tpu.memory_space<vmem>>, vector<640x128xbf16>
    %cst = arith.constant dense<0.000000e+00> : vector<152x128xf32>
    %2 = tpu.matmul %0, %1, %cst {dimension_numbers = #tpu.dot_dimension_numbers<[1], [0], [0], [1], [0, 0, 1, 1], [], []>} : vector<152x640xbf16>, vector<640x128xbf16>, vector<152x128xf32> -> vector<152x128xf32>
    %c0_3 = arith.constant 0 : index
    %c0_4 = arith.constant 0 : index
    %3 = vector.load %arg13[%c0_3, %c0_4] : memref<1x1920xf32, #tpu.memory_space<vmem>>, vector<1x128xf32>
    %4 = vector.broadcast %3 : vector<1x128xf32> to vector<152x128xf32>
    %5 = arith.addf %2, %4 : vector<152x128xf32>
    %cst_5 = arith.constant 0.000000e+00 : f32
    %6 = vector.broadcast %cst_5 : f32 to vector<152x128xf32>
    %7 = arith.maximumf %5, %6 : vector<152x128xf32>
    %8 = arith.truncf %7 : vector<152x128xf32> to vector<152x128xbf16>
    %c0_6 = arith.constant 0 : index
    %c0_7 = arith.constant 0 : index
    %9 = vector.load %arg4[%c0_6, %c0_7] : memref<128x128xbf16, #tpu.memory_space<vmem>>, vector<128x128xbf16>
    %cst_8 = arith.constant dense<0.000000e+00> : vector<152x128xf32>
    %10 = tpu.matmul %8, %9, %cst_8 {dimension_numbers = #tpu.dot_dimension_numbers<[1], [0], [0], [1], [0, 0, 1, 1], [], []>} : vector<152x128xbf16>, vector<128x128xbf16>, vector<152x128xf32> -> vector<152x128xf32>
    %c0_9 = arith.constant 0 : index
    %c128 = arith.constant 128 : index
    %11 = vector.load %arg13[%c0_9, %c128] : memref<1x1920xf32, #tpu.memory_space<vmem>>, vector<1x128xf32>
    %12 = vector.broadcast %11 : vector<1x128xf32> to vector<152x128xf32>
    %13 = arith.addf %10, %12 : vector<152x128xf32>
    %cst_10 = arith.constant 0.000000e+00 : f32
    %14 = vector.broadcast %cst_10 : f32 to vector<152x128xf32>
    %15 = arith.maximumf %13, %14 : vector<152x128xf32>
    %16 = arith.truncf %15 : vector<152x128xf32> to vector<152x128xbf16>
    %c0_11 = arith.constant 0 : index
    %c0_12 = arith.constant 0 : index
    %17 = vector.load %arg5[%c0_11, %c0_12] : memref<128x64xbf16, #tpu.memory_space<vmem>>, vector<128x64xbf16>
    %cst_13 = arith.constant dense<0.000000e+00> : vector<152x64xf32>
    %18 = tpu.matmul %16, %17, %cst_13 {dimension_numbers = #tpu.dot_dimension_numbers<[1], [0], [0], [1], [0, 0, 1, 1], [], []>} : vector<152x128xbf16>, vector<128x64xbf16>, vector<152x64xf32> -> vector<152x64xf32>
    %c0_14 = arith.constant 0 : index
    %c256 = arith.constant 256 : index
    %19 = vector.load %arg13[%c0_14, %c256] : memref<1x1920xf32, #tpu.memory_space<vmem>>, vector<1x64xf32>
    %20 = vector.broadcast %19 : vector<1x64xf32> to vector<152x64xf32>
    %21 = arith.addf %18, %20 : vector<152x64xf32>
    %cst_15 = arith.constant 0.000000e+00 : f32
    %22 = vector.broadcast %cst_15 : f32 to vector<152x64xf32>
    %23 = arith.maximumf %21, %22 : vector<152x64xf32>
    %24 = arith.truncf %23 : vector<152x64xf32> to vector<152x64xbf16>
    %c0_16 = arith.constant 0 : index
    %c0_17 = arith.constant 0 : index
    %25 = vector.load %arg6[%c0_16, %c0_17] : memref<64x64xbf16, #tpu.memory_space<vmem>>, vector<64x64xbf16>
    %cst_18 = arith.constant dense<0.000000e+00> : vector<152x64xf32>
    %26 = tpu.matmul %24, %25, %cst_18 {dimension_numbers = #tpu.dot_dimension_numbers<[1], [0], [0], [1], [0, 0, 1, 1], [], []>} : vector<152x64xbf16>, vector<64x64xbf16>, vector<152x64xf32> -> vector<152x64xf32>
    %c0_19 = arith.constant 0 : index
    %c384 = arith.constant 384 : index
    %27 = vector.load %arg13[%c0_19, %c384] : memref<1x1920xf32, #tpu.memory_space<vmem>>, vector<1x64xf32>
    %28 = vector.broadcast %27 : vector<1x64xf32> to vector<152x64xf32>
    %29 = arith.addf %26, %28 : vector<152x64xf32>
    %cst_20 = arith.constant 0.000000e+00 : f32
    %30 = vector.broadcast %cst_20 : f32 to vector<152x64xf32>
    %31 = arith.maximumf %29, %30 : vector<152x64xf32>
    %32 = arith.truncf %31 : vector<152x64xf32> to vector<152x64xbf16>
    %c0_21 = arith.constant 0 : index
    %c0_22 = arith.constant 0 : index
    %33 = vector.load %arg7[%c0_21, %c0_22] : memref<64x256xbf16, #tpu.memory_space<vmem>>, vector<64x256xbf16>
    %cst_23 = arith.constant dense<0.000000e+00> : vector<152x256xf32>
    %34 = tpu.matmul %32, %33, %cst_23 {dimension_numbers = #tpu.dot_dimension_numbers<[1], [0], [0], [1], [0, 0, 1, 1], [], []>} : vector<152x64xbf16>, vector<64x256xbf16>, vector<152x256xf32> -> vector<152x256xf32>
    %c0_24 = arith.constant 0 : index
    %c512 = arith.constant 512 : index
    %35 = vector.load %arg13[%c0_24, %c512] : memref<1x1920xf32, #tpu.memory_space<vmem>>, vector<1x256xf32>
    %36 = vector.broadcast %35 : vector<1x256xf32> to vector<152x256xf32>
    %37 = arith.addf %34, %36 : vector<152x256xf32>
    %38 = vector.extract_strided_slice %37 {offsets = [0, 0], sizes = [152, 128], strides = [1, 1]} : vector<152x256xf32> to vector<152x128xf32>
    %39 = vector.extract_strided_slice %37 {offsets = [0, 128], sizes = [152, 128], strides = [1, 1]} : vector<152x256xf32> to vector<152x128xf32>
    %cst_25 = arith.constant 5.000000e-01 : f32
    %40 = vector.broadcast %cst_25 : f32 to vector<152x128xf32>
    %41 = arith.mulf %40, %39 : vector<152x128xf32>
    %42 = math.exp %41 : vector<152x128xf32>
    %c0_26 = arith.constant 0 : index
    %c0_27 = arith.constant 0 : index
    %43 = vector.load %arg2[%c0_26, %c0_27] : memref<152x128xbf16, #tpu.memory_space<vmem>>, vector<152x128xbf16>
    %44 = arith.extf %43 : vector<152x128xbf16> to vector<152x128xf32>
    %45 = arith.mulf %44, %42 : vector<152x128xf32>
    %46 = arith.addf %45, %38 : vector<152x128xf32>
    %47 = arith.truncf %46 : vector<152x128xf32> to vector<152x128xbf16>
    %c0_28 = arith.constant 0 : index
    %c0_29 = arith.constant 0 : index
    %48 = vector.load %arg8[%c0_28, %c0_29] : memref<128x64xbf16, #tpu.memory_space<vmem>>, vector<128x64xbf16>
    %cst_30 = arith.constant dense<0.000000e+00> : vector<152x64xf32>
    %49 = tpu.matmul %47, %48, %cst_30 {dimension_numbers = #tpu.dot_dimension_numbers<[1], [0], [0], [1], [0, 0, 1, 1], [], []>} : vector<152x128xbf16>, vector<128x64xbf16>, vector<152x64xf32> -> vector<152x64xf32>
    %c0_31 = arith.constant 0 : index
    %c768 = arith.constant 768 : index
    %50 = vector.load %arg13[%c0_31, %c768] : memref<1x1920xf32, #tpu.memory_space<vmem>>, vector<1x64xf32>
    %51 = vector.broadcast %50 : vector<1x64xf32> to vector<152x64xf32>
    %52 = arith.addf %49, %51 : vector<152x64xf32>
    %cst_32 = arith.constant 0.000000e+00 : f32
    %53 = vector.broadcast %cst_32 : f32 to vector<152x64xf32>
    %54 = arith.maximumf %52, %53 : vector<152x64xf32>
    %55 = arith.truncf %54 : vector<152x64xf32> to vector<152x64xbf16>
    %c0_33 = arith.constant 0 : index
    %c0_34 = arith.constant 0 : index
    %56 = vector.load %arg9[%c0_33, %c0_34] : memref<64x64xbf16, #tpu.memory_space<vmem>>, vector<64x64xbf16>
    %cst_35 = arith.constant dense<0.000000e+00> : vector<152x64xf32>
    %57 = tpu.matmul %55, %56, %cst_35 {dimension_numbers = #tpu.dot_dimension_numbers<[1], [0], [0], [1], [0, 0, 1, 1], [], []>} : vector<152x64xbf16>, vector<64x64xbf16>, vector<152x64xf32> -> vector<152x64xf32>
    %c0_36 = arith.constant 0 : index
    %c896 = arith.constant 896 : index
    %58 = vector.load %arg13[%c0_36, %c896] : memref<1x1920xf32, #tpu.memory_space<vmem>>, vector<1x64xf32>
    %59 = vector.broadcast %58 : vector<1x64xf32> to vector<152x64xf32>
    %60 = arith.addf %57, %59 : vector<152x64xf32>
    %cst_37 = arith.constant 0.000000e+00 : f32
    %61 = vector.broadcast %cst_37 : f32 to vector<152x64xf32>
    %62 = arith.maximumf %60, %61 : vector<152x64xf32>
    %63 = arith.truncf %62 : vector<152x64xf32> to vector<152x64xbf16>
    %c0_38 = arith.constant 0 : index
    %c0_39 = arith.constant 0 : index
    %64 = vector.load %arg10[%c0_38, %c0_39] : memref<64x128xbf16, #tpu.memory_space<vmem>>, vector<64x128xbf16>
    %cst_40 = arith.constant dense<0.000000e+00> : vector<152x128xf32>
    %65 = tpu.matmul %63, %64, %cst_40 {dimension_numbers = #tpu.dot_dimension_numbers<[1], [0], [0], [1], [0, 0, 1, 1], [], []>} : vector<152x64xbf16>, vector<64x128xbf16>, vector<152x128xf32> -> vector<152x128xf32>
    %c0_41 = arith.constant 0 : index
    %c1024 = arith.constant 1024 : index
    %66 = vector.load %arg13[%c0_41, %c1024] : memref<1x1920xf32, #tpu.memory_space<vmem>>, vector<1x128xf32>
    %67 = vector.broadcast %66 : vector<1x128xf32> to vector<152x128xf32>
    %68 = arith.addf %65, %67 : vector<152x128xf32>
    %cst_42 = arith.constant 0.000000e+00 : f32
    %69 = vector.broadcast %cst_42 : f32 to vector<152x128xf32>
    %70 = arith.maximumf %68, %69 : vector<152x128xf32>
    %71 = arith.truncf %70 : vector<152x128xf32> to vector<152x128xbf16>
    %c0_43 = arith.constant 0 : index
    %c0_44 = arith.constant 0 : index
    %72 = vector.load %arg11[%c0_43, %c0_44] : memref<128x128xbf16, #tpu.memory_space<vmem>>, vector<128x128xbf16>
    %cst_45 = arith.constant dense<0.000000e+00> : vector<152x128xf32>
    %73 = tpu.matmul %71, %72, %cst_45 {dimension_numbers = #tpu.dot_dimension_numbers<[1], [0], [0], [1], [0, 0, 1, 1], [], []>} : vector<152x128xbf16>, vector<128x128xbf16>, vector<152x128xf32> -> vector<152x128xf32>
    %c0_46 = arith.constant 0 : index
    %c1152 = arith.constant 1152 : index
    %74 = vector.load %arg13[%c0_46, %c1152] : memref<1x1920xf32, #tpu.memory_space<vmem>>, vector<1x128xf32>
    %75 = vector.broadcast %74 : vector<1x128xf32> to vector<152x128xf32>
    %76 = arith.addf %73, %75 : vector<152x128xf32>
    %cst_47 = arith.constant 0.000000e+00 : f32
    %77 = vector.broadcast %cst_47 : f32 to vector<152x128xf32>
    %78 = arith.maximumf %76, %77 : vector<152x128xf32>
    %79 = arith.truncf %78 : vector<152x128xf32> to vector<152x128xbf16>
    %c0_48 = arith.constant 0 : index
    %c0_49 = arith.constant 0 : index
    %80 = vector.load %arg12[%c0_48, %c0_49] : memref<128x640xbf16, #tpu.memory_space<vmem>>, vector<128x640xbf16>
    %cst_50 = arith.constant dense<0.000000e+00> : vector<152x640xf32>
    %81 = tpu.matmul %79, %80, %cst_50 {dimension_numbers = #tpu.dot_dimension_numbers<[1], [0], [0], [1], [0, 0, 1, 1], [], []>} : vector<152x128xbf16>, vector<128x640xbf16>, vector<152x640xf32> -> vector<152x640xf32>
    %c0_51 = arith.constant 0 : index
    %c1280 = arith.constant 1280 : index
    %82 = vector.load %arg13[%c0_51, %c1280] : memref<1x1920xf32, #tpu.memory_space<vmem>>, vector<1x640xf32>
    %83 = vector.broadcast %82 : vector<1x640xf32> to vector<152x640xf32>
    %84 = arith.addf %81, %83 : vector<152x640xf32>
    %85 = arith.truncf %84 : vector<152x640xf32> to vector<152x640xbf16>
    %c0_52 = arith.constant 0 : index
    %c0_53 = arith.constant 0 : index
    %86 = vector.load %arg14[%c0_52, %c0_53] : memref<152x640xbf16, #tpu.memory_space<vmem>>, vector<152x640xbf16>
    tpu.vector_store %arg14[%c0_52, %c0_53], %85 {strides = array<i32>} : memref<152x640xbf16, #tpu.memory_space<vmem>>, vector<152x640xbf16>,
    %cst_54 = arith.constant 0.000000e+00 : f32
    %87 = vector.broadcast %cst_54 : f32 to vector<152x38xf32>
    %88 = vector.extract_strided_slice %46 {offsets = [0, 0], sizes = [152, 30], strides = [1, 1]} : vector<152x128xf32> to vector<152x30xf32>
    %89 = vector.extract_strided_slice %38 {offsets = [0, 0], sizes = [152, 30], strides = [1, 1]} : vector<152x128xf32> to vector<152x30xf32>
    %90 = vector.extract_strided_slice %39 {offsets = [0, 0], sizes = [152, 30], strides = [1, 1]} : vector<152x128xf32> to vector<152x30xf32>
    %91 = tpu.concatenate %88, %89, %90, %87 in 1 : vector<152x30xf32>, vector<152x30xf32>, vector<152x30xf32>, vector<152x38xf32> -> vector<152x128xf32>
    %c0_55 = arith.constant 0 : index
    %c0_56 = arith.constant 0 : index
    %92 = vector.load %arg15[%c0_55, %c0_56] : memref<152x128xf32, #tpu.memory_space<vmem>>, vector<152x128xf32>
    tpu.vector_store %arg15[%c0_55, %c0_56], %91 {strides = array<i32>} : memref<152x128xf32, #tpu.memory_space<vmem>>, vector<152x128xf32>,
    return
  }
  func.func @transform_0(%arg0: i32) -> (i32, i32) {
    %c0_i32 = arith.constant 0 : i32
    %c0_i32_0 = arith.constant 0 : i32
    return %arg0, %c0_i32 : i32, i32
  }
  func.func @transform_1(%arg0: i32) -> (i32, i32) {
    %c0_i32 = arith.constant 0 : i32
    %c0_i32_0 = arith.constant 0 : i32
    return %arg0, %c0_i32 : i32, i32
  }
  func.func @transform_2(%arg0: i32) -> (i32, i32) {
    %c0_i32 = arith.constant 0 : i32
    %c0_i32_0 = arith.constant 0 : i32
    %c0_i32_1 = arith.constant 0 : i32
    return %c0_i32, %c0_i32_0 : i32, i32
  }
  func.func @transform_3(%arg0: i32) -> (i32, i32) {
    %c0_i32 = arith.constant 0 : i32
    %c0_i32_0 = arith.constant 0 : i32
    %c0_i32_1 = arith.constant 0 : i32
    return %c0_i32, %c0_i32_0 : i32, i32
  }
  func.func @transform_4(%arg0: i32) -> (i32, i32) {
    %c0_i32 = arith.constant 0 : i32
    %c0_i32_0 = arith.constant 0 : i32
    %c0_i32_1 = arith.constant 0 : i32
    return %c0_i32, %c0_i32_0 : i32, i32
  }
  func.func @transform_5(%arg0: i32) -> (i32, i32) {
    %c0_i32 = arith.constant 0 : i32
    %c0_i32_0 = arith.constant 0 : i32
    %c0_i32_1 = arith.constant 0 : i32
    return %c0_i32, %c0_i32_0 : i32, i32
  }
  func.func @transform_6(%arg0: i32) -> (i32, i32) {
    %c0_i32 = arith.constant 0 : i32
    %c0_i32_0 = arith.constant 0 : i32
    %c0_i32_1 = arith.constant 0 : i32
    return %c0_i32, %c0_i32_0 : i32, i32
  }
  func.func @transform_7(%arg0: i32) -> (i32, i32) {
    %c0_i32 = arith.constant 0 : i32
    %c0_i32_0 = arith.constant 0 : i32
    %c0_i32_1 = arith.constant 0 : i32
    return %c0_i32, %c0_i32_0 : i32, i32
  }
  func.func @transform_8(%arg0: i32) -> (i32, i32) {
    %c0_i32 = arith.constant 0 : i32
    %c0_i32_0 = arith.constant 0 : i32
    %c0_i32_1 = arith.constant 0 : i32
    return %c0_i32, %c0_i32_0 : i32, i32
  }
  func.func @transform_9(%arg0: i32) -> (i32, i32) {
    %c0_i32 = arith.constant 0 : i32
    %c0_i32_0 = arith.constant 0 : i32
    %c0_i32_1 = arith.constant 0 : i32
    return %c0_i32, %c0_i32_0 : i32, i32
  }
  func.func @transform_10(%arg0: i32) -> (i32, i32) {
    %c0_i32 = arith.constant 0 : i32
    %c0_i32_0 = arith.constant 0 : i32
    %c0_i32_1 = arith.constant 0 : i32
    return %c0_i32, %c0_i32_0 : i32, i32
  }
  func.func @transform_11(%arg0: i32) -> (i32, i32) {
    %c0_i32 = arith.constant 0 : i32
    %c0_i32_0 = arith.constant 0 : i32
    %c0_i32_1 = arith.constant 0 : i32
    return %c0_i32, %c0_i32_0 : i32, i32
  }
  func.func @transform_12(%arg0: i32) -> (i32, i32) {
    %c0_i32 = arith.constant 0 : i32
    %c0_i32_0 = arith.constant 0 : i32
    %c0_i32_1 = arith.constant 0 : i32
    return %c0_i32, %c0_i32_0 : i32, i32
  }
  func.func @transform_13(%arg0: i32) -> (i32, i32) {
    %c0_i32 = arith.constant 0 : i32
    %c0_i32_0 = arith.constant 0 : i32
    return %arg0, %c0_i32 : i32, i32
  }
  func.func @transform_14(%arg0: i32) -> (i32, i32) {
    %c0_i32 = arith.constant 0 : i32
    %c0_i32_0 = arith.constant 0 : i32
    return %arg0, %c0_i32 : i32, i32
  }
}

</mosaic_0001>

<llo_original>
// kernel: autoencoder_forward.1
$region0: #{autoencoder_forward.1}
  #allocation0 [shape = 'u32[]', space=smem, size = 0x4, offset = 0x4, fixed_abs, tag = 'smem constant byte address 0x4 - core index']
  #allocation1 [shape = 'u32[144,128]{1,0:T(1,128)}', space=vmem, size = 0x12000, scoped, tag = 'internal scratch']
  %s0 = inlined_call_operand.vmem [shape: bf16[304,640], index: 0, kind: input, shape index: {}]
  %s1 = inlined_call_operand.vmem [shape: bf16[304,128], index: 1, kind: input, shape index: {}]
  %s2 = inlined_call_operand.vmem [shape: bf16[640,128], index: 2, kind: input, shape index: {}]
  %s3 = inlined_call_operand.vmem [shape: bf16[128,128], index: 3, kind: input, shape index: {}]
  %s4 = inlined_call_operand.vmem [shape: bf16[128,64], index: 4, kind: input, shape index: {}]
  %s5 = inlined_call_operand.vmem [shape: bf16[64,64], index: 5, kind: input, shape index: {}]
  %s6 = inlined_call_operand.vmem [shape: bf16[64,256], index: 6, kind: input, shape index: {}]
  %s7 = inlined_call_operand.vmem [shape: bf16[128,64], index: 7, kind: input, shape index: {}]
  %s8 = inlined_call_operand.vmem [shape: bf16[64,64], index: 8, kind: input, shape index: {}]
  %s9 = inlined_call_operand.vmem [shape: bf16[64,128], index: 9, kind: input, shape index: {}]
  %s10 = inlined_call_operand.vmem [shape: bf16[128,128], index: 10, kind: input, shape index: {}]
  %s11 = inlined_call_operand.vmem [shape: bf16[128,640], index: 11, kind: input, shape index: {}]
  %s12 = inlined_call_operand.vmem [shape: f32[1,1920], index: 12, kind: input, shape index: {}]
  %s13 = inlined_call_operand.hbm [shape: bf16[304,640], index: 13, kind: output, shape index: {0}]
  %s14 = inlined_call_operand.vmem [shape: f32[304,128], index: 14, kind: output, shape index: {1}]
  %15 = xla_tuple %s13, %s14
  %s16 = sld [smem:[#allocation0]]
  $region93: #{autoencoder_forward.1} parent=0
    _
  %s18 = ssub.s32 1, %s16
  %s19 = scalar_select 0, %s18, %s16
  $region1: #{autoencoder_forward.1} parent=0
    #allocation2 [shape = 'u8[389120]{0}', space=vmem, size = 0x5f000, scoped, tag = 'output window, operand 0']
    #allocation3 [shape = 's32[2]{0}', space=sflag, size = 0x8, scoped, tag = 'scoped memory for autoencoder_forward.1']
    %20 = vsyncpa [#allocation3], 0
    %s21 = scalar_lea.sflag [#allocation3], 1
    %22 = vsyncpa %s21, 0
    loop: start=0, step=1, limit=4
    $region2: #{autoencoder_forward.1} parent=1 // loop_pre_header
      _
    $region3: #{autoencoder_forward.1} parent=1 // loop_header
      %s24 = sphi 0, %s28
      %p25 = scmp.ge.s32.totalorder %s24, 4
      %s34 = sphi 0, %s36
      %s37 = sphi 0, %s34
      %s38 = sphi 0, %s37
      %s54 = sphi 0, %s38
      %s60 = sphi 0, %s62
      %s63 = sphi 0, %s60
      %s64 = sphi 0, %s63
      %s80 = sphi 0, %s64
      %s84 = sphi 0, %s84
      %s86 = sphi 0, %s84
      %s87 = sphi 0, %s86
      %s101 = sphi 0, %s87
      %s105 = sphi 0, %s105
      %s107 = sphi 0, %s105
      %s108 = sphi 0, %s107
      %s122 = sphi 0, %s108
      %s126 = sphi 0, %s126
      %s128 = sphi 0, %s126
      %s129 = sphi 0, %s128
      %s143 = sphi 0, %s129
      %s147 = sphi 0, %s147
      %s149 = sphi 0, %s147
      %s150 = sphi 0, %s149
      %s164 = sphi 0, %s150
      %s168 = sphi 0, %s168
      %s170 = sphi 0, %s168
      %s171 = sphi 0, %s170
      %s185 = sphi 0, %s171
      %s189 = sphi 0, %s189
      %s191 = sphi 0, %s189
      %s192 = sphi 0, %s191
      %s206 = sphi 0, %s192
      %s210 = sphi 0, %s210
      %s212 = sphi 0, %s210
      %s213 = sphi 0, %s212
      %s227 = sphi 0, %s213
      %s231 = sphi 0, %s231
      %s233 = sphi 0, %s231
      %s234 = sphi 0, %s233
      %s248 = sphi 0, %s234
      %s252 = sphi 0, %s252
      %s254 = sphi 0, %s252
      %s255 = sphi 0, %s254
      %s269 = sphi 0, %s255
      %s273 = sphi 0, %s273
      %s275 = sphi 0, %s273
      %s276 = sphi 0, %s275
      %s290 = sphi 0, %s276
      %s294 = sphi 0, %s294
      %s296 = sphi 0, %s294
      %s297 = sphi 0, %s296
      %s311 = sphi 0, %s297
      %s317 = sphi 0, %s319
      %s320 = sphi 0, %s317
      %s321 = sphi 0, %s320
      %s337 = sphi 0, %s321
      %s343 = sphi 0, %s345
      %s346 = sphi 0, %s343
      %s347 = sphi 0, %s346
      %s363 = sphi 0, %s347
    $region4: #{autoencoder_forward.1} parent=1 // loop_header_branch
      %27 = sbr.rel (%p25) target = $region8
    $region5: #{autoencoder_forward.1} parent=1 // loop_body
      %s29 = ssub.s32 %s24, 1
      %s30 = ssub.s32 %s24, 2
      %s31 = sadd.s32 %s24, 1
      %s32 = ssub.s32 %s24, %s31
      %p33 = scmp.eq.s32.totalorder %s32, 0
      %s35 = sadd.s32 %s34, 1
      %s36 = scalar_select %p33, %s34, %s35
      %p39 = pneg %p33
      %p40 = scmp.eq.s32.totalorder %s24, 1
      %p41 = por %p39, %p40
      %p42 = scmp.ne.s32.totalorder %s34, %s37
      %p43 = scmp.eq.s32.totalorder %s24, 0
      %p44 = por %p42, %p43
      %p45 = scmp.ne.s32.totalorder %s34, %s37
      %p46 = scmp.eq.s32.totalorder %s29, 1
      %p47 = por %p45, %p46
      %p48 = scmp.ne.s32.totalorder %s37, %s38
      %p49 = scmp.eq.s32.totalorder %s29, 0
      %p50 = por %p48, %p49
      %p51 = scmp.ne.s32.totalorder %s37, %s38
      %p52 = scmp.eq.s32.totalorder %s30, 1
      %p53 = por %p51, %p52
      %p55 = scmp.ne.s32.totalorder %s38, %s54
      %p56 = scmp.eq.s32.totalorder %s30, 0
      %p57 = por %p55, %p56
      %s58 = ssub.s32 %s24, %s31
      %p59 = scmp.eq.s32.totalorder %s58, 0
      %s61 = sadd.s32 %s60, 1
      %s62 = scalar_select %p59, %s60, %s61
      %p65 = pneg %p59
      %p66 = scmp.eq.s32.totalorder %s24, 1
      %p67 = por %p65, %p66
      %p68 = scmp.ne.s32.totalorder %s60, %s63
      %p69 = scmp.eq.s32.totalorder %s24, 0
      %p70 = por %p68, %p69
      %p71 = scmp.ne.s32.totalorder %s60, %s63
      %p72 = scmp.eq.s32.totalorder %s29, 1
      %p73 = por %p71, %p72
      %p74 = scmp.ne.s32.totalorder %s63, %s64
      %p75 = scmp.eq.s32.totalorder %s29, 0
      %p76 = por %p74, %p75
      %p77 = scmp.ne.s32.totalorder %s63, %s64
      %p78 = scmp.eq.s32.totalorder %s30, 1
      %p79 = por %p77, %p78
      %p81 = scmp.ne.s32.totalorder %s64, %s80
      %p82 = scmp.eq.s32.totalorder %s30, 0
      %p83 = por %p81, %p82
      %s85 = sadd.s32 %s84, 1
      %p88 = scmp.eq.s32.totalorder %s24, 1
      %p89 = scmp.ne.s32.totalorder %s84, %s86
      %p90 = scmp.eq.s32.totalorder %s24, 0
      %p91 = por %p89, %p90
      %p92 = scmp.ne.s32.totalorder %s84, %s86
      %p93 = scmp.eq.s32.totalorder %s29, 1
      %p94 = por %p92, %p93
      %p95 = scmp.ne.s32.totalorder %s86, %s87
      %p96 = scmp.eq.s32.totalorder %s29, 0
      %p97 = por %p95, %p96
      %p98 = scmp.ne.s32.totalorder %s86, %s87
      %p99 = scmp.eq.s32.totalorder %s30, 1
      %p100 = por %p98, %p99
      %p102 = scmp.ne.s32.totalorder %s87, %s101
      %p103 = scmp.eq.s32.totalorder %s30, 0
      %p104 = por %p102, %p103
      %s106 = sadd.s32 %s105, 1
      %p109 = scmp.eq.s32.totalorder %s24, 1
      %p110 = scmp.ne.s32.totalorder %s105, %s107
      %p111 = scmp.eq.s32.totalorder %s24, 0
      %p112 = por %p110, %p111
      %p113 = scmp.ne.s32.totalorder %s105, %s107
      %p114 = scmp.eq.s32.totalorder %s29, 1
      %p115 = por %p113, %p114
      %p116 = scmp.ne.s32.totalorder %s107, %s108
      %p117 = scmp.eq.s32.totalorder %s29, 0
      %p118 = por %p116, %p117
      %p119 = scmp.ne.s32.totalorder %s107, %s108
      %p120 = scmp.eq.s32.totalorder %s30, 1
      %p121 = por %p119, %p120
      %p123 = scmp.ne.s32.totalorder %s108, %s122
      %p124 = scmp.eq.s32.totalorder %s30, 0
      %p125 = por %p123, %p124
      %s127 = sadd.s32 %s126, 1
      %p130 = scmp.eq.s32.totalorder %s24, 1
      %p131 = scmp.ne.s32.totalorder %s126, %s128
      %p132 = scmp.eq.s32.totalorder %s24, 0
      %p133 = por %p131, %p132
      %p134 = scmp.ne.s32.totalorder %s126, %s128
      %p135 = scmp.eq.s32.totalorder %s29, 1
      %p136 = por %p134, %p135
      %p137 = scmp.ne.s32.totalorder %s128, %s129
      %p138 = scmp.eq.s32.totalorder %s29, 0
      %p139 = por %p137, %p138
      %p140 = scmp.ne.s32.totalorder %s128, %s129
      %p141 = scmp.eq.s32.totalorder %s30, 1
      %p142 = por %p140, %p141
      %p144 = scmp.ne.s32.totalorder %s129, %s143
      %p145 = scmp.eq.s32.totalorder %s30, 0
      %p146 = por %p144, %p145
      %s148 = sadd.s32 %s147, 1
      %p151 = scmp.eq.s32.totalorder %s24, 1
      %p152 = scmp.ne.s32.totalorder %s147, %s149
      %p153 = scmp.eq.s32.totalorder %s24, 0
      %p154 = por %p152, %p153
      %p155 = scmp.ne.s32.totalorder %s147, %s149
      %p156 = scmp.eq.s32.totalorder %s29, 1
      %p157 = por %p155, %p156
      %p158 = scmp.ne.s32.totalorder %s149, %s150
      %p159 = scmp.eq.s32.totalorder %s29, 0
      %p160 = por %p158, %p159
      %p161 = scmp.ne.s32.totalorder %s149, %s150
      %p162 = scmp.eq.s32.totalorder %s30, 1
      %p163 = por %p161, %p162
      %p165 = scmp.ne.s32.totalorder %s150, %s164
      %p166 = scmp.eq.s32.totalorder %s30, 0
      %p167 = por %p165, %p166
      %s169 = sadd.s32 %s168, 1
      %p172 = scmp.eq.s32.totalorder %s24, 1
      %p173 = scmp.ne.s32.totalorder %s168, %s170
      %p174 = scmp.eq.s32.totalorder %s24, 0
      %p175 = por %p173, %p174
      %p176 = scmp.ne.s32.totalorder %s168, %s170
      %p177 = scmp.eq.s32.totalorder %s29, 1
      %p178 = por %p176, %p177
      %p179 = scmp.ne.s32.totalorder %s170, %s171
      %p180 = scmp.eq.s32.totalorder %s29, 0
      %p181 = por %p179, %p180
      %p182 = scmp.ne.s32.totalorder %s170, %s171
      %p183 = scmp.eq.s32.totalorder %s30, 1
      %p184 = por %p182, %p183
      %p186 = scmp.ne.s32.totalorder %s171, %s185
      %p187 = scmp.eq.s32.totalorder %s30, 0
      %p188 = por %p186, %p187
      %s190 = sadd.s32 %s189, 1
      %p193 = scmp.eq.s32.totalorder %s24, 1
      %p194 = scmp.ne.s32.totalorder %s189, %s191
      %p195 = scmp.eq.s32.totalorder %s24, 0
      %p196 = por %p194, %p195
      %p197 = scmp.ne.s32.totalorder %s189, %s191
      %p198 = scmp.eq.s32.totalorder %s29, 1
      %p199 = por %p197, %p198
      %p200 = scmp.ne.s32.totalorder %s191, %s192
      %p201 = scmp.eq.s32.totalorder %s29, 0
      %p202 = por %p200, %p201
      %p203 = scmp.ne.s32.totalorder %s191, %s192
      %p204 = scmp.eq.s32.totalorder %s30, 1
      %p205 = por %p203, %p204
      %p207 = scmp.ne.s32.totalorder %s192, %s206
      %p208 = scmp.eq.s32.totalorder %s30, 0
      %p209 = por %p207, %p208
      %s211 = sadd.s32 %s210, 1
      %p214 = scmp.eq.s32.totalorder %s24, 1
      %p215 = scmp.ne.s32.totalorder %s210, %s212
      %p216 = scmp.eq.s32.totalorder %s24, 0
      %p217 = por %p215, %p216
      %p218 = scmp.ne.s32.totalorder %s210, %s212
      %p219 = scmp.eq.s32.totalorder %s29, 1
      %p220 = por %p218, %p219
      %p221 = scmp.ne.s32.totalorder %s212, %s213
      %p222 = scmp.eq.s32.totalorder %s29, 0
      %p223 = por %p221, %p222
      %p224 = scmp.ne.s32.totalorder %s212, %s213
      %p225 = scmp.eq.s32.totalorder %s30, 1
      %p226 = por %p224, %p225
      %p228 = scmp.ne.s32.totalorder %s213, %s227
      %p229 = scmp.eq.s32.totalorder %s30, 0
      %p230 = por %p228, %p229
      %s232 = sadd.s32 %s231, 1
      %p235 = scmp.eq.s32.totalorder %s24, 1
      %p236 = scmp.ne.s32.totalorder %s231, %s233
      %p237 = scmp.eq.s32.totalorder %s24, 0
      %p238 = por %p236, %p237
      %p239 = scmp.ne.s32.totalorder %s231, %s233
      %p240 = scmp.eq.s32.totalorder %s29, 1
      %p241 = por %p239, %p240
      %p242 = scmp.ne.s32.totalorder %s233, %s234
      %p243 = scmp.eq.s32.totalorder %s29, 0
      %p244 = por %p242, %p243
      %p245 = scmp.ne.s32.totalorder %s233, %s234
      %p246 = scmp.eq.s32.totalorder %s30, 1
      %p247 = por %p245, %p246
      %p249 = scmp.ne.s32.totalorder %s234, %s248
      %p250 = scmp.eq.s32.totalorder %s30, 0
      %p251 = por %p249, %p250
      %s253 = sadd.s32 %s252, 1
      %p256 = scmp.eq.s32.totalorder %s24, 1
      %p257 = scmp.ne.s32.totalorder %s252, %s254
      %p258 = scmp.eq.s32.totalorder %s24, 0
      %p259 = por %p257, %p258
      %p260 = scmp.ne.s32.totalorder %s252, %s254
      %p261 = scmp.eq.s32.totalorder %s29, 1
      %p262 = por %p260, %p261
      %p263 = scmp.ne.s32.totalorder %s254, %s255
      %p264 = scmp.eq.s32.totalorder %s29, 0
      %p265 = por %p263, %p264
      %p266 = scmp.ne.s32.totalorder %s254, %s255
      %p267 = scmp.eq.s32.totalorder %s30, 1
      %p268 = por %p266, %p267
      %p270 = scmp.ne.s32.totalorder %s255, %s269
      %p271 = scmp.eq.s32.totalorder %s30, 0
      %p272 = por %p270, %p271
      %s274 = sadd.s32 %s273, 1
      %p277 = scmp.eq.s32.totalorder %s24, 1
      %p278 = scmp.ne.s32.totalorder %s273, %s275
      %p279 = scmp.eq.s32.totalorder %s24, 0
      %p280 = por %p278, %p279
      %p281 = scmp.ne.s32.totalorder %s273, %s275
      %p282 = scmp.eq.s32.totalorder %s29, 1
      %p283 = por %p281, %p282
      %p284 = scmp.ne.s32.totalorder %s275, %s276
      %p285 = scmp.eq.s32.totalorder %s29, 0
      %p286 = por %p284, %p285
      %p287 = scmp.ne.s32.totalorder %s275, %s276
      %p288 = scmp.eq.s32.totalorder %s30, 1
      %p289 = por %p287, %p288
      %p291 = scmp.ne.s32.totalorder %s276, %s290
      %p292 = scmp.eq.s32.totalorder %s30, 0
      %p293 = por %p291, %p292
      %s295 = sadd.s32 %s294, 1
      %p298 = scmp.eq.s32.totalorder %s24, 1
      %p299 = scmp.ne.s32.totalorder %s294, %s296
      %p300 = scmp.eq.s32.totalorder %s24, 0
      %p301 = por %p299, %p300
      %p302 = scmp.ne.s32.totalorder %s294, %s296
      %p303 = scmp.eq.s32.totalorder %s29, 1
      %p304 = por %p302, %p303
      %p305 = scmp.ne.s32.totalorder %s296, %s297
      %p306 = scmp.eq.s32.totalorder %s29, 0
      %p307 = por %p305, %p306
      %p308 = scmp.ne.s32.totalorder %s296, %s297
      %p309 = scmp.eq.s32.totalorder %s30, 1
      %p310 = por %p308, %p309
      %p312 = scmp.ne.s32.totalorder %s297, %s311
      %p313 = scmp.eq.s32.totalorder %s30, 0
      %p314 = por %p312, %p313
      %s315 = ssub.s32 %s24, %s31
      %p316 = scmp.eq.s32.totalorder %s315, 0
      %s318 = sadd.s32 %s317, 1
      %s319 = scalar_select %p316, %s317, %s318
      %p322 = pneg %p316
      %p323 = scmp.eq.s32.totalorder %s24, 1
      %p324 = por %p322, %p323
      %p325 = scmp.ne.s32.totalorder %s317, %s320
      %p326 = scmp.eq.s32.totalorder %s24, 0
      %p327 = por %p325, %p326
      %p328 = scmp.ne.s32.totalorder %s317, %s320
      %p329 = scmp.eq.s32.totalorder %s29, 1
      %p330 = por %p328, %p329
      %p331 = scmp.ne.s32.totalorder %s320, %s321
      %p332 = scmp.eq.s32.totalorder %s29, 0
      %p333 = por %p331, %p332
      %p334 = scmp.ne.s32.totalorder %s320, %s321
      %p335 = scmp.eq.s32.totalorder %s30, 1
      %p336 = por %p334, %p335
      %p338 = scmp.ne.s32.totalorder %s321, %s337
      %p339 = scmp.eq.s32.totalorder %s30, 0
      %p340 = por %p338, %p339
      %s341 = ssub.s32 %s24, %s31
      %p342 = scmp.eq.s32.totalorder %s341, 0
      %s344 = sadd.s32 %s343, 1
      %s345 = scalar_select %p342, %s343, %s344
      %p348 = pneg %p342
      %p349 = scmp.eq.s32.totalorder %s24, 1
      %p350 = por %p348, %p349
      %p351 = scmp.ne.s32.totalorder %s343, %s346
      %p352 = scmp.eq.s32.totalorder %s24, 0
      %p353 = por %p351, %p352
      %p354 = scmp.ne.s32.totalorder %s343, %s346
      %p355 = scmp.eq.s32.totalorder %s29, 1
      %p356 = por %p354, %p355
      %p357 = scmp.ne.s32.totalorder %s346, %s347
      %p358 = scmp.eq.s32.totalorder %s29, 0
      %p359 = por %p357, %p358
      %p360 = scmp.ne.s32.totalorder %s346, %s347
      %p361 = scmp.eq.s32.totalorder %s30, 1
      %p362 = por %p360, %p361
      %p364 = scmp.ne.s32.totalorder %s347, %s363
      %p365 = scmp.eq.s32.totalorder %s30, 0
      %p366 = por %p364, %p365
      %p367 = scmp.le.s32.totalorder 1, %s24
      %p368 = scmp.lt.s32.totalorder %s24, 3
      %p369 = pnand %p367, %p368
      %p370 = pneg %p369
      // Predicated region
      $region9: #{autoencoder_forward.1} parent=5 // pred_check
        _
      $region10: #{autoencoder_forward.1} parent=5 // pred_check_branch
        %372 = sbr.rel (%p369) target = $region12
      $region11: #{autoencoder_forward.1} parent=5 // pred_region
        %s373 = ssub.s32 %s24, 1
        // Predicated region
        $region13: #{autoencoder_forward.1} parent=11 // pred_check
          %p374 = pneg %p97
        $region14: #{autoencoder_forward.1} parent=11 // pred_check_branch
          %376 = sbr.rel (%p374) target = $region16
        $region15: #{autoencoder_forward.1} parent=11 // pred_region
          _
        $region16: #{autoencoder_forward.1} parent=11 // pred_fallthru
          _
        // Predicated region
        $region17: #{autoencoder_forward.1} parent=11 // pred_check
          %p377 = pneg %p118
        $region18: #{autoencoder_forward.1} parent=11 // pred_check_branch
          %379 = sbr.rel (%p377) target = $region20
        $region19: #{autoencoder_forward.1} parent=11 // pred_region
          _
        $region20: #{autoencoder_forward.1} parent=11 // pred_fallthru
          _
        // Predicated region
        $region21: #{autoencoder_forward.1} parent=11 // pred_check
          %p380 = pneg %p139
        $region22: #{autoencoder_forward.1} parent=11 // pred_check_branch
          %382 = sbr.rel (%p380) target = $region24
        $region23: #{autoencoder_forward.1} parent=11 // pred_region
          _
        $region24: #{autoencoder_forward.1} parent=11 // pred_fallthru
          _
        // Predicated region
        $region25: #{autoencoder_forward.1} parent=11 // pred_check
          %p383 = pneg %p160
        $region26: #{autoencoder_forward.1} parent=11 // pred_check_branch
          %385 = sbr.rel (%p383) target = $region28
        $region27: #{autoencoder_forward.1} parent=11 // pred_region
          _
        $region28: #{autoencoder_forward.1} parent=11 // pred_fallthru
          _
        // Predicated region
        $region29: #{autoencoder_forward.1} parent=11 // pred_check
          %p386 = pneg %p181
        $region30: #{autoencoder_forward.1} parent=11 // pred_check_branch
          %388 = sbr.rel (%p386) target = $region32
        $region31: #{autoencoder_forward.1} parent=11 // pred_region
          _
        $region32: #{autoencoder_forward.1} parent=11 // pred_fallthru
          _
        // Predicated region
        $region33: #{autoencoder_forward.1} parent=11 // pred_check
          %p389 = pneg %p202
        $region34: #{autoencoder_forward.1} parent=11 // pred_check_branch
          %391 = sbr.rel (%p389) target = $region36
        $region35: #{autoencoder_forward.1} parent=11 // pred_region
          _
        $region36: #{autoencoder_forward.1} parent=11 // pred_fallthru
          _
        // Predicated region
        $region37: #{autoencoder_forward.1} parent=11 // pred_check
          %p392 = pneg %p223
        $region38: #{autoencoder_forward.1} parent=11 // pred_check_branch
          %394 = sbr.rel (%p392) target = $region40
        $region39: #{autoencoder_forward.1} parent=11 // pred_region
          _
        $region40: #{autoencoder_forward.1} parent=11 // pred_fallthru
          _
        // Predicated region
        $region41: #{autoencoder_forward.1} parent=11 // pred_check
          %p395 = pneg %p244
        $region42: #{autoencoder_forward.1} parent=11 // pred_check_branch
          %397 = sbr.rel (%p395) target = $region44
        $region43: #{autoencoder_forward.1} parent=11 // pred_region
          _
        $region44: #{autoencoder_forward.1} parent=11 // pred_fallthru
          _
        // Predicated region
        $region45: #{autoencoder_forward.1} parent=11 // pred_check
          %p398 = pneg %p265
        $region46: #{autoencoder_forward.1} parent=11 // pred_check_branch
          %400 = sbr.rel (%p398) target = $region48
        $region47: #{autoencoder_forward.1} parent=11 // pred_region
          _
        $region48: #{autoencoder_forward.1} parent=11 // pred_fallthru
          _
        // Predicated region
        $region49: #{autoencoder_forward.1} parent=11 // pred_check
          %p401 = pneg %p286
        $region50: #{autoencoder_forward.1} parent=11 // pred_check_branch
          %403 = sbr.rel (%p401) target = $region52
        $region51: #{autoencoder_forward.1} parent=11 // pred_region
          _
        $region52: #{autoencoder_forward.1} parent=11 // pred_fallthru
          _
        // Predicated region
        $region53: #{autoencoder_forward.1} parent=11 // pred_check
          %p404 = pneg %p307
        $region54: #{autoencoder_forward.1} parent=11 // pred_check_branch
          %406 = sbr.rel (%p404) target = $region56
        $region55: #{autoencoder_forward.1} parent=11 // pred_region
          _
        $region56: #{autoencoder_forward.1} parent=11 // pred_fallthru
          _
      $region12: #{autoencoder_forward.1} parent=5 // pred_fallthru
        _
      %p407 = scmp.lt.s32.totalorder %s24, 2
      // Predicated region
      $region57: #{autoencoder_forward.1} parent=5 // pred_check
        %p408 = pneg %p407
      $region58: #{autoencoder_forward.1} parent=5 // pred_check_branch
        %410 = sbr.rel (%p408) target = $region60
      $region59: #{autoencoder_forward.1} parent=5 // pred_region
        // Predicated region
        $region61: #{autoencoder_forward.1} parent=59 // pred_check
          %p411 = pneg %p44
        $region62: #{autoencoder_forward.1} parent=59 // pred_check_branch
          %413 = sbr.rel (%p411) target = $region64
        $region63: #{autoencoder_forward.1} parent=59 // pred_region
          %s414 = smul.u32 19, %s24
          %p415 = scmp.lt.s32.totalorder %s414, 37
          %s416 = scalar_select %p415, %s414, 37
          %s417 = smul.addr %s416, 5
          %s418 = smul.addr %s417, 4
          %s419 = scalar_lea.vmem %s0, %s418
          %s420 = smul.u32 19, %s24
        $region64: #{autoencoder_forward.1} parent=59 // pred_fallthru
          _
        // Predicated region
        $region65: #{autoencoder_forward.1} parent=59 // pred_check
          %p421 = pneg %p70
        $region66: #{autoencoder_forward.1} parent=59 // pred_check_branch
          %423 = sbr.rel (%p421) target = $region68
        $region67: #{autoencoder_forward.1} parent=59 // pred_region
          %s424 = smul.u32 19, %s24
          %p425 = scmp.lt.s32.totalorder %s424, 37
          %s426 = scalar_select %p425, %s424, 37
          %s427 = smul.addr %s426, 4
          %s428 = scalar_lea.vmem %s1, %s427
          %s429 = smul.u32 19, %s24
        $region68: #{autoencoder_forward.1} parent=59 // pred_fallthru
          _
      $region60: #{autoencoder_forward.1} parent=5 // pred_fallthru
        _
      %p430 = scmp.le.s32.totalorder 1, %s24
      %p431 = scmp.lt.s32.totalorder %s24, 3
      %p432 = pnand %p430, %p431
      %p433 = pneg %p432
      // Predicated region
      $region69: #{autoencoder_forward.1} parent=5 // pred_check
        _
      $region70: #{autoencoder_forward.1} parent=5 // pred_check_branch
        %435 = sbr.rel (%p432) target = $region72
      $region71: #{autoencoder_forward.1} parent=5 // pred_region
        %s436 = ssub.s32 %s24, 1
        %s437 = smul.u32 19, %s29
        %p438 = scmp.lt.s32.totalorder %s437, 37
        %s439 = scalar_select %p438, %s437, 37
        %s440 = smul.addr %s439, 5
        %s441 = smul.addr %s440, 4
        %s442 = scalar_lea.vmem %s0, %s441
        %p443 = pneg %p50
        %p444 = pneg %p47
        %s445 = smul.u32 19, %s29
        %p446 = scmp.lt.s32.totalorder %s445, 37
        %s447 = scalar_select %p446, %s445, 37
        %s448 = smul.addr %s447, 4
        %s449 = scalar_lea.vmem %s1, %s448
        %p450 = pneg %p76
        %p451 = pneg %p73
        %p452 = pneg %p97
        %p453 = pneg %p94
        %p454 = pneg %p118
        %p455 = pneg %p115
        %p456 = pneg %p139
        %p457 = pneg %p136
        %p458 = pneg %p160
        %p459 = pneg %p157
        %p460 = pneg %p181
        %p461 = pneg %p178
        %p462 = pneg %p202
        %p463 = pneg %p199
        %p464 = pneg %p223
        %p465 = pneg %p220
        %p466 = pneg %p244
        %p467 = pneg %p241
        %p468 = pneg %p265
        %p469 = pneg %p262
        %p470 = pneg %p286
        %p471 = pneg %p283
        %p472 = pneg %p307
        %p473 = pneg %p304
        %p474 = pneg %p333
        %p475 = pneg %p330
        %s476 = sand.u32 %s320, 1
        %s477 = scalar_lea.sflag [#allocation3], %s476
        %s478 = sand.u32 %s320, 1
        %s479 = smul.addr %s478, 380
        %s480 = scalar_lea.vmem [#allocation2], %s479
        %p481 = pneg %p359
        %p482 = pneg %p356
        %s483 = smul.u32 19, %s29
        %p484 = scmp.lt.s32.totalorder %s483, 37
        %s485 = scalar_select %p484, %s483, 37
        %s486 = smul.addr %s485, 8
        %s487 = scalar_lea.vmem %s14, %s486
        %s488 = smul.u32 19, %s29
        %p489 = scmp.lt.s32.totalorder %s488, 37
        %s490 = scalar_select %p489, %s488, 37
        %s491 = smul.addr %s490, 5
        %s492 = smul.addr %s491, 4
        %s493 = scalar_lea.vmem %s0, %s492
        %s494 = smul.u32 19, %s29
        %s495 = smul.u32 19, %s29
        %p496 = scmp.lt.s32.totalorder %s495, 37
        %s497 = scalar_select %p496, %s495, 37
        %s498 = smul.addr %s497, 4
        %s499 = scalar_lea.vmem %s1, %s498
        %s500 = smul.u32 19, %s29
        %s501 = smul.u32 19, %s29
        %s502 = smul.u32 19, %s29
        %p503 = scmp.lt.s32.totalorder %s502, 37
        %s504 = scalar_select %p503, %s502, 37
        %s505 = smul.addr %s504, 8
        %s506 = scalar_lea.vmem %s14, %s505
        %s507 = smul.u32 19, %s29
        %v509 = vld [vmem:[%s493] sm:$0xff]
        %v510 = vld [vmem:[%s493 + $0x8] sm:$0xff]
        %v511 = vld [vmem:[%s493 + $0x10] sm:$0xf]
        %v512 = vld [vmem:[%s493 + $0x14] sm:$0xff]
        %v513 = vld [vmem:[%s493 + $0x1c] sm:$0xff]
        %v514 = vld [vmem:[%s493 + $0x24] sm:$0xf]
        %v515 = vld [vmem:[%s493 + $0x28] sm:$0xff]
        %v516 = vld [vmem:[%s493 + $0x30] sm:$0xff]
        %v517 = vld [vmem:[%s493 + $0x38] sm:$0xf]
        %v518 = vld [vmem:[%s493 + $0x3c] sm:$0xff]
        %v519 = vld [vmem:[%s493 + $0x44] sm:$0xff]
        %v520 = vld [vmem:[%s493 + $0x4c] sm:$0xf]
        %v521 = vld [vmem:[%s493 + $0x50] sm:$0xff]
        %v522 = vld [vmem:[%s493 + $0x58] sm:$0xff]
        %v523 = vld [vmem:[%s493 + $0x60] sm:$0xf]
        %v524 = vld [vmem:[%s493 + $0x64] sm:$0xff]
        %v525 = vld [vmem:[%s493 + $0x6c] sm:$0xff]
        %v526 = vld [vmem:[%s493 + $0x74] sm:$0xf]
        %v527 = vld [vmem:[%s493 + $0x78] sm:$0xff]
        %v528 = vld [vmem:[%s493 + $0x80] sm:$0xff]
        %v529 = vld [vmem:[%s493 + $0x88] sm:$0xf]
        %v530 = vld [vmem:[%s493 + $0x8c] sm:$0xff]
        %v531 = vld [vmem:[%s493 + $0x94] sm:$0xff]
        %v532 = vld [vmem:[%s493 + $0x9c] sm:$0xf]
        %v533 = vld [vmem:[%s493 + $0xa0] sm:$0xff]
        %v534 = vld [vmem:[%s493 + $0xa8] sm:$0xff]
        %v535 = vld [vmem:[%s493 + $0xb0] sm:$0xf]
        %v536 = vld [vmem:[%s493 + $0xb4] sm:$0xff]
        %v537 = vld [vmem:[%s493 + $0xbc] sm:$0xff]
        %v538 = vld [vmem:[%s493 + $0xc4] sm:$0xf]
        %v539 = vld [vmem:[%s493 + $0xc8] sm:$0xff]
        %v540 = vld [vmem:[%s493 + $0xd0] sm:$0xff]
        %v541 = vld [vmem:[%s493 + $0xd8] sm:$0xf]
        %v542 = vld [vmem:[%s493 + $0xdc] sm:$0xff]
        %v543 = vld [vmem:[%s493 + $0xe4] sm:$0xff]
        %v544 = vld [vmem:[%s493 + $0xec] sm:$0xf]
        %v545 = vld [vmem:[%s493 + $0xf0] sm:$0xff]
        %v546 = vld [vmem:[%s493 + $0xf8] sm:$0xff]
        %v547 = vld [vmem:[%s493 + $0x100] sm:$0xf]
        %v548 = vld [vmem:[%s493 + $0x104] sm:$0xff]
        %v549 = vld [vmem:[%s493 + $0x10c] sm:$0xff]
        %v550 = vld [vmem:[%s493 + $0x114] sm:$0xf]
        %v551 = vld [vmem:[%s493 + $0x118] sm:$0xff]
        %v552 = vld [vmem:[%s493 + $0x120] sm:$0xff]
        %v553 = vld [vmem:[%s493 + $0x128] sm:$0xf]
        %v554 = vld [vmem:[%s493 + $0x12c] sm:$0xff]
        %v555 = vld [vmem:[%s493 + $0x134] sm:$0xff]
        %v556 = vld [vmem:[%s493 + $0x13c] sm:$0xf]
        %v557 = vld [vmem:[%s493 + $0x140] sm:$0xff]
        %v558 = vld [vmem:[%s493 + $0x148] sm:$0xff]
        %v559 = vld [vmem:[%s493 + $0x150] sm:$0xf]
        %v560 = vld [vmem:[%s493 + $0x154] sm:$0xff]
        %v561 = vld [vmem:[%s493 + $0x15c] sm:$0xff]
        %v562 = vld [vmem:[%s493 + $0x164] sm:$0xf]
        %v563 = vld [vmem:[%s493 + $0x168] sm:$0xff]
        %v564 = vld [vmem:[%s493 + $0x170] sm:$0xff]
        %v565 = vld [vmem:[%s493 + $0x178] sm:$0xf]
        %v566 = vld [vmem:[%s2] sm:$0xf]
        %v567 = vld [vmem:[%s2 + $0x4] sm:$0xf]
        %v568 = vld [vmem:[%s2 + $0x8] sm:$0xf]
        %v569 = vld [vmem:[%s2 + $0xc] sm:$0xf]
        %v570 = vld [vmem:[%s2 + $0x10] sm:$0xf]
        %v571 = vld [vmem:[%s2 + $0x14] sm:$0xf]
        %v572 = vld [vmem:[%s2 + $0x18] sm:$0xf]
        %v573 = vld [vmem:[%s2 + $0x1c] sm:$0xf]
        %v574 = vld [vmem:[%s2 + $0x20] sm:$0xf]
        %v575 = vld [vmem:[%s2 + $0x24] sm:$0xf]
        %v576 = vld [vmem:[%s2 + $0x28] sm:$0xf]
        %v577 = vld [vmem:[%s2 + $0x2c] sm:$0xf]
        %v578 = vld [vmem:[%s2 + $0x30] sm:$0xf]
        %v579 = vld [vmem:[%s2 + $0x34] sm:$0xf]
        %v580 = vld [vmem:[%s2 + $0x38] sm:$0xf]
        %v581 = vld [vmem:[%s2 + $0x3c] sm:$0xf]
        %v582 = vld [vmem:[%s2 + $0x40] sm:$0xf]
        %v583 = vld [vmem:[%s2 + $0x44] sm:$0xf]
        %v584 = vld [vmem:[%s2 + $0x48] sm:$0xf]
        %v585 = vld [vmem:[%s2 + $0x4c] sm:$0xf]
        %v586 = vld [vmem:[%s2 + $0x50] sm:$0xf]
        %v587 = vld [vmem:[%s2 + $0x54] sm:$0xf]
        %v588 = vld [vmem:[%s2 + $0x58] sm:$0xf]
        %v589 = vld [vmem:[%s2 + $0x5c] sm:$0xf]
        %v590 = vld [vmem:[%s2 + $0x60] sm:$0xf]
        %v591 = vld [vmem:[%s2 + $0x64] sm:$0xf]
        %v592 = vld [vmem:[%s2 + $0x68] sm:$0xf]
        %v593 = vld [vmem:[%s2 + $0x6c] sm:$0xf]
        %v594 = vld [vmem:[%s2 + $0x70] sm:$0xf]
        %v595 = vld [vmem:[%s2 + $0x74] sm:$0xf]
        %v596 = vld [vmem:[%s2 + $0x78] sm:$0xf]
        %v597 = vld [vmem:[%s2 + $0x7c] sm:$0xf]
        %v598 = vld [vmem:[%s2 + $0x80] sm:$0xf]
        %v599 = vld [vmem:[%s2 + $0x84] sm:$0xf]
        %v600 = vld [vmem:[%s2 + $0x88] sm:$0xf]
        %v601 = vld [vmem:[%s2 + $0x8c] sm:$0xf]
        %v602 = vld [vmem:[%s2 + $0x90] sm:$0xf]
        %v603 = vld [vmem:[%s2 + $0x94] sm:$0xf]
        %v604 = vld [vmem:[%s2 + $0x98] sm:$0xf]
        %v605 = vld [vmem:[%s2 + $0x9c] sm:$0xf]
        %v606 = vld [vmem:[%s2 + $0xa0] sm:$0xf]
        %v607 = vld [vmem:[%s2 + $0xa4] sm:$0xf]
        %v608 = vld [vmem:[%s2 + $0xa8] sm:$0xf]
        %v609 = vld [vmem:[%s2 + $0xac] sm:$0xf]
        %v610 = vld [vmem:[%s2 + $0xb0] sm:$0xf]
        %v611 = vld [vmem:[%s2 + $0xb4] sm:$0xf]
        %v612 = vld [vmem:[%s2 + $0xb8] sm:$0xf]
        %v613 = vld [vmem:[%s2 + $0xbc] sm:$0xf]
        %v614 = vld [vmem:[%s2 + $0xc0] sm:$0xf]
        %v615 = vld [vmem:[%s2 + $0xc4] sm:$0xf]
        %v616 = vld [vmem:[%s2 + $0xc8] sm:$0xf]
        %v617 = vld [vmem:[%s2 + $0xcc] sm:$0xf]
        %v618 = vld [vmem:[%s2 + $0xd0] sm:$0xf]
        %v619 = vld [vmem:[%s2 + $0xd4] sm:$0xf]
        %v620 = vld [vmem:[%s2 + $0xd8] sm:$0xf]
        %v621 = vld [vmem:[%s2 + $0xdc] sm:$0xf]
        %v622 = vld [vmem:[%s2 + $0xe0] sm:$0xf]
        %v623 = vld [vmem:[%s2 + $0xe4] sm:$0xf]
        %v624 = vld [vmem:[%s2 + $0xe8] sm:$0xf]
        %v625 = vld [vmem:[%s2 + $0xec] sm:$0xf]
        %v626 = vld [vmem:[%s2 + $0xf0] sm:$0xf]
        %v627 = vld [vmem:[%s2 + $0xf4] sm:$0xf]
        %v628 = vld [vmem:[%s2 + $0xf8] sm:$0xf]
        %v629 = vld [vmem:[%s2 + $0xfc] sm:$0xf]
        %v630 = vld [vmem:[%s2 + $0x100] sm:$0xf]
        %v631 = vld [vmem:[%s2 + $0x104] sm:$0xf]
        %v632 = vld [vmem:[%s2 + $0x108] sm:$0xf]
        %v633 = vld [vmem:[%s2 + $0x10c] sm:$0xf]
        %v634 = vld [vmem:[%s2 + $0x110] sm:$0xf]
        %v635 = vld [vmem:[%s2 + $0x114] sm:$0xf]
        %v636 = vld [vmem:[%s2 + $0x118] sm:$0xf]
        %v637 = vld [vmem:[%s2 + $0x11c] sm:$0xf]
        %v638 = vld [vmem:[%s2 + $0x120] sm:$0xf]
        %v639 = vld [vmem:[%s2 + $0x124] sm:$0xf]
        %v640 = vld [vmem:[%s2 + $0x128] sm:$0xf]
        %v641 = vld [vmem:[%s2 + $0x12c] sm:$0xf]
        %v642 = vld [vmem:[%s2 + $0x130] sm:$0xf]
        %v643 = vld [vmem:[%s2 + $0x134] sm:$0xf]
        %v644 = vld [vmem:[%s2 + $0x138] sm:$0xf]
        %v645 = vld [vmem:[%s2 + $0x13c] sm:$0xf]
        %v646 = vld [vmem:[%s12] sm:$0x1]
        %v648 = vlaneseq
        %v649 = vshrl.u32 %v648, 7
        %v650 = vsub.s32 0, %v649
        %v651 = vrot.slane %v646, %v650
        %v710 = vunpack.c.l.b16 %v509
        %v711 = vunpack.c.h.b16 %v509
        %v712 = vunpack.c.l.b16 %v510
        %v713 = vunpack.c.h.b16 %v510
        %v714 = vunpack.c.l.b16 %v511
        %v715 = vunpack.c.l.b16 %v512
        %v716 = vunpack.c.h.b16 %v512
        %v717 = vunpack.c.l.b16 %v513
        %v718 = vunpack.c.h.b16 %v513
        %v719 = vunpack.c.l.b16 %v514
        %v720 = vunpack.c.l.b16 %v515
        %v721 = vunpack.c.h.b16 %v515
        %v722 = vunpack.c.l.b16 %v516
        %v723 = vunpack.c.h.b16 %v516
        %v724 = vunpack.c.l.b16 %v517
        %v725 = vunpack.c.l.b16 %v518
        %v726 = vunpack.c.h.b16 %v518
        %v727 = vunpack.c.l.b16 %v519
        %v728 = vunpack.c.h.b16 %v519
        %v729 = vunpack.c.l.b16 %v520
        %v730 = vunpack.c.l.b16 %v521
        %v731 = vunpack.c.h.b16 %v521
        %v732 = vunpack.c.l.b16 %v522
        %v733 = vunpack.c.h.b16 %v522
        %v734 = vunpack.c.l.b16 %v523
        %v735 = vunpack.c.l.b16 %v524
        %v736 = vunpack.c.h.b16 %v524
        %v737 = vunpack.c.l.b16 %v525
        %v738 = vunpack.c.h.b16 %v525
        %v739 = vunpack.c.l.b16 %v526
        %v740 = vunpack.c.l.b16 %v527
        %v741 = vunpack.c.h.b16 %v527
        %v742 = vunpack.c.l.b16 %v528
        %v743 = vunpack.c.h.b16 %v528
        %v744 = vunpack.c.l.b16 %v529
        %v745 = vunpack.c.l.b16 %v530
        %v746 = vunpack.c.h.b16 %v530
        %v747 = vunpack.c.l.b16 %v531
        %v748 = vunpack.c.h.b16 %v531
        %v749 = vunpack.c.l.b16 %v532
        %v750 = vunpack.c.l.b16 %v533
        %v751 = vunpack.c.h.b16 %v533
        %v752 = vunpack.c.l.b16 %v534
        %v753 = vunpack.c.h.b16 %v534
        %v754 = vunpack.c.l.b16 %v535
        %v755 = vunpack.c.l.b16 %v536
        %v756 = vunpack.c.h.b16 %v536
        %v757 = vunpack.c.l.b16 %v537
        %v758 = vunpack.c.h.b16 %v537
        %v759 = vunpack.c.l.b16 %v538
        %v760 = vunpack.c.l.b16 %v539
        %v761 = vunpack.c.h.b16 %v539
        %v762 = vunpack.c.l.b16 %v540
        %v763 = vunpack.c.h.b16 %v540
        %v764 = vunpack.c.l.b16 %v541
        %v765 = vunpack.c.l.b16 %v542
        %v766 = vunpack.c.h.b16 %v542
        %v767 = vunpack.c.l.b16 %v543
        %v768 = vunpack.c.h.b16 %v543
        %v769 = vunpack.c.l.b16 %v544
        %v770 = vunpack.c.l.b16 %v545
        %v771 = vunpack.c.h.b16 %v545
        %v772 = vunpack.c.l.b16 %v546
        %v773 = vunpack.c.h.b16 %v546
        %v774 = vunpack.c.l.b16 %v547
        %v775 = vunpack.c.l.b16 %v548
        %v776 = vunpack.c.h.b16 %v548
        %v777 = vunpack.c.l.b16 %v549
        %v778 = vunpack.c.h.b16 %v549
        %v779 = vunpack.c.l.b16 %v550
        %v780 = vunpack.c.l.b16 %v551
        %v781 = vunpack.c.h.b16 %v551
        %v782 = vunpack.c.l.b16 %v552
        %v783 = vunpack.c.h.b16 %v552
        %v784 = vunpack.c.l.b16 %v553
        %v785 = vunpack.c.l.b16 %v554
        %v786 = vunpack.c.h.b16 %v554
        %v787 = vunpack.c.l.b16 %v555
        %v788 = vunpack.c.h.b16 %v555
        %v789 = vunpack.c.l.b16 %v556
        %v790 = vunpack.c.l.b16 %v557
        %v791 = vunpack.c.h.b16 %v557
        %v792 = vunpack.c.l.b16 %v558
        %v793 = vunpack.c.h.b16 %v558
        %v794 = vunpack.c.l.b16 %v559
        %v795 = vunpack.c.l.b16 %v560
        %v796 = vunpack.c.h.b16 %v560
        %v797 = vunpack.c.l.b16 %v561
        %v798 = vunpack.c.h.b16 %v561
        %v799 = vunpack.c.l.b16 %v562
        %v800 = vunpack.c.l.b16 %v563
        %v801 = vunpack.c.h.b16 %v563
        %v802 = vunpack.c.l.b16 %v564
        %v803 = vunpack.c.h.b16 %v564
        %v804 = vunpack.c.l.b16 %v565
        %v805 = vpack.c.b16 %v715, %v710
        %v806 = vpack.c.b16 %v716, %v711
        %v807 = vpack.c.b16 %v717, %v712
        %v808 = vpack.c.b16 %v718, %v713
        %v809 = vpack.c.b16 %v719, %v714
        %v810 = vpack.c.b16 %v725, %v720
        %v811 = vpack.c.b16 %v726, %v721
        %v812 = vpack.c.b16 %v727, %v722
        %v813 = vpack.c.b16 %v728, %v723
        %v814 = vpack.c.b16 %v729, %v724
        %v815 = vpack.c.b16 %v735, %v730
        %v816 = vpack.c.b16 %v736, %v731
        %v817 = vpack.c.b16 %v737, %v732
        %v818 = vpack.c.b16 %v738, %v733
        %v819 = vpack.c.b16 %v739, %v734
        %v820 = vpack.c.b16 %v745, %v740
        %v821 = vpack.c.b16 %v746, %v741
        %v822 = vpack.c.b16 %v747, %v742
        %v823 = vpack.c.b16 %v748, %v743
        %v824 = vpack.c.b16 %v749, %v744
        %v825 = vpack.c.b16 %v755, %v750
        %v826 = vpack.c.b16 %v756, %v751
        %v827 = vpack.c.b16 %v757, %v752
        %v828 = vpack.c.b16 %v758, %v753
        %v829 = vpack.c.b16 %v759, %v754
        %v830 = vpack.c.b16 %v765, %v760
        %v831 = vpack.c.b16 %v766, %v761
        %v832 = vpack.c.b16 %v767, %v762
        %v833 = vpack.c.b16 %v768, %v763
        %v834 = vpack.c.b16 %v769, %v764
        %v835 = vpack.c.b16 %v775, %v770
        %v836 = vpack.c.b16 %v776, %v771
        %v837 = vpack.c.b16 %v777, %v772
        %v838 = vpack.c.b16 %v778, %v773
        %v839 = vpack.c.b16 %v779, %v774
        %v840 = vpack.c.b16 %v785, %v780
        %v841 = vpack.c.b16 %v786, %v781
        %v842 = vpack.c.b16 %v787, %v782
        %v843 = vpack.c.b16 %v788, %v783
        %v844 = vpack.c.b16 %v789, %v784
        %v845 = vpack.c.b16 %v795, %v790
        %v846 = vpack.c.b16 %v796, %v791
        %v847 = vpack.c.b16 %v797, %v792
        %v848 = vpack.c.b16 %v798, %v793
        %v849 = vpack.c.b16 %v799, %v794
        %v850 = vpack.c.b16 %v800, %v800
        %v851 = vpack.c.b16 %v801, %v801
        %v852 = vpack.c.b16 %v802, %v802
        %v853 = vpack.c.b16 %v803, %v803
        %v854 = vpack.c.b16 %v804, %v804
        %v985 = vunpack.c.l.b16 %v566
        %v986 = vunpack.c.l.b16 %v567
        %v987 = vunpack.c.l.b16 %v568
        %v988 = vunpack.c.l.b16 %v569
        %v989 = vunpack.c.l.b16 %v570
        %v990 = vunpack.c.l.b16 %v571
        %v991 = vunpack.c.l.b16 %v572
        %v992 = vunpack.c.l.b16 %v573
        %v993 = vunpack.c.l.b16 %v574
        %v994 = vunpack.c.l.b16 %v575
        %v995 = vunpack.c.l.b16 %v576
        %v996 = vunpack.c.l.b16 %v577
        %v997 = vunpack.c.l.b16 %v578
        %v998 = vunpack.c.l.b16 %v579
        %v999 = vunpack.c.l.b16 %v580
        %v1000 = vunpack.c.l.b16 %v581
        %v1001 = vunpack.c.l.b16 %v582
        %v1002 = vunpack.c.l.b16 %v583
        %v1003 = vunpack.c.l.b16 %v584
        %v1004 = vunpack.c.l.b16 %v585
        %v1005 = vunpack.c.l.b16 %v586
        %v1006 = vunpack.c.l.b16 %v587
        %v1007 = vunpack.c.l.b16 %v588
        %v1008 = vunpack.c.l.b16 %v589
        %v1009 = vunpack.c.l.b16 %v590
        %v1010 = vunpack.c.l.b16 %v591
        %v1011 = vunpack.c.l.b16 %v592
        %v1012 = vunpack.c.l.b16 %v593
        %v1013 = vunpack.c.l.b16 %v594
        %v1014 = vunpack.c.l.b16 %v595
        %v1015 = vunpack.c.l.b16 %v596
        %v1016 = vunpack.c.l.b16 %v597
        %v1017 = vunpack.c.l.b16 %v598
        %v1018 = vunpack.c.l.b16 %v599
        %v1019 = vunpack.c.l.b16 %v600
        %v1020 = vunpack.c.l.b16 %v601
        %v1021 = vunpack.c.l.b16 %v602
        %v1022 = vunpack.c.l.b16 %v603
        %v1023 = vunpack.c.l.b16 %v604
        %v1024 = vunpack.c.l.b16 %v605
        %v1025 = vunpack.c.l.b16 %v606
        %v1026 = vunpack.c.l.b16 %v607
        %v1027 = vunpack.c.l.b16 %v608
        %v1028 = vunpack.c.l.b16 %v609
        %v1029 = vunpack.c.l.b16 %v610
        %v1030 = vunpack.c.l.b16 %v611
        %v1031 = vunpack.c.l.b16 %v612
        %v1032 = vunpack.c.l.b16 %v613
        %v1033 = vunpack.c.l.b16 %v614
        %v1034 = vunpack.c.l.b16 %v615
        %v1035 = vunpack.c.l.b16 %v616
        %v1036 = vunpack.c.l.b16 %v617
        %v1037 = vunpack.c.l.b16 %v618
        %v1038 = vunpack.c.l.b16 %v619
        %v1039 = vunpack.c.l.b16 %v620
        %v1040 = vunpack.c.l.b16 %v621
        %v1041 = vunpack.c.l.b16 %v622
        %v1042 = vunpack.c.l.b16 %v623
        %v1043 = vunpack.c.l.b16 %v624
        %v1044 = vunpack.c.l.b16 %v625
        %v1045 = vunpack.c.l.b16 %v626
        %v1046 = vunpack.c.l.b16 %v627
        %v1047 = vunpack.c.l.b16 %v628
        %v1048 = vunpack.c.l.b16 %v629
        %v1049 = vunpack.c.l.b16 %v630
        %v1050 = vunpack.c.l.b16 %v631
        %v1051 = vunpack.c.l.b16 %v632
        %v1052 = vunpack.c.l.b16 %v633
        %v1053 = vunpack.c.l.b16 %v634
        %v1054 = vunpack.c.l.b16 %v635
        %v1055 = vunpack.c.l.b16 %v636
        %v1056 = vunpack.c.l.b16 %v637
        %v1057 = vunpack.c.l.b16 %v638
        %v1058 = vunpack.c.l.b16 %v639
        %v1059 = vunpack.c.l.b16 %v640
        %v1060 = vunpack.c.l.b16 %v641
        %v1061 = vunpack.c.l.b16 %v642
        %v1062 = vunpack.c.l.b16 %v643
        %v1063 = vunpack.c.l.b16 %v644
        %v1064 = vunpack.c.l.b16 %v645
        %v1065 = vpack.c.b16 %v986, %v985
        %v1066 = vpack.c.b16 %v988, %v987
        %v1067 = vpack.c.b16 %v990, %v989
        %v1068 = vpack.c.b16 %v992, %v991
        %v1069 = vpack.c.b16 %v994, %v993
        %v1070 = vpack.c.b16 %v996, %v995
        %v1071 = vpack.c.b16 %v998, %v997
        %v1072 = vpack.c.b16 %v1000, %v999
        %v1073 = vpack.c.b16 %v1002, %v1001
        %v1074 = vpack.c.b16 %v1004, %v1003
        %v1075 = vpack.c.b16 %v1006, %v1005
        %v1076 = vpack.c.b16 %v1008, %v1007
        %v1077 = vpack.c.b16 %v1010, %v1009
        %v1078 = vpack.c.b16 %v1012, %v1011
        %v1079 = vpack.c.b16 %v1014, %v1013
        %v1080 = vpack.c.b16 %v1016, %v1015
        %v1081 = vpack.c.b16 %v1018, %v1017
        %v1082 = vpack.c.b16 %v1020, %v1019
        %v1083 = vpack.c.b16 %v1022, %v1021
        %v1084 = vpack.c.b16 %v1024, %v1023
        %v1085 = vpack.c.b16 %v1026, %v1025
        %v1086 = vpack.c.b16 %v1028, %v1027
        %v1087 = vpack.c.b16 %v1030, %v1029
        %v1088 = vpack.c.b16 %v1032, %v1031
        %v1089 = vpack.c.b16 %v1034, %v1033
        %v1090 = vpack.c.b16 %v1036, %v1035
        %v1091 = vpack.c.b16 %v1038, %v1037
        %v1092 = vpack.c.b16 %v1040, %v1039
        %v1093 = vpack.c.b16 %v1042, %v1041
        %v1094 = vpack.c.b16 %v1044, %v1043
        %v1095 = vpack.c.b16 %v1046, %v1045
        %v1096 = vpack.c.b16 %v1048, %v1047
        %v1097 = vpack.c.b16 %v1050, %v1049
        %v1098 = vpack.c.b16 %v1052, %v1051
        %v1099 = vpack.c.b16 %v1054, %v1053
        %v1100 = vpack.c.b16 %v1056, %v1055
        %v1101 = vpack.c.b16 %v1058, %v1057
        %v1102 = vpack.c.b16 %v1060, %v1059
        %v1103 = vpack.c.b16 %v1062, %v1061
        %v1104 = vpack.c.b16 %v1064, %v1063
        %1145 = vmatprep.subr.bf16.mxu0 0
        %1146 = vmatpush1.bf16.msra.mxu0 %v1065
        %1147 = vmatprep.subr.bf16.mxu0 0
        %1148 = vmatpush1.bf16.msra.mxu0 %v1066
        %1149 = vmatprep.subr.bf16.mxu0 0
        %1150 = vmatpush1.bf16.msra.mxu0 %v1067
        %1151 = vmatprep.subr.bf16.mxu0 0
        %1152 = vmatpush1.bf16.msra.mxu0 %v1068
        %1153 = vmatprep.subr.bf16.mxu0 0
        %1154 = vmatpush1.bf16.msra.mxu0 %v1069
        %1155 = vmatprep.subr.bf16.mxu0 0
        %1156 = vmatpush1.bf16.msra.mxu0 %v1070
        %1157 = vmatprep.subr.bf16.mxu0 0
        %1158 = vmatpush1.bf16.msra.mxu0 %v1071
        %1159 = vmatprep.subr.bf16.mxu0 0
        %1160 = vmatpush1.bf16.msra.mxu0 %v1072
        %1161 = vmatprep.subr.bf16.mxu0 0
        %1162 = vmatpush1.bf16.msra.mxu0 %v1073
        %1163 = vmatprep.subr.bf16.mxu0 0
        %1164 = vmatpush1.bf16.msra.mxu0 %v1074
        %1165 = vmatprep.subr.bf16.mxu0 0
        %1166 = vmatpush1.bf16.msra.mxu0 %v1075
        %1167 = vmatprep.subr.bf16.mxu0 0
        %1168 = vmatpush1.bf16.msra.mxu0 %v1076
        %1169 = vmatprep.subr.bf16.mxu0 0
        %1170 = vmatpush1.bf16.msra.mxu0 %v1077
        %1171 = vmatprep.subr.bf16.mxu0 0
        %1172 = vmatpush1.bf16.msra.mxu0 %v1078
        %1173 = vmatprep.subr.bf16.mxu0 0
        %1174 = vmatpush1.bf16.msra.mxu0 %v1079
        %1175 = vmatprep.subr.bf16.mxu0 0
        %1176 = vmatpush1.bf16.msra.mxu0 %v1080
        %1177 = vmatprep.mubr.bf16.mxu0 %v806
        %1178 = vmatmul.mubr.bf16.gmra.mrb[0].mxu0 %v805
        %v1179 = vpop.f32.mrb[0].mxu0
        %v1180 = vadd.f32 %v651, %v1179
        %v1181 = vpop.f32.mrb[0].mxu0
        %v1182 = vpop.f32.mrb[0].mxu0
        %v1183 = vadd.f32 %v651, %v1182
        %v1184 = vpop.f32.mrb[0].mxu0
        %1185 = vmatprep.mubr.bf16.mxu0 %v811
        %1186 = vmatmul.mubr.bf16.gmra.mrb[0].mxu0 %v810
        %v1187 = vpop.f32.mrb[0].mxu0
        %v1188 = vadd.f32 %v651, %v1187
        %v1189 = vpop.f32.mrb[0].mxu0
        %v1190 = vpop.f32.mrb[0].mxu0
        %v1191 = vadd.f32 %v651, %v1190
        %v1192 = vpop.f32.mrb[0].mxu0
        %1193 = vmatprep.mubr.bf16.mxu0 %v816
        %1194 = vmatmul.mubr.bf16.gmra.mrb[0].mxu0 %v815
        %v1195 = vpop.f32.mrb[0].mxu0
        %v1196 = vadd.f32 %v651, %v1195
        %v1197 = vpop.f32.mrb[0].mxu0
        %v1198 = vpop.f32.mrb[0].mxu0
        %v1199 = vadd.f32 %v651, %v1198
        %v1200 = vpop.f32.mrb[0].mxu0
        %1201 = vmatprep.mubr.bf16.mxu0 %v821
        %1202 = vmatmul.mubr.bf16.gmra.mrb[0].mxu0 %v820
        %v1203 = vpop.f32.mrb[0].mxu0
        %v1204 = vadd.f32 %v651, %v1203
        %v1205 = vpop.f32.mrb[0].mxu0
        %v1206 = vpop.f32.mrb[0].mxu0
        %v1207 = vadd.f32 %v651, %v1206
        %v1208 = vpop.f32.mrb[0].mxu0
        %1209 = vmatprep.mubr.bf16.mxu0 %v826
        %1210 = vmatmul.mubr.bf16.gmra.mrb[0].mxu0 %v825
        %v1211 = vpop.f32.mrb[0].mxu0
        %v1212 = vadd.f32 %v651, %v1211
        %v1213 = vpop.f32.mrb[0].mxu0
        %v1214 = vpop.f32.mrb[0].mxu0
        %v1215 = vadd.f32 %v651, %v1214
        %v1216 = vpop.f32.mrb[0].mxu0
        %1217 = vmatprep.mubr.bf16.mxu0 %v831
        %1218 = vmatmul.mubr.bf16.gmra.mrb[0].mxu0 %v830
        %v1219 = vpop.f32.mrb[0].mxu0
        %v1220 = vadd.f32 %v651, %v1219
        %v1221 = vpop.f32.mrb[0].mxu0
        %v1222 = vpop.f32.mrb[0].mxu0
        %v1223 = vadd.f32 %v651, %v1222
        %v1224 = vpop.f32.mrb[0].mxu0
        %1225 = vmatprep.mubr.bf16.mxu0 %v836
        %1226 = vmatmul.mubr.bf16.gmra.mrb[0].mxu0 %v835
        %v1227 = vpop.f32.mrb[0].mxu0
        %v1228 = vadd.f32 %v651, %v1227
        %v1229 = vpop.f32.mrb[0].mxu0
        %v1230 = vpop.f32.mrb[0].mxu0
        %v1231 = vadd.f32 %v651, %v1230
        %v1232 = vpop.f32.mrb[0].mxu0
        %1233 = vmatprep.mubr.bf16.mxu0 %v841
        %1234 = vmatmul.mubr.bf16.gmra.mrb[0].mxu0 %v840
        %v1235 = vpop.f32.mrb[0].mxu0
        %v1236 = vadd.f32 %v651, %v1235
        %v1237 = vpop.f32.mrb[0].mxu0
        %v1238 = vpop.f32.mrb[0].mxu0
        %v1239 = vadd.f32 %v651, %v1238
        %v1240 = vpop.f32.mrb[0].mxu0
        %1241 = vmatprep.mubr.bf16.mxu0 %v846
        %1242 = vmatmul.mubr.bf16.gmra.mrb[0].mxu0 %v845
        %v1243 = vpop.f32.mrb[0].mxu0
        %v1244 = vadd.f32 %v651, %v1243
        %v1245 = vpop.f32.mrb[0].mxu0
        %v1246 = vpop.f32.mrb[0].mxu0
        %v1247 = vadd.f32 %v651, %v1246
        %v1248 = vpop.f32.mrb[0].mxu0
        %1249 = vmatprep.mubr.bf16.mxu0 %v851
        %1250 = vmatmul.mubr.bf16.gmra.mrb[0].mxu0 %v850
        %v1251 = vpop.f32.mrb[0].mxu0
        %v1252 = vadd.f32 %v651, %v1251
        %v1253 = vpop.f32.mrb[0].mxu0
        %v1254 = vpop.f32.mrb[0].mxu0
        %v1255 = vpop.f32.mrb[0].mxu0
        %1256 = vdwg.mxu0
        %1257 = vmatprep.subr.bf16.mxu0 0
        %1258 = vmatpush1.bf16.msra.mxu0 %v1081
        %1259 = vmatprep.subr.bf16.mxu0 0
        %1260 = vmatpush1.bf16.msra.mxu0 %v1082
        %1261 = vmatprep.subr.bf16.mxu0 0
        %1262 = vmatpush1.bf16.msra.mxu0 %v1083
        %1263 = vmatprep.subr.bf16.mxu0 0
        %1264 = vmatpush1.bf16.msra.mxu0 %v1084
        %1265 = vmatprep.subr.bf16.mxu0 0
        %1266 = vmatpush1.bf16.msra.mxu0 %v1085
        %1267 = vmatprep.subr.bf16.mxu0 0
        %1268 = vmatpush1.bf16.msra.mxu0 %v1086
        %1269 = vmatprep.subr.bf16.mxu0 0
        %1270 = vmatpush1.bf16.msra.mxu0 %v1087
        %1271 = vmatprep.subr.bf16.mxu0 0
        %1272 = vmatpush1.bf16.msra.mxu0 %v1088
        %1273 = vmatprep.subr.bf16.mxu0 0
        %1274 = vmatpush1.bf16.msra.mxu0 %v1089
        %1275 = vmatprep.subr.bf16.mxu0 0
        %1276 = vmatpush1.bf16.msra.mxu0 %v1090
        %1277 = vmatprep.subr.bf16.mxu0 0
        %1278 = vmatpush1.bf16.msra.mxu0 %v1091
        %1279 = vmatprep.subr.bf16.mxu0 0
        %1280 = vmatpush1.bf16.msra.mxu0 %v1092
        %1281 = vmatprep.subr.bf16.mxu0 0
        %1282 = vmatpush1.bf16.msra.mxu0 %v1093
        %1283 = vmatprep.subr.bf16.mxu0 0
        %1284 = vmatpush1.bf16.msra.mxu0 %v1094
        %1285 = vmatprep.subr.bf16.mxu0 0
        %1286 = vmatpush1.bf16.msra.mxu0 %v1095
        %1287 = vmatprep.subr.bf16.mxu0 0
        %1288 = vmatpush1.bf16.msra.mxu0 %v1096
        %1289 = vmatprep.mubr.bf16.mxu0 %v808
        %1290 = vmatmul.mubr.bf16.gmra.mrb[0].mxu0 %v807
        %v1291 = vpop.f32.mrb[0].mxu0
        %v1292 = vadd.f32 %v1180, %v1291
        %v1293 = vpop.f32.mrb[0].mxu0
        %v1294 = vpop.f32.mrb[0].mxu0
        %v1295 = vadd.f32 %v1183, %v1294
        %v1296 = vpop.f32.mrb[0].mxu0
        %1297 = vmatprep.mubr.bf16.mxu0 %v813
        %1298 = vmatmul.mubr.bf16.gmra.mrb[0].mxu0 %v812
        %v1299 = vpop.f32.mrb[0].mxu0
        %v1300 = vadd.f32 %v1188, %v1299
        %v1301 = vpop.f32.mrb[0].mxu0
        %v1302 = vpop.f32.mrb[0].mxu0
        %v1303 = vadd.f32 %v1191, %v1302
        %v1304 = vpop.f32.mrb[0].mxu0
        %1305 = vmatprep.mubr.bf16.mxu0 %v818
        %1306 = vmatmul.mubr.bf16.gmra.mrb[0].mxu0 %v817
        %v1307 = vpop.f32.mrb[0].mxu0
        %v1308 = vadd.f32 %v1196, %v1307
        %v1309 = vpop.f32.mrb[0].mxu0
        %v1310 = vpop.f32.mrb[0].mxu0
        %v1311 = vadd.f32 %v1199, %v1310
        %v1312 = vpop.f32.mrb[0].mxu0
        %1313 = vmatprep.mubr.bf16.mxu0 %v823
        %1314 = vmatmul.mubr.bf16.gmra.mrb[0].mxu0 %v822
        %v1315 = vpop.f32.mrb[0].mxu0
        %v1316 = vadd.f32 %v1204, %v1315
        %v1317 = vpop.f32.mrb[0].mxu0
        %v1318 = vpop.f32.mrb[0].mxu0
        %v1319 = vadd.f32 %v1207, %v1318
        %v1320 = vpop.f32.mrb[0].mxu0
        %1321 = vmatprep.mubr.bf16.mxu0 %v828
        %1322 = vmatmul.mubr.bf16.gmra.mrb[0].mxu0 %v827
        %v1323 = vpop.f32.mrb[0].mxu0
        %v1324 = vadd.f32 %v1212, %v1323
        %v1325 = vpop.f32.mrb[0].mxu0
        %v1326 = vpop.f32.mrb[0].mxu0
        %v1327 = vadd.f32 %v1215, %v1326
        %v1328 = vpop.f32.mrb[0].mxu0
        %1329 = vmatprep.mubr.bf16.mxu0 %v833
        %1330 = vmatmul.mubr.bf16.gmra.mrb[0].mxu0 %v832
        %v1331 = vpop.f32.mrb[0].mxu0
        %v1332 = vadd.f32 %v1220, %v1331
        %v1333 = vpop.f32.mrb[0].mxu0
        %v1334 = vpop.f32.mrb[0].mxu0
        %v1335 = vadd.f32 %v1223, %v1334
        %v1336 = vpop.f32.mrb[0].mxu0
        %1337 = vmatprep.mubr.bf16.mxu0 %v838
        %1338 = vmatmul.mubr.bf16.gmra.mrb[0].mxu0 %v837
        %v1339 = vpop.f32.mrb[0].mxu0
        %v1340 = vadd.f32 %v1228, %v1339
        %v1341 = vpop.f32.mrb[0].mxu0
        %v1342 = vpop.f32.mrb[0].mxu0
        %v1343 = vadd.f32 %v1231, %v1342
        %v1344 = vpop.f32.mrb[0].mxu0
        %1345 = vmatprep.mubr.bf16.mxu0 %v843
        %1346 = vmatmul.mubr.bf16.gmra.mrb[0].mxu0 %v842
        %v1347 = vpop.f32.mrb[0].mxu0
        %v1348 = vadd.f32 %v1236, %v1347
        %v1349 = vpop.f32.mrb[0].mxu0
        %v1350 = vpop.f32.mrb[0].mxu0
        %v1351 = vadd.f32 %v1239, %v1350
        %v1352 = vpop.f32.mrb[0].mxu0
        %1353 = vmatprep.mubr.bf16.mxu0 %v848
        %1354 = vmatmul.mubr.bf16.gmra.mrb[0].mxu0 %v847
        %v1355 = vpop.f32.mrb[0].mxu0
        %v1356 = vadd.f32 %v1244, %v1355
        %v1357 = vpop.f32.mrb[0].mxu0
        %v1358 = vpop.f32.mrb[0].mxu0
        %v1359 = vadd.f32 %v1247, %v1358
        %v1360 = vpop.f32.mrb[0].mxu0
        %1361 = vmatprep.mubr.bf16.mxu0 %v853
        %1362 = vmatmul.mubr.bf16.gmra.mrb[0].mxu0 %v852
        %v1363 = vpop.f32.mrb[0].mxu0
        %v1364 = vadd.f32 %v1252, %v1363
        %v1365 = vpop.f32.mrb[0].mxu0
        %v1366 = vpop.f32.mrb[0].mxu0
        %v1367 = vpop.f32.mrb[0].mxu0
        %1368 = vdwg.mxu0
        %1369 = vmatprep.subr.bf16.mxu0 0
        %1370 = vmatpush1.bf16.msra.mxu0 %v1097
        %1371 = vmatprep.subr.bf16.mxu0 0
        %1372 = vmatpush1.bf16.msra.mxu0 %v1098
        %1373 = vmatprep.subr.bf16.mxu0 0
        %1374 = vmatpush1.bf16.msra.mxu0 %v1099
        %1375 = vmatprep.subr.bf16.mxu0 0
        %1376 = vmatpush1.bf16.msra.mxu0 %v1100
        %1377 = vmatprep.subr.bf16.mxu0 0
        %1378 = vmatpush1.bf16.msra.mxu0 %v1101
        %1379 = vmatprep.subr.bf16.mxu0 0
        %1380 = vmatpush1.bf16.msra.mxu0 %v1102
        %1381 = vmatprep.subr.bf16.mxu0 0
        %1382 = vmatpush1.bf16.msra.mxu0 %v1103
        %1383 = vmatprep.subr.bf16.mxu0 0
        %1384 = vmatpush1.bf16.msra.mxu0 %v1104
        %1385 = vmatprep.subr.bf16.mxu0 0
        %1386 = vmatpush1.bf16.msra.mxu0 0
        %1387 = vmatprep.subr.bf16.mxu0 0
        %1388 = vmatpush1.bf16.msra.mxu0 0
        %1389 = vmatprep.subr.bf16.mxu0 0
        %1390 = vmatpush1.bf16.msra.mxu0 0
        %1391 = vmatprep.subr.bf16.mxu0 0
        %1392 = vmatpush1.bf16.msra.mxu0 0
        %1393 = vmatprep.subr.bf16.mxu0 0
        %1394 = vmatpush1.bf16.msra.mxu0 0
        %1395 = vmatprep.subr.bf16.mxu0 0
        %1396 = vmatpush1.bf16.msra.mxu0 0
        %1397 = vmatprep.subr.bf16.mxu0 0
        %1398 = vmatpush1.bf16.msra.mxu0 0
        %1399 = vmatprep.subr.bf16.mxu0 0
        %1400 = vmatpush1.bf16.msra.mxu0 0
        %1401 = vmatprep.mubr.bf16.mxu0 0
        %1402 = vmatmul.mubr.bf16.gmra.mrb[0].mxu0 %v809
        %v1403 = vpop.f32.mrb[0].mxu0
        %v1404 = vadd.f32 %v1292, %v1403
        %v1405 = vpop.f32.mrb[0].mxu0
        %v1406 = vpop.f32.mrb[0].mxu0
        %v1407 = vadd.f32 %v1295, %v1406
        %v1408 = vpop.f32.mrb[0].mxu0
        %1409 = vmatprep.mubr.bf16.mxu0 0
        %1410 = vmatmul.mubr.bf16.gmra.mrb[0].mxu0 %v814
        %v1411 = vpop.f32.mrb[0].mxu0
        %v1412 = vadd.f32 %v1300, %v1411
        %v1413 = vpop.f32.mrb[0].mxu0
        %v1414 = vpop.f32.mrb[0].mxu0
        %v1415 = vadd.f32 %v1303, %v1414
        %v1416 = vpop.f32.mrb[0].mxu0
        %1417 = vmatprep.mubr.bf16.mxu0 0
        %1418 = vmatmul.mubr.bf16.gmra.mrb[0].mxu0 %v819
        %v1419 = vpop.f32.mrb[0].mxu0
        %v1420 = vadd.f32 %v1308, %v1419
        %v1421 = vpop.f32.mrb[0].mxu0
        %v1422 = vpop.f32.mrb[0].mxu0
        %v1423 = vadd.f32 %v1311, %v1422
        %v1424 = vpop.f32.mrb[0].mxu0
        %1425 = vmatprep.mubr.bf16.mxu0 0
        %1426 = vmatmul.mubr.bf16.gmra.mrb[0].mxu0 %v824
        %v1427 = vpop.f32.mrb[0].mxu0
        %v1428 = vadd.f32 %v1316, %v1427
        %v1429 = vpop.f32.mrb[0].mxu0
        %v1430 = vpop.f32.mrb[0].mxu0
        %v1431 = vadd.f32 %v1319, %v1430
        %v1432 = vpop.f32.mrb[0].mxu0
        %1433 = vmatprep.mubr.bf16.mxu0 0
        %1434 = vmatmul.mubr.bf16.gmra.mrb[0].mxu0 %v829
        %v1435 = vpop.f32.mrb[0].mxu0
        %v1436 = vadd.f32 %v1324, %v1435
        %v1437 = vpop.f32.mrb[0].mxu0
        %v1438 = vpop.f32.mrb[0].mxu0
        %v1439 = vadd.f32 %v1327, %v1438
        %v1440 = vpop.f32.mrb[0].mxu0
        %1441 = vmatprep.mubr.bf16.mxu0 0
        %1442 = vmatmul.mubr.bf16.gmra.mrb[0].mxu0 %v834
        %v1443 = vpop.f32.mrb[0].mxu0
        %v1444 = vadd.f32 %v1332, %v1443
        %v1445 = vpop.f32.mrb[0].mxu0
        %v1446 = vpop.f32.mrb[0].mxu0
        %v1447 = vadd.f32 %v1335, %v1446
        %v1448 = vpop.f32.mrb[0].mxu0
        %1449 = vmatprep.mubr.bf16.mxu0 0
        %1450 = vmatmul.mubr.bf16.gmra.mrb[0].mxu0 %v839
        %v1451 = vpop.f32.mrb[0].mxu0
        %v1452 = vadd.f32 %v1340, %v1451
        %v1453 = vpop.f32.mrb[0].mxu0
        %v1454 = vpop.f32.mrb[0].mxu0
        %v1455 = vadd.f32 %v1343, %v1454
        %v1456 = vpop.f32.mrb[0].mxu0
        %1457 = vmatprep.mubr.bf16.mxu0 0
        %1458 = vmatmul.mubr.bf16.gmra.mrb[0].mxu0 %v844
        %v1459 = vpop.f32.mrb[0].mxu0
        %v1460 = vadd.f32 %v1348, %v1459
        %v1461 = vpop.f32.mrb[0].mxu0
        %v1462 = vpop.f32.mrb[0].mxu0
        %v1463 = vadd.f32 %v1351, %v1462
        %v1464 = vpop.f32.mrb[0].mxu0
        %1465 = vmatprep.mubr.bf16.mxu0 0
        %1466 = vmatmul.mubr.bf16.gmra.mrb[0].mxu0 %v849
        %v1467 = vpop.f32.mrb[0].mxu0
        %v1468 = vadd.f32 %v1356, %v1467
        %v1469 = vpop.f32.mrb[0].mxu0
        %v1470 = vpop.f32.mrb[0].mxu0
        %v1471 = vadd.f32 %v1359, %v1470
        %v1472 = vpop.f32.mrb[0].mxu0
        %1473 = vmatprep.mubr.bf16.mxu0 0
        %1474 = vmatmul.mubr.bf16.gmra.mrb[0].mxu0 %v854
        %v1475 = vpop.f32.mrb[0].mxu0
        %v1476 = vadd.f32 %v1364, %v1475
        %v1477 = vpop.f32.mrb[0].mxu0
        %v1478 = vpop.f32.mrb[0].mxu0
        %v1479 = vpop.f32.mrb[0].mxu0
        %1480 = vdwg.mxu0
        %v1481 = vmax.f32 %v1404, 0.0
        %v1482 = vmax.f32 %v1407, 0.0
        %v1483 = vmax.f32 %v1412, 0.0
        %v1484 = vmax.f32 %v1415, 0.0
        %v1485 = vmax.f32 %v1420, 0.0
        %v1486 = vmax.f32 %v1423, 0.0
        %v1487 = vmax.f32 %v1428, 0.0
        %v1488 = vmax.f32 %v1431, 0.0
        %v1489 = vmax.f32 %v1436, 0.0
        %v1490 = vmax.f32 %v1439, 0.0
        %v1491 = vmax.f32 %v1444, 0.0
        %v1492 = vmax.f32 %v1447, 0.0
        %v1493 = vmax.f32 %v1452, 0.0
        %v1494 = vmax.f32 %v1455, 0.0
        %v1495 = vmax.f32 %v1460, 0.0
        %v1496 = vmax.f32 %v1463, 0.0
        %v1497 = vmax.f32 %v1468, 0.0
        %v1498 = vmax.f32 %v1471, 0.0
        %v1499 = vmax.f32 %v1476, 0.0
        %v1500 = vpack.c.bf16 %v1482, %v1481
        %v1501 = vpack.c.bf16 %v1484, %v1483
        %v1502 = vpack.c.bf16 %v1486, %v1485
        %v1503 = vpack.c.bf16 %v1488, %v1487
        %v1504 = vpack.c.bf16 %v1490, %v1489
        %v1505 = vpack.c.bf16 %v1492, %v1491
        %v1506 = vpack.c.bf16 %v1494, %v1493
        %v1507 = vpack.c.bf16 %v1496, %v1495
        %v1508 = vpack.c.bf16 %v1498, %v1497
        %v1509 = vpack.c.bf16 %v1499, %v1499
        %v1510 = vld [vmem:[%s3] sm:$0xf]
        %v1511 = vld [vmem:[%s3 + $0x4] sm:$0xf]
        %v1512 = vld [vmem:[%s3 + $0x8] sm:$0xf]
        %v1513 = vld [vmem:[%s3 + $0xc] sm:$0xf]
        %v1514 = vld [vmem:[%s3 + $0x10] sm:$0xf]
        %v1515 = vld [vmem:[%s3 + $0x14] sm:$0xf]
        %v1516 = vld [vmem:[%s3 + $0x18] sm:$0xf]
        %v1517 = vld [vmem:[%s3 + $0x1c] sm:$0xf]
        %v1518 = vld [vmem:[%s3 + $0x20] sm:$0xf]
        %v1519 = vld [vmem:[%s3 + $0x24] sm:$0xf]
        %v1520 = vld [vmem:[%s3 + $0x28] sm:$0xf]
        %v1521 = vld [vmem:[%s3 + $0x2c] sm:$0xf]
        %v1522 = vld [vmem:[%s3 + $0x30] sm:$0xf]
        %v1523 = vld [vmem:[%s3 + $0x34] sm:$0xf]
        %v1524 = vld [vmem:[%s3 + $0x38] sm:$0xf]
        %v1525 = vld [vmem:[%s3 + $0x3c] sm:$0xf]
        %v1526 = vld [vmem:[%s12 + $0x1] sm:$0x1]
        %v1528 = vlaneseq
        %v1529 = vshrl.u32 %v1528, 7
        %v1530 = vsub.s32 0, %v1529
        %v1531 = vrot.slane %v1526, %v1530
        %v1549 = vunpack.c.l.b16 %v1510
        %v1550 = vunpack.c.l.b16 %v1511
        %v1551 = vunpack.c.l.b16 %v1512
        %v1552 = vunpack.c.l.b16 %v1513
        %v1553 = vunpack.c.l.b16 %v1514
        %v1554 = vunpack.c.l.b16 %v1515
        %v1555 = vunpack.c.l.b16 %v1516
        %v1556 = vunpack.c.l.b16 %v1517
        %v1557 = vunpack.c.l.b16 %v1518
        %v1558 = vunpack.c.l.b16 %v1519
        %v1559 = vunpack.c.l.b16 %v1520
        %v1560 = vunpack.c.l.b16 %v1521
        %v1561 = vunpack.c.l.b16 %v1522
        %v1562 = vunpack.c.l.b16 %v1523
        %v1563 = vunpack.c.l.b16 %v1524
        %v1564 = vunpack.c.l.b16 %v1525
        %v1565 = vpack.c.b16 %v1550, %v1549
        %v1566 = vpack.c.b16 %v1552, %v1551
        %v1567 = vpack.c.b16 %v1554, %v1553
        %v1568 = vpack.c.b16 %v1556, %v1555
        %v1569 = vpack.c.b16 %v1558, %v1557
        %v1570 = vpack.c.b16 %v1560, %v1559
        %v1571 = vpack.c.b16 %v1562, %v1561
        %v1572 = vpack.c.b16 %v1564, %v1563
        %1581 = vmatprep.subr.bf16.mxu0 0
        %1582 = vmatpush1.bf16.msra.mxu0 %v1565
        %1583 = vmatprep.subr.bf16.mxu0 0
        %1584 = vmatpush1.bf16.msra.mxu0 %v1566
        %1585 = vmatprep.subr.bf16.mxu0 0
        %1586 = vmatpush1.bf16.msra.mxu0 %v1567
        %1587 = vmatprep.subr.bf16.mxu0 0
        %1588 = vmatpush1.bf16.msra.mxu0 %v1568
        %1589 = vmatprep.subr.bf16.mxu0 0
        %1590 = vmatpush1.bf16.msra.mxu0 %v1569
        %1591 = vmatprep.subr.bf16.mxu0 0
        %1592 = vmatpush1.bf16.msra.mxu0 %v1570
        %1593 = vmatprep.subr.bf16.mxu0 0
        %1594 = vmatpush1.bf16.msra.mxu0 %v1571
        %1595 = vmatprep.subr.bf16.mxu0 0
        %1596 = vmatpush1.bf16.msra.mxu0 %v1572
        %1597 = vmatprep.subr.bf16.mxu0 0
        %1598 = vmatpush1.bf16.msra.mxu0 0
        %1599 = vmatprep.subr.bf16.mxu0 0
        %1600 = vmatpush1.bf16.msra.mxu0 0
        %1601 = vmatprep.subr.bf16.mxu0 0
        %1602 = vmatpush1.bf16.msra.mxu0 0
        %1603 = vmatprep.subr.bf16.mxu0 0
        %1604 = vmatpush1.bf16.msra.mxu0 0
        %1605 = vmatprep.subr.bf16.mxu0 0
        %1606 = vmatpush1.bf16.msra.mxu0 0
        %1607 = vmatprep.subr.bf16.mxu0 0
        %1608 = vmatpush1.bf16.msra.mxu0 0
        %1609 = vmatprep.subr.bf16.mxu0 0
        %1610 = vmatpush1.bf16.msra.mxu0 0
        %1611 = vmatprep.subr.bf16.mxu0 0
        %1612 = vmatpush1.bf16.msra.mxu0 0
        %1613 = vmatprep.mubr.bf16.mxu0 0
        %1614 = vmatmul.mubr.bf16.gmra.mrb[0].mxu0 %v1500
        %v1615 = vpop.f32.mrb[0].mxu0
        %v1616 = vadd.f32 %v1531, %v1615
        %v1617 = vpop.f32.mrb[0].mxu0
        %v1618 = vpop.f32.mrb[0].mxu0
        %v1619 = vadd.f32 %v1531, %v1618
        %v1620 = vpop.f32.mrb[0].mxu0
        %1621 = vmatprep.mubr.bf16.mxu0 0
        %1622 = vmatmul.mubr.bf16.gmra.mrb[0].mxu0 %v1501
        %v1623 = vpop.f32.mrb[0].mxu0
        %v1624 = vadd.f32 %v1531, %v1623
        %v1625 = vpop.f32.mrb[0].mxu0
        %v1626 = vpop.f32.mrb[0].mxu0
        %v1627 = vadd.f32 %v1531, %v1626
        %v1628 = vpop.f32.mrb[0].mxu0
        %1629 = vmatprep.mubr.bf16.mxu0 0
        %1630 = vmatmul.mubr.bf16.gmra.mrb[0].mxu0 %v1502
        %v1631 = vpop.f32.mrb[0].mxu0
        %v1632 = vadd.f32 %v1531, %v1631
        %v1633 = vpop.f32.mrb[0].mxu0
        %v1634 = vpop.f32.mrb[0].mxu0
        %v1635 = vadd.f32 %v1531, %v1634
        %v1636 = vpop.f32.mrb[0].mxu0
        %1637 = vmatprep.mubr.bf16.mxu0 0
        %1638 = vmatmul.mubr.bf16.gmra.mrb[0].mxu0 %v1503
        %v1639 = vpop.f32.mrb[0].mxu0
        %v1640 = vadd.f32 %v1531, %v1639
        %v1641 = vpop.f32.mrb[0].mxu0
        %v1642 = vpop.f32.mrb[0].mxu0
        %v1643 = vadd.f32 %v1531, %v1642
        %v1644 = vpop.f32.mrb[0].mxu0
        %1645 = vmatprep.mubr.bf16.mxu0 0
        %1646 = vmatmul.mubr.bf16.gmra.mrb[0].mxu0 %v1504
        %v1647 = vpop.f32.mrb[0].mxu0
        %v1648 = vadd.f32 %v1531, %v1647
        %v1649 = vpop.f32.mrb[0].mxu0
        %v1650 = vpop.f32.mrb[0].mxu0
        %v1651 = vadd.f32 %v1531, %v1650
        %v1652 = vpop.f32.mrb[0].mxu0
        %1653 = vmatprep.mubr.bf16.mxu0 0
        %1654 = vmatmul.mubr.bf16.gmra.mrb[0].mxu0 %v1505
        %v1655 = vpop.f32.mrb[0].mxu0
        %v1656 = vadd.f32 %v1531, %v1655
        %v1657 = vpop.f32.mrb[0].mxu0
        %v1658 = vpop.f32.mrb[0].mxu0
        %v1659 = vadd.f32 %v1531, %v1658
        %v1660 = vpop.f32.mrb[0].mxu0
        %1661 = vmatprep.mubr.bf16.mxu0 0
        %1662 = vmatmul.mubr.bf16.gmra.mrb[0].mxu0 %v1506
        %v1663 = vpop.f32.mrb[0].mxu0
        %v1664 = vadd.f32 %v1531, %v1663
        %v1665 = vpop.f32.mrb[0].mxu0
        %v1666 = vpop.f32.mrb[0].mxu0
        %v1667 = vadd.f32 %v1531, %v1666
        %v1668 = vpop.f32.mrb[0].mxu0
        %1669 = vmatprep.mubr.bf16.mxu0 0
        %1670 = vmatmul.mubr.bf16.gmra.mrb[0].mxu0 %v1507
        %v1671 = vpop.f32.mrb[0].mxu0
        %v1672 = vadd.f32 %v1531, %v1671
        %v1673 = vpop.f32.mrb[0].mxu0
        %v1674 = vpop.f32.mrb[0].mxu0
        %v1675 = vadd.f32 %v1531, %v1674
        %v1676 = vpop.f32.mrb[0].mxu0
        %1677 = vmatprep.mubr.bf16.mxu0 0
        %1678 = vmatmul.mubr.bf16.gmra.mrb[0].mxu0 %v1508
        %v1679 = vpop.f32.mrb[0].mxu0
        %v1680 = vadd.f32 %v1531, %v1679
        %v1681 = vpop.f32.mrb[0].mxu0
        %v1682 = vpop.f32.mrb[0].mxu0
        %v1683 = vadd.f32 %v1531, %v1682
        %v1684 = vpop.f32.mrb[0].mxu0
        %1685 = vmatprep.mubr.bf16.mxu0 0
        %1686 = vmatmul.mubr.bf16.gmra.mrb[0].mxu0 %v1509
        %v1687 = vpop.f32.mrb[0].mxu0
        %v1688 = vadd.f32 %v1531, %v1687
        %v1689 = vpop.f32.mrb[0].mxu0
        %v1690 = vpop.f32.mrb[0].mxu0
        %v1691 = vpop.f32.mrb[0].mxu0
        %1692 = vdwg.mxu0
        %v1693 = vmax.f32 %v1616, 0.0
        %v1694 = vmax.f32 %v1619, 0.0
        %v1695 = vmax.f32 %v1624, 0.0
        %v1696 = vmax.f32 %v1627, 0.0
        %v1697 = vmax.f32 %v1632, 0.0
        %v1698 = vmax.f32 %v1635, 0.0
        %v1699 = vmax.f32 %v1640, 0.0
        %v1700 = vmax.f32 %v1643, 0.0
        %v1701 = vmax.f32 %v1648, 0.0
        %v1702 = vmax.f32 %v1651, 0.0
        %v1703 = vmax.f32 %v1656, 0.0
        %v1704 = vmax.f32 %v1659, 0.0
        %v1705 = vmax.f32 %v1664, 0.0
        %v1706 = vmax.f32 %v1667, 0.0
        %v1707 = vmax.f32 %v1672, 0.0
        %v1708 = vmax.f32 %v1675, 0.0
        %v1709 = vmax.f32 %v1680, 0.0
        %v1710 = vmax.f32 %v1683, 0.0
        %v1711 = vmax.f32 %v1688, 0.0
        %v1712 = vpack.c.bf16 %v1694, %v1693
        %v1713 = vpack.c.bf16 %v1696, %v1695
        %v1714 = vpack.c.bf16 %v1698, %v1697
        %v1715 = vpack.c.bf16 %v1700, %v1699
        %v1716 = vpack.c.bf16 %v1702, %v1701
        %v1717 = vpack.c.bf16 %v1704, %v1703
        %v1718 = vpack.c.bf16 %v1706, %v1705
        %v1719 = vpack.c.bf16 %v1708, %v1707
        %v1720 = vpack.c.bf16 %v1710, %v1709
        %v1721 = vpack.c.bf16 %v1711, %v1711
        %v1722 = vld [vmem:[%s4] sm:$0xf]
        %v1723 = vld [vmem:[%s4 + $0x4] sm:$0xf]
        %v1724 = vld [vmem:[%s4 + $0x8] sm:$0xf]
        %v1725 = vld [vmem:[%s4 + $0xc] sm:$0xf]
        %v1726 = vld [vmem:[%s4 + $0x10] sm:$0xf]
        %v1727 = vld [vmem:[%s4 + $0x14] sm:$0xf]
        %v1728 = vld [vmem:[%s4 + $0x18] sm:$0xf]
        %v1729 = vld [vmem:[%s4 + $0x1c] sm:$0xf]
        %v1730 = vld [vmem:[%s4 + $0x20] sm:$0xf]
        %v1731 = vld [vmem:[%s4 + $0x24] sm:$0xf]
        %v1732 = vld [vmem:[%s4 + $0x28] sm:$0xf]
        %v1733 = vld [vmem:[%s4 + $0x2c] sm:$0xf]
        %v1734 = vld [vmem:[%s4 + $0x30] sm:$0xf]
        %v1735 = vld [vmem:[%s4 + $0x34] sm:$0xf]
        %v1736 = vld [vmem:[%s4 + $0x38] sm:$0xf]
        %v1737 = vld [vmem:[%s4 + $0x3c] sm:$0xf]
        %v1738 = vld [vmem:[%s12 + $0x2] sm:$0x1]
        %v1740 = vlaneseq
        %v1741 = vshrl.u32 %v1740, 7
        %v1742 = vsub.s32 0, %v1741
        %v1743 = vrot.slane %v1738, %v1742
        %v1761 = vunpack.c.l.b16 %v1722
        %v1762 = vunpack.c.l.b16 %v1723
        %v1763 = vunpack.c.l.b16 %v1724
        %v1764 = vunpack.c.l.b16 %v1725
        %v1765 = vunpack.c.l.b16 %v1726
        %v1766 = vunpack.c.l.b16 %v1727
        %v1767 = vunpack.c.l.b16 %v1728
        %v1768 = vunpack.c.l.b16 %v1729
        %v1769 = vunpack.c.l.b16 %v1730
        %v1770 = vunpack.c.l.b16 %v1731
        %v1771 = vunpack.c.l.b16 %v1732
        %v1772 = vunpack.c.l.b16 %v1733
        %v1773 = vunpack.c.l.b16 %v1734
        %v1774 = vunpack.c.l.b16 %v1735
        %v1775 = vunpack.c.l.b16 %v1736
        %v1776 = vunpack.c.l.b16 %v1737
        %v1777 = vpack.c.b16 %v1762, %v1761
        %v1778 = vpack.c.b16 %v1764, %v1763
        %v1779 = vpack.c.b16 %v1766, %v1765
        %v1780 = vpack.c.b16 %v1768, %v1767
        %v1781 = vpack.c.b16 %v1770, %v1769
        %v1782 = vpack.c.b16 %v1772, %v1771
        %v1783 = vpack.c.b16 %v1774, %v1773
        %v1784 = vpack.c.b16 %v1776, %v1775
        %1793 = vmatprep.subr.bf16.mxu0 0
        %1794 = vmatpush1.bf16.msra.mxu0 %v1777
        %1795 = vmatprep.subr.bf16.mxu0 0
        %1796 = vmatpush1.bf16.msra.mxu0 %v1778
        %1797 = vmatprep.subr.bf16.mxu0 0
        %1798 = vmatpush1.bf16.msra.mxu0 %v1779
        %1799 = vmatprep.subr.bf16.mxu0 0
        %1800 = vmatpush1.bf16.msra.mxu0 %v1780
        %1801 = vmatprep.subr.bf16.mxu0 0
        %1802 = vmatpush1.bf16.msra.mxu0 %v1781
        %1803 = vmatprep.subr.bf16.mxu0 0
        %1804 = vmatpush1.bf16.msra.mxu0 %v1782
        %1805 = vmatprep.subr.bf16.mxu0 0
        %1806 = vmatpush1.bf16.msra.mxu0 %v1783
        %1807 = vmatprep.subr.bf16.mxu0 0
        %1808 = vmatpush1.bf16.msra.mxu0 %v1784
        %1809 = vmatprep.subr.bf16.mxu0 0
        %1810 = vmatpush1.bf16.msra.mxu0 0
        %1811 = vmatprep.subr.bf16.mxu0 0
        %1812 = vmatpush1.bf16.msra.mxu0 0
        %1813 = vmatprep.subr.bf16.mxu0 0
        %1814 = vmatpush1.bf16.msra.mxu0 0
        %1815 = vmatprep.subr.bf16.mxu0 0
        %1816 = vmatpush1.bf16.msra.mxu0 0
        %1817 = vmatprep.subr.bf16.mxu0 0
        %1818 = vmatpush1.bf16.msra.mxu0 0
        %1819 = vmatprep.subr.bf16.mxu0 0
        %1820 = vmatpush1.bf16.msra.mxu0 0
        %1821 = vmatprep.subr.bf16.mxu0 0
        %1822 = vmatpush1.bf16.msra.mxu0 0
        %1823 = vmatprep.subr.bf16.mxu0 0
        %1824 = vmatpush1.bf16.msra.mxu0 0
        %1825 = vmatprep.mubr.bf16.mxu0 0
        %1826 = vmatmul.mubr.bf16.gmra.mrb[0].mxu0 %v1712
        %v1827 = vpop.f32.mrb[0].mxu0
        %v1828 = vadd.f32 %v1743, %v1827
        %v1829 = vpop.f32.mrb[0].mxu0
        %v1830 = vpop.f32.mrb[0].mxu0
        %v1831 = vadd.f32 %v1743, %v1830
        %v1832 = vpop.f32.mrb[0].mxu0
        %1833 = vmatprep.mubr.bf16.mxu0 0
        %1834 = vmatmul.mubr.bf16.gmra.mrb[0].mxu0 %v1713
        %v1835 = vpop.f32.mrb[0].mxu0
        %v1836 = vadd.f32 %v1743, %v1835
        %v1837 = vpop.f32.mrb[0].mxu0
        %v1838 = vpop.f32.mrb[0].mxu0
        %v1839 = vadd.f32 %v1743, %v1838
        %v1840 = vpop.f32.mrb[0].mxu0
        %1841 = vmatprep.mubr.bf16.mxu0 0
        %1842 = vmatmul.mubr.bf16.gmra.mrb[0].mxu0 %v1714
        %v1843 = vpop.f32.mrb[0].mxu0
        %v1844 = vadd.f32 %v1743, %v1843
        %v1845 = vpop.f32.mrb[0].mxu0
        %v1846 = vpop.f32.mrb[0].mxu0
        %v1847 = vadd.f32 %v1743, %v1846
        %v1848 = vpop.f32.mrb[0].mxu0
        %1849 = vmatprep.mubr.bf16.mxu0 0
        %1850 = vmatmul.mubr.bf16.gmra.mrb[0].mxu0 %v1715
        %v1851 = vpop.f32.mrb[0].mxu0
        %v1852 = vadd.f32 %v1743, %v1851
        %v1853 = vpop.f32.mrb[0].mxu0
        %v1854 = vpop.f32.mrb[0].mxu0
        %v1855 = vadd.f32 %v1743, %v1854
        %v1856 = vpop.f32.mrb[0].mxu0
        %1857 = vmatprep.mubr.bf16.mxu0 0
        %1858 = vmatmul.mubr.bf16.gmra.mrb[0].mxu0 %v1716
        %v1859 = vpop.f32.mrb[0].mxu0
        %v1860 = vadd.f32 %v1743, %v1859
        %v1861 = vpop.f32.mrb[0].mxu0
        %v1862 = vpop.f32.mrb[0].mxu0
        %v1863 = vadd.f32 %v1743, %v1862
        %v1864 = vpop.f32.mrb[0].mxu0
        %1865 = vmatprep.mubr.bf16.mxu0 0
        %1866 = vmatmul.mubr.bf16.gmra.mrb[0].mxu0 %v1717
        %v1867 = vpop.f32.mrb[0].mxu0
        %v1868 = vadd.f32 %v1743, %v1867
        %v1869 = vpop.f32.mrb[0].mxu0
        %v1870 = vpop.f32.mrb[0].mxu0
        %v1871 = vadd.f32 %v1743, %v1870
        %v1872 = vpop.f32.mrb[0].mxu0
        %1873 = vmatprep.mubr.bf16.mxu0 0
        %1874 = vmatmul.mubr.bf16.gmra.mrb[0].mxu0 %v1718
        %v1875 = vpop.f32.mrb[0].mxu0
        %v1876 = vadd.f32 %v1743, %v1875
        %v1877 = vpop.f32.mrb[0].mxu0
        %v1878 = vpop.f32.mrb[0].mxu0
        %v1879 = vadd.f32 %v1743, %v1878
        %v1880 = vpop.f32.mrb[0].mxu0
        %1881 = vmatprep.mubr.bf16.mxu0 0
        %1882 = vmatmul.mubr.bf16.gmra.mrb[0].mxu0 %v1719
        %v1883 = vpop.f32.mrb[0].mxu0
        %v1884 = vadd.f32 %v1743, %v1883
        %v1885 = vpop.f32.mrb[0].mxu0
        %v1886 = vpop.f32.mrb[0].mxu0
        %v1887 = vadd.f32 %v1743, %v1886
        %v1888 = vpop.f32.mrb[0].mxu0
        %1889 = vmatprep.mubr.bf16.mxu0 0
        %1890 = vmatmul.mubr.bf16.gmra.mrb[0].mxu0 %v1720
        %v1891 = vpop.f32.mrb[0].mxu0
        %v1892 = vadd.f32 %v1743, %v1891
        %v1893 = vpop.f32.mrb[0].mxu0
        %v1894 = vpop.f32.mrb[0].mxu0
        %v1895 = vadd.f32 %v1743, %v1894
        %v1896 = vpop.f32.mrb[0].mxu0
        %1897 = vmatprep.mubr.bf16.mxu0 0
        %1898 = vmatmul.mubr.bf16.gmra.mrb[0].mxu0 %v1721
        %v1899 = vpop.f32.mrb[0].mxu0
        %v1900 = vadd.f32 %v1743, %v1899
        %v1901 = vpop.f32.mrb[0].mxu0
        %v1902 = vpop.f32.mrb[0].mxu0
        %v1903 = vpop.f32.mrb[0].mxu0
        %1904 = vdwg.mxu0
        %v1905 = vmax.f32 %v1828, 0.0
        %v1906 = vmax.f32 %v1831, 0.0
        %v1907 = vmax.f32 %v1836, 0.0
        %v1908 = vmax.f32 %v1839, 0.0
        %v1909 = vmax.f32 %v1844, 0.0
        %v1910 = vmax.f32 %v1847, 0.0
        %v1911 = vmax.f32 %v1852, 0.0
        %v1912 = vmax.f32 %v1855, 0.0
        %v1913 = vmax.f32 %v1860, 0.0
        %v1914 = vmax.f32 %v1863, 0.0
        %v1915 = vmax.f32 %v1868, 0.0
        %v1916 = vmax.f32 %v1871, 0.0
        %v1917 = vmax.f32 %v1876, 0.0
        %v1918 = vmax.f32 %v1879, 0.0
        %v1919 = vmax.f32 %v1884, 0.0
        %v1920 = vmax.f32 %v1887, 0.0
        %v1921 = vmax.f32 %v1892, 0.0
        %v1922 = vmax.f32 %v1895, 0.0
        %v1923 = vmax.f32 %v1900, 0.0
        %v1924 = vpack.c.bf16 %v1906, %v1905
        %v1925 = vpack.c.bf16 %v1908, %v1907
        %v1926 = vpack.c.bf16 %v1910, %v1909
        %v1927 = vpack.c.bf16 %v1912, %v1911
        %v1928 = vpack.c.bf16 %v1914, %v1913
        %v1929 = vpack.c.bf16 %v1916, %v1915
        %v1930 = vpack.c.bf16 %v1918, %v1917
        %v1931 = vpack.c.bf16 %v1920, %v1919
        %v1932 = vpack.c.bf16 %v1922, %v1921
        %v1933 = vpack.c.bf16 %v1923, %v1923
        %v1934 = vld [vmem:[%s5] sm:$0xf]
        %v1935 = vld [vmem:[%s5 + $0x4] sm:$0xf]
        %v1936 = vld [vmem:[%s5 + $0x8] sm:$0xf]
        %v1937 = vld [vmem:[%s5 + $0xc] sm:$0xf]
        %v1938 = vld [vmem:[%s5 + $0x10] sm:$0xf]
        %v1939 = vld [vmem:[%s5 + $0x14] sm:$0xf]
        %v1940 = vld [vmem:[%s5 + $0x18] sm:$0xf]
        %v1941 = vld [vmem:[%s5 + $0x1c] sm:$0xf]
        %v1942 = vld [vmem:[%s12 + $0x3] sm:$0x1]
        %v1944 = vlaneseq
        %v1945 = vshrl.u32 %v1944, 7
        %v1946 = vsub.s32 0, %v1945
        %v1947 = vrot.slane %v1942, %v1946
        %v1957 = vunpack.c.l.b16 %v1934
        %v1958 = vunpack.c.l.b16 %v1935
        %v1959 = vunpack.c.l.b16 %v1936
        %v1960 = vunpack.c.l.b16 %v1937
        %v1961 = vunpack.c.l.b16 %v1938
        %v1962 = vunpack.c.l.b16 %v1939
        %v1963 = vunpack.c.l.b16 %v1940
        %v1964 = vunpack.c.l.b16 %v1941
        %v1965 = vpack.c.b16 %v1958, %v1957
        %v1966 = vpack.c.b16 %v1960, %v1959
        %v1967 = vpack.c.b16 %v1962, %v1961
        %v1968 = vpack.c.b16 %v1964, %v1963
        %vm1973 = vcmask 523264
        %v1975 = vsel %vm1973, %v1924, 0
        %v1978 = vsel %vm1973, %v1925, 0
        %v1981 = vsel %vm1973, %v1926, 0
        %v1984 = vsel %vm1973, %v1927, 0
        %v1987 = vsel %vm1973, %v1928, 0
        %v1990 = vsel %vm1973, %v1929, 0
        %v1993 = vsel %vm1973, %v1930, 0
        %v1996 = vsel %vm1973, %v1931, 0
        %v1999 = vsel %vm1973, %v1932, 0
        %v2002 = vsel %vm1973, %v1933, 0
        %2004 = vmatprep.subr.bf16.mxu0 0
        %2005 = vmatpush1.bf16.msra.mxu0 %v1965
        %2006 = vmatprep.subr.bf16.mxu0 0
        %2007 = vmatpush1.bf16.msra.mxu0 %v1966
        %2008 = vmatprep.subr.bf16.mxu0 0
        %2009 = vmatpush1.bf16.msra.mxu0 %v1967
        %2010 = vmatprep.subr.bf16.mxu0 0
        %2011 = vmatpush1.bf16.msra.mxu0 %v1968
        %2012 = vmatprep.subr.bf16.mxu0 0
        %2013 = vmatpush1.bf16.msra.mxu0 0
        %2014 = vmatprep.subr.bf16.mxu0 0
        %2015 = vmatpush1.bf16.msra.mxu0 0
        %2016 = vmatprep.subr.bf16.mxu0 0
        %2017 = vmatpush1.bf16.msra.mxu0 0
        %2018 = vmatprep.subr.bf16.mxu0 0
        %2019 = vmatpush1.bf16.msra.mxu0 0
        %2020 = vmatprep.subr.bf16.mxu0 0
        %2021 = vmatpush1.bf16.msra.mxu0 0
        %2022 = vmatprep.subr.bf16.mxu0 0
        %2023 = vmatpush1.bf16.msra.mxu0 0
        %2024 = vmatprep.subr.bf16.mxu0 0
        %2025 = vmatpush1.bf16.msra.mxu0 0
        %2026 = vmatprep.subr.bf16.mxu0 0
        %2027 = vmatpush1.bf16.msra.mxu0 0
        %2028 = vmatprep.subr.bf16.mxu0 0
        %2029 = vmatpush1.bf16.msra.mxu0 0
        %2030 = vmatprep.subr.bf16.mxu0 0
        %2031 = vmatpush1.bf16.msra.mxu0 0
        %2032 = vmatprep.subr.bf16.mxu0 0
        %2033 = vmatpush1.bf16.msra.mxu0 0
        %2034 = vmatprep.subr.bf16.mxu0 0
        %2035 = vmatpush1.bf16.msra.mxu0 0
        %2036 = vmatprep.mubr.bf16.mxu0 0
        %2037 = vmatmul.mubr.bf16.gmra.mrb[0].mxu0 %v1975
        %v2038 = vpop.f32.mrb[0].mxu0
        %v2039 = vadd.f32 %v1947, %v2038
        %v2040 = vpop.f32.mrb[0].mxu0
        %v2041 = vpop.f32.mrb[0].mxu0
        %v2042 = vadd.f32 %v1947, %v2041
        %v2043 = vpop.f32.mrb[0].mxu0
        %2044 = vmatprep.mubr.bf16.mxu0 0
        %2045 = vmatmul.mubr.bf16.gmra.mrb[0].mxu0 %v1978
        %v2046 = vpop.f32.mrb[0].mxu0
        %v2047 = vadd.f32 %v1947, %v2046
        %v2048 = vpop.f32.mrb[0].mxu0
        %v2049 = vpop.f32.mrb[0].mxu0
        %v2050 = vadd.f32 %v1947, %v2049
        %v2051 = vpop.f32.mrb[0].mxu0
        %2052 = vmatprep.mubr.bf16.mxu0 0
        %2053 = vmatmul.mubr.bf16.gmra.mrb[0].mxu0 %v1981
        %v2054 = vpop.f32.mrb[0].mxu0
        %v2055 = vadd.f32 %v1947, %v2054
        %v2056 = vpop.f32.mrb[0].mxu0
        %v2057 = vpop.f32.mrb[0].mxu0
        %v2058 = vadd.f32 %v1947, %v2057
        %v2059 = vpop.f32.mrb[0].mxu0
        %2060 = vmatprep.mubr.bf16.mxu0 0
        %2061 = vmatmul.mubr.bf16.gmra.mrb[0].mxu0 %v1984
        %v2062 = vpop.f32.mrb[0].mxu0
        %v2063 = vadd.f32 %v1947, %v2062
        %v2064 = vpop.f32.mrb[0].mxu0
        %v2065 = vpop.f32.mrb[0].mxu0
        %v2066 = vadd.f32 %v1947, %v2065
        %v2067 = vpop.f32.mrb[0].mxu0
        %2068 = vmatprep.mubr.bf16.mxu0 0
        %2069 = vmatmul.mubr.bf16.gmra.mrb[0].mxu0 %v1987
        %v2070 = vpop.f32.mrb[0].mxu0
        %v2071 = vadd.f32 %v1947, %v2070
        %v2072 = vpop.f32.mrb[0].mxu0
        %v2073 = vpop.f32.mrb[0].mxu0
        %v2074 = vadd.f32 %v1947, %v2073
        %v2075 = vpop.f32.mrb[0].mxu0
        %2076 = vmatprep.mubr.bf16.mxu0 0
        %2077 = vmatmul.mubr.bf16.gmra.mrb[0].mxu0 %v1990
        %v2078 = vpop.f32.mrb[0].mxu0
        %v2079 = vadd.f32 %v1947, %v2078
        %v2080 = vpop.f32.mrb[0].mxu0
        %v2081 = vpop.f32.mrb[0].mxu0
        %v2082 = vadd.f32 %v1947, %v2081
        %v2083 = vpop.f32.mrb[0].mxu0
        %2084 = vmatprep.mubr.bf16.mxu0 0
        %2085 = vmatmul.mubr.bf16.gmra.mrb[0].mxu0 %v1993
        %v2086 = vpop.f32.mrb[0].mxu0
        %v2087 = vadd.f32 %v1947, %v2086
        %v2088 = vpop.f32.mrb[0].mxu0
        %v2089 = vpop.f32.mrb[0].mxu0
        %v2090 = vadd.f32 %v1947, %v2089
        %v2091 = vpop.f32.mrb[0].mxu0
        %2092 = vmatprep.mubr.bf16.mxu0 0
        %2093 = vmatmul.mubr.bf16.gmra.mrb[0].mxu0 %v1996
        %v2094 = vpop.f32.mrb[0].mxu0
        %v2095 = vadd.f32 %v1947, %v2094
        %v2096 = vpop.f32.mrb[0].mxu0
        %v2097 = vpop.f32.mrb[0].mxu0
        %v2098 = vadd.f32 %v1947, %v2097
        %v2099 = vpop.f32.mrb[0].mxu0
        %2100 = vmatprep.mubr.bf16.mxu0 0
        %2101 = vmatmul.mubr.bf16.gmra.mrb[0].mxu0 %v1999
        %v2102 = vpop.f32.mrb[0].mxu0
        %v2103 = vadd.f32 %v1947, %v2102
        %v2104 = vpop.f32.mrb[0].mxu0
        %v2105 = vpop.f32.mrb[0].mxu0
        %v2106 = vadd.f32 %v1947, %v2105
        %v2107 = vpop.f32.mrb[0].mxu0
        %2108 = vmatprep.mubr.bf16.mxu0 0
        %2109 = vmatmul.mubr.bf16.gmra.mrb[0].mxu0 %v2002
        %v2110 = vpop.f32.mrb[0].mxu0
        %v2111 = vadd.f32 %v1947, %v2110
        %v2112 = vpop.f32.mrb[0].mxu0
        %v2113 = vpop.f32.mrb[0].mxu0
        %v2114 = vpop.f32.mrb[0].mxu0
        %2115 = vdwg.mxu0
        %v2116 = vmax.f32 %v2039, 0.0
        %v2117 = vmax.f32 %v2042, 0.0
        %v2118 = vmax.f32 %v2047, 0.0
        %v2119 = vmax.f32 %v2050, 0.0
        %v2120 = vmax.f32 %v2055, 0.0
        %v2121 = vmax.f32 %v2058, 0.0
        %v2122 = vmax.f32 %v2063, 0.0
        %v2123 = vmax.f32 %v2066, 0.0
        %v2124 = vmax.f32 %v2071, 0.0
        %v2125 = vmax.f32 %v2074, 0.0
        %v2126 = vmax.f32 %v2079, 0.0
        %v2127 = vmax.f32 %v2082, 0.0
        %v2128 = vmax.f32 %v2087, 0.0
        %v2129 = vmax.f32 %v2090, 0.0
        %v2130 = vmax.f32 %v2095, 0.0
        %v2131 = vmax.f32 %v2098, 0.0
        %v2132 = vmax.f32 %v2103, 0.0
        %v2133 = vmax.f32 %v2106, 0.0
        %v2134 = vmax.f32 %v2111, 0.0
        %v2135 = vpack.c.bf16 %v2117, %v2116
        %v2136 = vpack.c.bf16 %v2119, %v2118
        %v2137 = vpack.c.bf16 %v2121, %v2120
        %v2138 = vpack.c.bf16 %v2123, %v2122
        %v2139 = vpack.c.bf16 %v2125, %v2124
        %v2140 = vpack.c.bf16 %v2127, %v2126
        %v2141 = vpack.c.bf16 %v2129, %v2128
        %v2142 = vpack.c.bf16 %v2131, %v2130
        %v2143 = vpack.c.bf16 %v2133, %v2132
        %v2144 = vpack.c.bf16 %v2134, %v2134
        %v2145 = vld [vmem:[%s6] sm:$0xff]
        %v2146 = vld [vmem:[%s6 + $0x8] sm:$0xff]
        %v2147 = vld [vmem:[%s6 + $0x10] sm:$0xff]
        %v2148 = vld [vmem:[%s6 + $0x18] sm:$0xff]
        %v2149 = vld [vmem:[%s6 + $0x20] sm:$0xff]
        %v2150 = vld [vmem:[%s6 + $0x28] sm:$0xff]
        %v2151 = vld [vmem:[%s6 + $0x30] sm:$0xff]
        %v2152 = vld [vmem:[%s6 + $0x38] sm:$0xff]
        %v2153 = vld [vmem:[%s12 + $0x4] sm:$0x3]
        %v2155 = vlaneseq
        %v2156 = vshrl.u32 %v2155, 7
        %v2157 = vsub.s32 0, %v2156
        %v2158 = vrot.slane %v2153, %v2157
        %v2159 = vlaneseq
        %v2160 = vshrl.u32 %v2159, 7
        %v2161 = vsub.s32 1, %v2160
        %v2162 = vrot.slane %v2153, %v2161
        %v2173 = vunpack.c.l.b16 %v2145
        %v2174 = vunpack.c.h.b16 %v2145
        %v2175 = vunpack.c.l.b16 %v2146
        %v2176 = vunpack.c.h.b16 %v2146
        %v2177 = vunpack.c.l.b16 %v2147
        %v2178 = vunpack.c.h.b16 %v2147
        %v2179 = vunpack.c.l.b16 %v2148
        %v2180 = vunpack.c.h.b16 %v2148
        %v2181 = vunpack.c.l.b16 %v2149
        %v2182 = vunpack.c.h.b16 %v2149
        %v2183 = vunpack.c.l.b16 %v2150
        %v2184 = vunpack.c.h.b16 %v2150
        %v2185 = vunpack.c.l.b16 %v2151
        %v2186 = vunpack.c.h.b16 %v2151
        %v2187 = vunpack.c.l.b16 %v2152
        %v2188 = vunpack.c.h.b16 %v2152
        %v2189 = vpack.c.b16 %v2175, %v2173
        %v2190 = vpack.c.b16 %v2176, %v2174
        %v2191 = vpack.c.b16 %v2179, %v2177
        %v2192 = vpack.c.b16 %v2180, %v2178
        %v2193 = vpack.c.b16 %v2183, %v2181
        %v2194 = vpack.c.b16 %v2184, %v2182
        %v2195 = vpack.c.b16 %v2187, %v2185
        %v2196 = vpack.c.b16 %v2188, %v2186
        %v2206 = vsel %vm1973, %v2135, 0
        %v2209 = vsel %vm1973, %v2136, 0
        %v2212 = vsel %vm1973, %v2137, 0
        %v2215 = vsel %vm1973, %v2138, 0
        %v2218 = vsel %vm1973, %v2139, 0
        %v2221 = vsel %vm1973, %v2140, 0
        %v2224 = vsel %vm1973, %v2141, 0
        %v2227 = vsel %vm1973, %v2142, 0
        %v2230 = vsel %vm1973, %v2143, 0
        %v2233 = vsel %vm1973, %v2144, 0
        %2235 = vmatprep.subr.bf16.mxu0 %v2190
        %2236 = vmatpush1.bf16.msra.mxu0 %v2189
        %2237 = vmatprep.subr.bf16.mxu0 %v2192
        %2238 = vmatpush1.bf16.msra.mxu0 %v2191
        %2239 = vmatprep.subr.bf16.mxu0 %v2194
        %2240 = vmatpush1.bf16.msra.mxu0 %v2193
        %2241 = vmatprep.subr.bf16.mxu0 %v2196
        %2242 = vmatpush1.bf16.msra.mxu0 %v2195
        %2243 = vmatprep.subr.bf16.mxu0 0
        %2244 = vmatpush1.bf16.msra.mxu0 0
        %2245 = vmatprep.subr.bf16.mxu0 0
        %2246 = vmatpush1.bf16.msra.mxu0 0
        %2247 = vmatprep.subr.bf16.mxu0 0
        %2248 = vmatpush1.bf16.msra.mxu0 0
        %2249 = vmatprep.subr.bf16.mxu0 0
        %2250 = vmatpush1.bf16.msra.mxu0 0
        %2251 = vmatprep.subr.bf16.mxu0 0
        %2252 = vmatpush1.bf16.msra.mxu0 0
        %2253 = vmatprep.subr.bf16.mxu0 0
        %2254 = vmatpush1.bf16.msra.mxu0 0
        %2255 = vmatprep.subr.bf16.mxu0 0
        %2256 = vmatpush1.bf16.msra.mxu0 0
        %2257 = vmatprep.subr.bf16.mxu0 0
        %2258 = vmatpush1.bf16.msra.mxu0 0
        %2259 = vmatprep.subr.bf16.mxu0 0
        %2260 = vmatpush1.bf16.msra.mxu0 0
        %2261 = vmatprep.subr.bf16.mxu0 0
        %2262 = vmatpush1.bf16.msra.mxu0 0
        %2263 = vmatprep.subr.bf16.mxu0 0
        %2264 = vmatpush1.bf16.msra.mxu0 0
        %2265 = vmatprep.subr.bf16.mxu0 0
        %2266 = vmatpush1.bf16.msra.mxu0 0
        %2267 = vmatprep.mubr.bf16.mxu0 0
        %2268 = vmatmul.mubr.bf16.gmra.mrb[0].mxu0 %v2206
        %v2269 = vpop.f32.mrb[0].mxu0
        %v2270 = vadd.f32 %v2158, %v2269
        %v2271 = vpop.f32.mrb[0].mxu0
        %v2272 = vadd.f32 %v2162, %v2271
        %v2273 = vpop.f32.mrb[0].mxu0
        %v2274 = vadd.f32 %v2158, %v2273
        %v2275 = vpop.f32.mrb[0].mxu0
        %v2276 = vadd.f32 %v2162, %v2275
        %2277 = vmatprep.mubr.bf16.mxu0 0
        %2278 = vmatmul.mubr.bf16.gmra.mrb[0].mxu0 %v2209
        %v2279 = vpop.f32.mrb[0].mxu0
        %v2280 = vadd.f32 %v2158, %v2279
        %v2281 = vpop.f32.mrb[0].mxu0
        %v2282 = vadd.f32 %v2162, %v2281
        %v2283 = vpop.f32.mrb[0].mxu0
        %v2284 = vadd.f32 %v2158, %v2283
        %v2285 = vpop.f32.mrb[0].mxu0
        %v2286 = vadd.f32 %v2162, %v2285
        %2287 = vmatprep.mubr.bf16.mxu0 0
        %2288 = vmatmul.mubr.bf16.gmra.mrb[0].mxu0 %v2212
        %v2289 = vpop.f32.mrb[0].mxu0
        %v2290 = vadd.f32 %v2158, %v2289
        %v2291 = vpop.f32.mrb[0].mxu0
        %v2292 = vadd.f32 %v2162, %v2291
        %v2293 = vpop.f32.mrb[0].mxu0
        %v2294 = vadd.f32 %v2158, %v2293
        %v2295 = vpop.f32.mrb[0].mxu0
        %v2296 = vadd.f32 %v2162, %v2295
        %2297 = vmatprep.mubr.bf16.mxu0 0
        %2298 = vmatmul.mubr.bf16.gmra.mrb[0].mxu0 %v2215
        %v2299 = vpop.f32.mrb[0].mxu0
        %v2300 = vadd.f32 %v2158, %v2299
        %v2301 = vpop.f32.mrb[0].mxu0
        %v2302 = vadd.f32 %v2162, %v2301
        %v2303 = vpop.f32.mrb[0].mxu0
        %v2304 = vadd.f32 %v2158, %v2303
        %v2305 = vpop.f32.mrb[0].mxu0
        %v2306 = vadd.f32 %v2162, %v2305
        %2307 = vmatprep.mubr.bf16.mxu0 0
        %2308 = vmatmul.mubr.bf16.gmra.mrb[0].mxu0 %v2218
        %v2309 = vpop.f32.mrb[0].mxu0
        %v2310 = vadd.f32 %v2158, %v2309
        %v2311 = vpop.f32.mrb[0].mxu0
        %v2312 = vadd.f32 %v2162, %v2311
        %v2313 = vpop.f32.mrb[0].mxu0
        %v2314 = vadd.f32 %v2158, %v2313
        %v2315 = vpop.f32.mrb[0].mxu0
        %v2316 = vadd.f32 %v2162, %v2315
        %2317 = vmatprep.mubr.bf16.mxu0 0
        %2318 = vmatmul.mubr.bf16.gmra.mrb[0].mxu0 %v2221
        %v2319 = vpop.f32.mrb[0].mxu0
        %v2320 = vadd.f32 %v2158, %v2319
        %v2321 = vpop.f32.mrb[0].mxu0
        %v2322 = vadd.f32 %v2162, %v2321
        %v2323 = vpop.f32.mrb[0].mxu0
        %v2324 = vadd.f32 %v2158, %v2323
        %v2325 = vpop.f32.mrb[0].mxu0
        %v2326 = vadd.f32 %v2162, %v2325
        %2327 = vmatprep.mubr.bf16.mxu0 0
        %2328 = vmatmul.mubr.bf16.gmra.mrb[0].mxu0 %v2224
        %v2329 = vpop.f32.mrb[0].mxu0
        %v2330 = vadd.f32 %v2158, %v2329
        %v2331 = vpop.f32.mrb[0].mxu0
        %v2332 = vadd.f32 %v2162, %v2331
        %v2333 = vpop.f32.mrb[0].mxu0
        %v2334 = vadd.f32 %v2158, %v2333
        %v2335 = vpop.f32.mrb[0].mxu0
        %v2336 = vadd.f32 %v2162, %v2335
        %2337 = vmatprep.mubr.bf16.mxu0 0
        %2338 = vmatmul.mubr.bf16.gmra.mrb[0].mxu0 %v2227
        %v2339 = vpop.f32.mrb[0].mxu0
        %v2340 = vadd.f32 %v2158, %v2339
        %v2341 = vpop.f32.mrb[0].mxu0
        %v2342 = vadd.f32 %v2162, %v2341
        %v2343 = vpop.f32.mrb[0].mxu0
        %v2344 = vadd.f32 %v2158, %v2343
        %v2345 = vpop.f32.mrb[0].mxu0
        %v2346 = vadd.f32 %v2162, %v2345
        %2347 = vmatprep.mubr.bf16.mxu0 0
        %2348 = vmatmul.mubr.bf16.gmra.mrb[0].mxu0 %v2230
        %v2349 = vpop.f32.mrb[0].mxu0
        %v2350 = vadd.f32 %v2158, %v2349
        %v2351 = vpop.f32.mrb[0].mxu0
        %v2352 = vadd.f32 %v2162, %v2351
        %v2353 = vpop.f32.mrb[0].mxu0
        %v2354 = vadd.f32 %v2158, %v2353
        %v2355 = vpop.f32.mrb[0].mxu0
        %v2356 = vadd.f32 %v2162, %v2355
        %2357 = vmatprep.mubr.bf16.mxu0 0
        %2358 = vmatmul.mubr.bf16.gmra.mrb[0].mxu0 %v2233
        %v2359 = vpop.f32.mrb[0].mxu0
        %v2360 = vadd.f32 %v2158, %v2359
        %v2361 = vpop.f32.mrb[0].mxu0
        %v2362 = vadd.f32 %v2162, %v2361
        %v2363 = vpop.f32.mrb[0].mxu0
        %v2364 = vpop.f32.mrb[0].mxu0
        %2365 = vdwg.mxu0
        %v2366 = vmul.f32 %v2272, 0.5
        %v2367 = vmul.f32 %v2276, 0.5
        %v2368 = vmul.f32 %v2282, 0.5
        %v2369 = vmul.f32 %v2286, 0.5
        %v2370 = vmul.f32 %v2292, 0.5
        %v2371 = vmul.f32 %v2296, 0.5
        %v2372 = vmul.f32 %v2302, 0.5
        %v2373 = vmul.f32 %v2306, 0.5
        %v2374 = vmul.f32 %v2312, 0.5
        %v2375 = vmul.f32 %v2316, 0.5
        %v2376 = vmul.f32 %v2322, 0.5
        %v2377 = vmul.f32 %v2326, 0.5
        %v2378 = vmul.f32 %v2332, 0.5
        %v2379 = vmul.f32 %v2336, 0.5
        %v2380 = vmul.f32 %v2342, 0.5
        %v2381 = vmul.f32 %v2346, 0.5
        %v2382 = vmul.f32 %v2352, 0.5
        %v2383 = vmul.f32 %v2356, 0.5
        %v2384 = vmul.f32 %v2362, 0.5
        %v2385 = vmul.f32 %v2366, 1.442695
        %v2386 = vpow.pop %v2385
        %v2387 = vmul.f32 %v2367, 1.442695
        %v2388 = vpow.pop %v2387
        %v2389 = vmul.f32 %v2368, 1.442695
        %v2390 = vpow.pop %v2389
        %v2391 = vmul.f32 %v2369, 1.442695
        %v2392 = vpow.pop %v2391
        %v2393 = vmul.f32 %v2370, 1.442695
        %v2394 = vpow.pop %v2393
        %v2395 = vmul.f32 %v2371, 1.442695
        %v2396 = vpow.pop %v2395
        %v2397 = vmul.f32 %v2372, 1.442695
        %v2398 = vpow.pop %v2397
        %v2399 = vmul.f32 %v2373, 1.442695
        %v2400 = vpow.pop %v2399
        %v2401 = vmul.f32 %v2374, 1.442695
        %v2402 = vpow.pop %v2401
        %v2403 = vmul.f32 %v2375, 1.442695
        %v2404 = vpow.pop %v2403
        %v2405 = vmul.f32 %v2376, 1.442695
        %v2406 = vpow.pop %v2405
        %v2407 = vmul.f32 %v2377, 1.442695
        %v2408 = vpow.pop %v2407
        %v2409 = vmul.f32 %v2378, 1.442695
        %v2410 = vpow.pop %v2409
        %v2411 = vmul.f32 %v2379, 1.442695
        %v2412 = vpow.pop %v2411
        %v2413 = vmul.f32 %v2380, 1.442695
        %v2414 = vpow.pop %v2413
        %v2415 = vmul.f32 %v2381, 1.442695
        %v2416 = vpow.pop %v2415
        %v2417 = vmul.f32 %v2382, 1.442695
        %v2418 = vpow.pop %v2417
        %v2419 = vmul.f32 %v2383, 1.442695
        %v2420 = vpow.pop %v2419
        %v2421 = vmul.f32 %v2384, 1.442695
        %v2422 = vpow.pop %v2421
        %v2423 = vld [vmem:[%s499] sm:$0xf]
        %v2424 = vld [vmem:[%s499 + $0x4] sm:$0xf]
        %v2425 = vld [vmem:[%s499 + $0x8] sm:$0xf]
        %v2426 = vld [vmem:[%s499 + $0xc] sm:$0xf]
        %v2427 = vld [vmem:[%s499 + $0x10] sm:$0xf]
        %v2428 = vld [vmem:[%s499 + $0x14] sm:$0xf]
        %v2429 = vld [vmem:[%s499 + $0x18] sm:$0xf]
        %v2430 = vld [vmem:[%s499 + $0x1c] sm:$0xf]
        %v2431 = vld [vmem:[%s499 + $0x20] sm:$0xf]
        %v2432 = vld [vmem:[%s499 + $0x24] sm:$0xf]
        %v2433 = vld [vmem:[%s499 + $0x28] sm:$0xf]
        %v2434 = vld [vmem:[%s499 + $0x2c] sm:$0xf]
        %v2435 = vld [vmem:[%s499 + $0x30] sm:$0xf]
        %v2436 = vld [vmem:[%s499 + $0x34] sm:$0xf]
        %v2437 = vld [vmem:[%s499 + $0x38] sm:$0xf]
        %v2438 = vld [vmem:[%s499 + $0x3c] sm:$0xf]
        %v2439 = vld [vmem:[%s499 + $0x40] sm:$0xf]
        %v2440 = vld [vmem:[%s499 + $0x44] sm:$0xf]
        %v2441 = vld [vmem:[%s499 + $0x48] sm:$0xf]
        %v2442 = vunpack.c.l.bf16 %v2423
        %v2443 = vunpack.c.l.bf16 %v2424
        %v2444 = vunpack.c.l.bf16 %v2425
        %v2445 = vunpack.c.l.bf16 %v2426
        %v2446 = vunpack.c.l.bf16 %v2427
        %v2447 = vunpack.c.l.bf16 %v2428
        %v2448 = vunpack.c.l.bf16 %v2429
        %v2449 = vunpack.c.l.bf16 %v2430
        %v2450 = vunpack.c.l.bf16 %v2431
        %v2451 = vunpack.c.l.bf16 %v2432
        %v2452 = vunpack.c.l.bf16 %v2433
        %v2453 = vunpack.c.l.bf16 %v2434
        %v2454 = vunpack.c.l.bf16 %v2435
        %v2455 = vunpack.c.l.bf16 %v2436
        %v2456 = vunpack.c.l.bf16 %v2437
        %v2457 = vunpack.c.l.bf16 %v2438
        %v2458 = vunpack.c.l.bf16 %v2439
        %v2459 = vunpack.c.l.bf16 %v2440
        %v2460 = vunpack.c.l.bf16 %v2441
        %v2461 = vmul.f32 %v2442, %v2386
        %v2462 = vmul.f32 %v2443, %v2388
        %v2463 = vmul.f32 %v2444, %v2390
        %v2464 = vmul.f32 %v2445, %v2392
        %v2465 = vmul.f32 %v2446, %v2394
        %v2466 = vmul.f32 %v2447, %v2396
        %v2467 = vmul.f32 %v2448, %v2398
        %v2468 = vmul.f32 %v2449, %v2400
        %v2469 = vmul.f32 %v2450, %v2402
        %v2470 = vmul.f32 %v2451, %v2404
        %v2471 = vmul.f32 %v2452, %v2406
        %v2472 = vmul.f32 %v2453, %v2408
        %v2473 = vmul.f32 %v2454, %v2410
        %v2474 = vmul.f32 %v2455, %v2412
        %v2475 = vmul.f32 %v2456, %v2414
        %v2476 = vmul.f32 %v2457, %v2416
        %v2477 = vmul.f32 %v2458, %v2418
        %v2478 = vmul.f32 %v2459, %v2420
        %v2479 = vmul.f32 %v2460, %v2422
        %v2480 = vadd.f32 %v2461, %v2270
        %v2481 = vadd.f32 %v2462, %v2274
        %v2482 = vadd.f32 %v2463, %v2280
        %v2483 = vadd.f32 %v2464, %v2284
        %v2484 = vadd.f32 %v2465, %v2290
        %v2485 = vadd.f32 %v2466, %v2294
        %v2486 = vadd.f32 %v2467, %v2300
        %v2487 = vadd.f32 %v2468, %v2304
        %v2488 = vadd.f32 %v2469, %v2310
        %v2489 = vadd.f32 %v2470, %v2314
        %v2490 = vadd.f32 %v2471, %v2320
        %v2491 = vadd.f32 %v2472, %v2324
        %v2492 = vadd.f32 %v2473, %v2330
        %v2493 = vadd.f32 %v2474, %v2334
        %v2494 = vadd.f32 %v2475, %v2340
        %v2495 = vadd.f32 %v2476, %v2344
        %v2496 = vadd.f32 %v2477, %v2350
        %v2497 = vadd.f32 %v2478, %v2354
        %v2498 = vadd.f32 %v2479, %v2360
        %v2499 = vpack.c.bf16 %v2481, %v2480
        %v2500 = vpack.c.bf16 %v2483, %v2482
        %v2501 = vpack.c.bf16 %v2485, %v2484
        %v2502 = vpack.c.bf16 %v2487, %v2486
        %v2503 = vpack.c.bf16 %v2489, %v2488
        %v2504 = vpack.c.bf16 %v2491, %v2490
        %v2505 = vpack.c.bf16 %v2493, %v2492
        %v2506 = vpack.c.bf16 %v2495, %v2494
        %v2507 = vpack.c.bf16 %v2497, %v2496
        %v2508 = vpack.c.bf16 %v2498, %v2498
        %v2509 = vld [vmem:[%s7] sm:$0xf]
        %v2510 = vld [vmem:[%s7 + $0x4] sm:$0xf]
        %v2511 = vld [vmem:[%s7 + $0x8] sm:$0xf]
        %v2512 = vld [vmem:[%s7 + $0xc] sm:$0xf]
        %v2513 = vld [vmem:[%s7 + $0x10] sm:$0xf]
        %v2514 = vld [vmem:[%s7 + $0x14] sm:$0xf]
        %v2515 = vld [vmem:[%s7 + $0x18] sm:$0xf]
        %v2516 = vld [vmem:[%s7 + $0x1c] sm:$0xf]
        %v2517 = vld [vmem:[%s7 + $0x20] sm:$0xf]
        %v2518 = vld [vmem:[%s7 + $0x24] sm:$0xf]
        %v2519 = vld [vmem:[%s7 + $0x28] sm:$0xf]
        %v2520 = vld [vmem:[%s7 + $0x2c] sm:$0xf]
        %v2521 = vld [vmem:[%s7 + $0x30] sm:$0xf]
        %v2522 = vld [vmem:[%s7 + $0x34] sm:$0xf]
        %v2523 = vld [vmem:[%s7 + $0x38] sm:$0xf]
        %v2524 = vld [vmem:[%s7 + $0x3c] sm:$0xf]
        %v2525 = vld [vmem:[%s12 + $0x6] sm:$0x1]
        %v2527 = vlaneseq
        %v2528 = vshrl.u32 %v2527, 7
        %v2529 = vsub.s32 0, %v2528
        %v2530 = vrot.slane %v2525, %v2529
        %v2548 = vunpack.c.l.b16 %v2509
        %v2549 = vunpack.c.l.b16 %v2510
        %v2550 = vunpack.c.l.b16 %v2511
        %v2551 = vunpack.c.l.b16 %v2512
        %v2552 = vunpack.c.l.b16 %v2513
        %v2553 = vunpack.c.l.b16 %v2514
        %v2554 = vunpack.c.l.b16 %v2515
        %v2555 = vunpack.c.l.b16 %v2516
        %v2556 = vunpack.c.l.b16 %v2517
        %v2557 = vunpack.c.l.b16 %v2518
        %v2558 = vunpack.c.l.b16 %v2519
        %v2559 = vunpack.c.l.b16 %v2520
        %v2560 = vunpack.c.l.b16 %v2521
        %v2561 = vunpack.c.l.b16 %v2522
        %v2562 = vunpack.c.l.b16 %v2523
        %v2563 = vunpack.c.l.b16 %v2524
        %v2564 = vpack.c.b16 %v2549, %v2548
        %v2565 = vpack.c.b16 %v2551, %v2550
        %v2566 = vpack.c.b16 %v2553, %v2552
        %v2567 = vpack.c.b16 %v2555, %v2554
        %v2568 = vpack.c.b16 %v2557, %v2556
        %v2569 = vpack.c.b16 %v2559, %v2558
        %v2570 = vpack.c.b16 %v2561, %v2560
        %v2571 = vpack.c.b16 %v2563, %v2562
        %2580 = vmatprep.subr.bf16.mxu0 0
        %2581 = vmatpush1.bf16.msra.mxu0 %v2564
        %2582 = vmatprep.subr.bf16.mxu0 0
        %2583 = vmatpush1.bf16.msra.mxu0 %v2565
        %2584 = vmatprep.subr.bf16.mxu0 0
        %2585 = vmatpush1.bf16.msra.mxu0 %v2566
        %2586 = vmatprep.subr.bf16.mxu0 0
        %2587 = vmatpush1.bf16.msra.mxu0 %v2567
        %2588 = vmatprep.subr.bf16.mxu0 0
        %2589 = vmatpush1.bf16.msra.mxu0 %v2568
        %2590 = vmatprep.subr.bf16.mxu0 0
        %2591 = vmatpush1.bf16.msra.mxu0 %v2569
        %2592 = vmatprep.subr.bf16.mxu0 0
        %2593 = vmatpush1.bf16.msra.mxu0 %v2570
        %2594 = vmatprep.subr.bf16.mxu0 0
        %2595 = vmatpush1.bf16.msra.mxu0 %v2571
        %2596 = vmatprep.subr.bf16.mxu0 0
        %2597 = vmatpush1.bf16.msra.mxu0 0
        %2598 = vmatprep.subr.bf16.mxu0 0
        %2599 = vmatpush1.bf16.msra.mxu0 0
        %2600 = vmatprep.subr.bf16.mxu0 0
        %2601 = vmatpush1.bf16.msra.mxu0 0
        %2602 = vmatprep.subr.bf16.mxu0 0
        %2603 = vmatpush1.bf16.msra.mxu0 0
        %2604 = vmatprep.subr.bf16.mxu0 0
        %2605 = vmatpush1.bf16.msra.mxu0 0
        %2606 = vmatprep.subr.bf16.mxu0 0
        %2607 = vmatpush1.bf16.msra.mxu0 0
        %2608 = vmatprep.subr.bf16.mxu0 0
        %2609 = vmatpush1.bf16.msra.mxu0 0
        %2610 = vmatprep.subr.bf16.mxu0 0
        %2611 = vmatpush1.bf16.msra.mxu0 0
        %2612 = vmatprep.mubr.bf16.mxu0 0
        %2613 = vmatmul.mubr.bf16.gmra.mrb[0].mxu0 %v2499
        %v2614 = vpop.f32.mrb[0].mxu0
        %v2615 = vadd.f32 %v2530, %v2614
        %v2616 = vpop.f32.mrb[0].mxu0
        %v2617 = vpop.f32.mrb[0].mxu0
        %v2618 = vadd.f32 %v2530, %v2617
        %v2619 = vpop.f32.mrb[0].mxu0
        %2620 = vmatprep.mubr.bf16.mxu0 0
        %2621 = vmatmul.mubr.bf16.gmra.mrb[0].mxu0 %v2500
        %v2622 = vpop.f32.mrb[0].mxu0
        %v2623 = vadd.f32 %v2530, %v2622
        %v2624 = vpop.f32.mrb[0].mxu0
        %v2625 = vpop.f32.mrb[0].mxu0
        %v2626 = vadd.f32 %v2530, %v2625
        %v2627 = vpop.f32.mrb[0].mxu0
        %2628 = vmatprep.mubr.bf16.mxu0 0
        %2629 = vmatmul.mubr.bf16.gmra.mrb[0].mxu0 %v2501
        %v2630 = vpop.f32.mrb[0].mxu0
        %v2631 = vadd.f32 %v2530, %v2630
        %v2632 = vpop.f32.mrb[0].mxu0
        %v2633 = vpop.f32.mrb[0].mxu0
        %v2634 = vadd.f32 %v2530, %v2633
        %v2635 = vpop.f32.mrb[0].mxu0
        %2636 = vmatprep.mubr.bf16.mxu0 0
        %2637 = vmatmul.mubr.bf16.gmra.mrb[0].mxu0 %v2502
        %v2638 = vpop.f32.mrb[0].mxu0
        %v2639 = vadd.f32 %v2530, %v2638
        %v2640 = vpop.f32.mrb[0].mxu0
        %v2641 = vpop.f32.mrb[0].mxu0
        %v2642 = vadd.f32 %v2530, %v2641
        %v2643 = vpop.f32.mrb[0].mxu0
        %2644 = vmatprep.mubr.bf16.mxu0 0
        %2645 = vmatmul.mubr.bf16.gmra.mrb[0].mxu0 %v2503
        %v2646 = vpop.f32.mrb[0].mxu0
        %v2647 = vadd.f32 %v2530, %v2646
        %v2648 = vpop.f32.mrb[0].mxu0
        %v2649 = vpop.f32.mrb[0].mxu0
        %v2650 = vadd.f32 %v2530, %v2649
        %v2651 = vpop.f32.mrb[0].mxu0
        %2652 = vmatprep.mubr.bf16.mxu0 0
        %2653 = vmatmul.mubr.bf16.gmra.mrb[0].mxu0 %v2504
        %v2654 = vpop.f32.mrb[0].mxu0
        %v2655 = vadd.f32 %v2530, %v2654
        %v2656 = vpop.f32.mrb[0].mxu0
        %v2657 = vpop.f32.mrb[0].mxu0
        %v2658 = vadd.f32 %v2530, %v2657
        %v2659 = vpop.f32.mrb[0].mxu0
        %2660 = vmatprep.mubr.bf16.mxu0 0
        %2661 = vmatmul.mubr.bf16.gmra.mrb[0].mxu0 %v2505
        %v2662 = vpop.f32.mrb[0].mxu0
        %v2663 = vadd.f32 %v2530, %v2662
        %v2664 = vpop.f32.mrb[0].mxu0
        %v2665 = vpop.f32.mrb[0].mxu0
        %v2666 = vadd.f32 %v2530, %v2665
        %v2667 = vpop.f32.mrb[0].mxu0
        %2668 = vmatprep.mubr.bf16.mxu0 0
        %2669 = vmatmul.mubr.bf16.gmra.mrb[0].mxu0 %v2506
        %v2670 = vpop.f32.mrb[0].mxu0
        %v2671 = vadd.f32 %v2530, %v2670
        %v2672 = vpop.f32.mrb[0].mxu0
        %v2673 = vpop.f32.mrb[0].mxu0
        %v2674 = vadd.f32 %v2530, %v2673
        %v2675 = vpop.f32.mrb[0].mxu0
        %2676 = vmatprep.mubr.bf16.mxu0 0
        %2677 = vmatmul.mubr.bf16.gmra.mrb[0].mxu0 %v2507
        %v2678 = vpop.f32.mrb[0].mxu0
        %v2679 = vadd.f32 %v2530, %v2678
        %v2680 = vpop.f32.mrb[0].mxu0
        %v2681 = vpop.f32.mrb[0].mxu0
        %v2682 = vadd.f32 %v2530, %v2681
        %v2683 = vpop.f32.mrb[0].mxu0
        %2684 = vmatprep.mubr.bf16.mxu0 0
        %2685 = vmatmul.mubr.bf16.gmra.mrb[0].mxu0 %v2508
        %v2686 = vpop.f32.mrb[0].mxu0
        %v2687 = vadd.f32 %v2530, %v2686
        %v2688 = vpop.f32.mrb[0].mxu0
        %v2689 = vpop.f32.mrb[0].mxu0
        %v2690 = vpop.f32.mrb[0].mxu0
        %2691 = vdwg.mxu0
        %v2692 = vmax.f32 %v2615, 0.0
        %v2693 = vmax.f32 %v2618, 0.0
        %v2694 = vmax.f32 %v2623, 0.0
        %v2695 = vmax.f32 %v2626, 0.0
        %v2696 = vmax.f32 %v2631, 0.0
        %v2697 = vmax.f32 %v2634, 0.0
        %v2698 = vmax.f32 %v2639, 0.0
        %v2699 = vmax.f32 %v2642, 0.0
        %v2700 = vmax.f32 %v2647, 0.0
        %v2701 = vmax.f32 %v2650, 0.0
        %v2702 = vmax.f32 %v2655, 0.0
        %v2703 = vmax.f32 %v2658, 0.0
        %v2704 = vmax.f32 %v2663, 0.0
        %v2705 = vmax.f32 %v2666, 0.0
        %v2706 = vmax.f32 %v2671, 0.0
        %v2707 = vmax.f32 %v2674, 0.0
        %v2708 = vmax.f32 %v2679, 0.0
        %v2709 = vmax.f32 %v2682, 0.0
        %v2710 = vmax.f32 %v2687, 0.0
        %v2711 = vpack.c.bf16 %v2693, %v2692
        %v2712 = vpack.c.bf16 %v2695, %v2694
        %v2713 = vpack.c.bf16 %v2697, %v2696
        %v2714 = vpack.c.bf16 %v2699, %v2698
        %v2715 = vpack.c.bf16 %v2701, %v2700
        %v2716 = vpack.c.bf16 %v2703, %v2702
        %v2717 = vpack.c.bf16 %v2705, %v2704
        %v2718 = vpack.c.bf16 %v2707, %v2706
        %v2719 = vpack.c.bf16 %v2709, %v2708
        %v2720 = vpack.c.bf16 %v2710, %v2710
        %v2721 = vld [vmem:[%s8] sm:$0xf]
        %v2722 = vld [vmem:[%s8 + $0x4] sm:$0xf]
        %v2723 = vld [vmem:[%s8 + $0x8] sm:$0xf]
        %v2724 = vld [vmem:[%s8 + $0xc] sm:$0xf]
        %v2725 = vld [vmem:[%s8 + $0x10] sm:$0xf]
        %v2726 = vld [vmem:[%s8 + $0x14] sm:$0xf]
        %v2727 = vld [vmem:[%s8 + $0x18] sm:$0xf]
        %v2728 = vld [vmem:[%s8 + $0x1c] sm:$0xf]
        %v2729 = vld [vmem:[%s12 + $0x7] sm:$0x1]
        %v2731 = vlaneseq
        %v2732 = vshrl.u32 %v2731, 7
        %v2733 = vsub.s32 0, %v2732
        %v2734 = vrot.slane %v2729, %v2733
        %v2744 = vunpack.c.l.b16 %v2721
        %v2745 = vunpack.c.l.b16 %v2722
        %v2746 = vunpack.c.l.b16 %v2723
        %v2747 = vunpack.c.l.b16 %v2724
        %v2748 = vunpack.c.l.b16 %v2725
        %v2749 = vunpack.c.l.b16 %v2726
        %v2750 = vunpack.c.l.b16 %v2727
        %v2751 = vunpack.c.l.b16 %v2728
        %v2752 = vpack.c.b16 %v2745, %v2744
        %v2753 = vpack.c.b16 %v2747, %v2746
        %v2754 = vpack.c.b16 %v2749, %v2748
        %v2755 = vpack.c.b16 %v2751, %v2750
        %v2761 = vsel %vm1973, %v2711, 0
        %v2764 = vsel %vm1973, %v2712, 0
        %v2767 = vsel %vm1973, %v2713, 0
        %v2770 = vsel %vm1973, %v2714, 0
        %v2773 = vsel %vm1973, %v2715, 0
        %v2776 = vsel %vm1973, %v2716, 0
        %v2779 = vsel %vm1973, %v2717, 0
        %v2782 = vsel %vm1973, %v2718, 0
        %v2785 = vsel %vm1973, %v2719, 0
        %v2788 = vsel %vm1973, %v2720, 0
        %2790 = vmatprep.subr.bf16.mxu0 0
        %2791 = vmatpush1.bf16.msra.mxu0 %v2752
        %2792 = vmatprep.subr.bf16.mxu0 0
        %2793 = vmatpush1.bf16.msra.mxu0 %v2753
        %2794 = vmatprep.subr.bf16.mxu0 0
        %2795 = vmatpush1.bf16.msra.mxu0 %v2754
        %2796 = vmatprep.subr.bf16.mxu0 0
        %2797 = vmatpush1.bf16.msra.mxu0 %v2755
        %2798 = vmatprep.subr.bf16.mxu0 0
        %2799 = vmatpush1.bf16.msra.mxu0 0
        %2800 = vmatprep.subr.bf16.mxu0 0
        %2801 = vmatpush1.bf16.msra.mxu0 0
        %2802 = vmatprep.subr.bf16.mxu0 0
        %2803 = vmatpush1.bf16.msra.mxu0 0
        %2804 = vmatprep.subr.bf16.mxu0 0
        %2805 = vmatpush1.bf16.msra.mxu0 0
        %2806 = vmatprep.subr.bf16.mxu0 0
        %2807 = vmatpush1.bf16.msra.mxu0 0
        %2808 = vmatprep.subr.bf16.mxu0 0
        %2809 = vmatpush1.bf16.msra.mxu0 0
        %2810 = vmatprep.subr.bf16.mxu0 0
        %2811 = vmatpush1.bf16.msra.mxu0 0
        %2812 = vmatprep.subr.bf16.mxu0 0
        %2813 = vmatpush1.bf16.msra.mxu0 0
        %2814 = vmatprep.subr.bf16.mxu0 0
        %2815 = vmatpush1.bf16.msra.mxu0 0
        %2816 = vmatprep.subr.bf16.mxu0 0
        %2817 = vmatpush1.bf16.msra.mxu0 0
        %2818 = vmatprep.subr.bf16.mxu0 0
        %2819 = vmatpush1.bf16.msra.mxu0 0
        %2820 = vmatprep.subr.bf16.mxu0 0
        %2821 = vmatpush1.bf16.msra.mxu0 0
        %2822 = vmatprep.mubr.bf16.mxu0 0
        %2823 = vmatmul.mubr.bf16.gmra.mrb[0].mxu0 %v2761
        %v2824 = vpop.f32.mrb[0].mxu0
        %v2825 = vadd.f32 %v2734, %v2824
        %v2826 = vpop.f32.mrb[0].mxu0
        %v2827 = vpop.f32.mrb[0].mxu0
        %v2828 = vadd.f32 %v2734, %v2827
        %v2829 = vpop.f32.mrb[0].mxu0
        %2830 = vmatprep.mubr.bf16.mxu0 0
        %2831 = vmatmul.mubr.bf16.gmra.mrb[0].mxu0 %v2764
        %v2832 = vpop.f32.mrb[0].mxu0
        %v2833 = vadd.f32 %v2734, %v2832
        %v2834 = vpop.f32.mrb[0].mxu0
        %v2835 = vpop.f32.mrb[0].mxu0
        %v2836 = vadd.f32 %v2734, %v2835
        %v2837 = vpop.f32.mrb[0].mxu0
        %2838 = vmatprep.mubr.bf16.mxu0 0
        %2839 = vmatmul.mubr.bf16.gmra.mrb[0].mxu0 %v2767
        %v2840 = vpop.f32.mrb[0].mxu0
        %v2841 = vadd.f32 %v2734, %v2840
        %v2842 = vpop.f32.mrb[0].mxu0
        %v2843 = vpop.f32.mrb[0].mxu0
        %v2844 = vadd.f32 %v2734, %v2843
        %v2845 = vpop.f32.mrb[0].mxu0
        %2846 = vmatprep.mubr.bf16.mxu0 0
        %2847 = vmatmul.mubr.bf16.gmra.mrb[0].mxu0 %v2770
        %v2848 = vpop.f32.mrb[0].mxu0
        %v2849 = vadd.f32 %v2734, %v2848
        %v2850 = vpop.f32.mrb[0].mxu0
        %v2851 = vpop.f32.mrb[0].mxu0
        %v2852 = vadd.f32 %v2734, %v2851
        %v2853 = vpop.f32.mrb[0].mxu0
        %2854 = vmatprep.mubr.bf16.mxu0 0
        %2855 = vmatmul.mubr.bf16.gmra.mrb[0].mxu0 %v2773
        %v2856 = vpop.f32.mrb[0].mxu0
        %v2857 = vadd.f32 %v2734, %v2856
        %v2858 = vpop.f32.mrb[0].mxu0
        %v2859 = vpop.f32.mrb[0].mxu0
        %v2860 = vadd.f32 %v2734, %v2859
        %v2861 = vpop.f32.mrb[0].mxu0
        %2862 = vmatprep.mubr.bf16.mxu0 0
        %2863 = vmatmul.mubr.bf16.gmra.mrb[0].mxu0 %v2776
        %v2864 = vpop.f32.mrb[0].mxu0
        %v2865 = vadd.f32 %v2734, %v2864
        %v2866 = vpop.f32.mrb[0].mxu0
        %v2867 = vpop.f32.mrb[0].mxu0
        %v2868 = vadd.f32 %v2734, %v2867
        %v2869 = vpop.f32.mrb[0].mxu0
        %2870 = vmatprep.mubr.bf16.mxu0 0
        %2871 = vmatmul.mubr.bf16.gmra.mrb[0].mxu0 %v2779
        %v2872 = vpop.f32.mrb[0].mxu0
        %v2873 = vadd.f32 %v2734, %v2872
        %v2874 = vpop.f32.mrb[0].mxu0
        %v2875 = vpop.f32.mrb[0].mxu0
        %v2876 = vadd.f32 %v2734, %v2875
        %v2877 = vpop.f32.mrb[0].mxu0
        %2878 = vmatprep.mubr.bf16.mxu0 0
        %2879 = vmatmul.mubr.bf16.gmra.mrb[0].mxu0 %v2782
        %v2880 = vpop.f32.mrb[0].mxu0
        %v2881 = vadd.f32 %v2734, %v2880
        %v2882 = vpop.f32.mrb[0].mxu0
        %v2883 = vpop.f32.mrb[0].mxu0
        %v2884 = vadd.f32 %v2734, %v2883
        %v2885 = vpop.f32.mrb[0].mxu0
        %2886 = vmatprep.mubr.bf16.mxu0 0
        %2887 = vmatmul.mubr.bf16.gmra.mrb[0].mxu0 %v2785
        %v2888 = vpop.f32.mrb[0].mxu0
        %v2889 = vadd.f32 %v2734, %v2888
        %v2890 = vpop.f32.mrb[0].mxu0
        %v2891 = vpop.f32.mrb[0].mxu0
        %v2892 = vadd.f32 %v2734, %v2891
        %v2893 = vpop.f32.mrb[0].mxu0
        %2894 = vmatprep.mubr.bf16.mxu0 0
        %2895 = vmatmul.mubr.bf16.gmra.mrb[0].mxu0 %v2788
        %v2896 = vpop.f32.mrb[0].mxu0
        %v2897 = vadd.f32 %v2734, %v2896
        %v2898 = vpop.f32.mrb[0].mxu0
        %v2899 = vpop.f32.mrb[0].mxu0
        %v2900 = vpop.f32.mrb[0].mxu0
        %2901 = vdwg.mxu0
        %v2902 = vmax.f32 %v2825, 0.0
        %v2903 = vmax.f32 %v2828, 0.0
        %v2904 = vmax.f32 %v2833, 0.0
        %v2905 = vmax.f32 %v2836, 0.0
        %v2906 = vmax.f32 %v2841, 0.0
        %v2907 = vmax.f32 %v2844, 0.0
        %v2908 = vmax.f32 %v2849, 0.0
        %v2909 = vmax.f32 %v2852, 0.0
        %v2910 = vmax.f32 %v2857, 0.0
        %v2911 = vmax.f32 %v2860, 0.0
        %v2912 = vmax.f32 %v2865, 0.0
        %v2913 = vmax.f32 %v2868, 0.0
        %v2914 = vmax.f32 %v2873, 0.0
        %v2915 = vmax.f32 %v2876, 0.0
        %v2916 = vmax.f32 %v2881, 0.0
        %v2917 = vmax.f32 %v2884, 0.0
        %v2918 = vmax.f32 %v2889, 0.0
        %v2919 = vmax.f32 %v2892, 0.0
        %v2920 = vmax.f32 %v2897, 0.0
        %v2921 = vpack.c.bf16 %v2903, %v2902
        %v2922 = vpack.c.bf16 %v2905, %v2904
        %v2923 = vpack.c.bf16 %v2907, %v2906
        %v2924 = vpack.c.bf16 %v2909, %v2908
        %v2925 = vpack.c.bf16 %v2911, %v2910
        %v2926 = vpack.c.bf16 %v2913, %v2912
        %v2927 = vpack.c.bf16 %v2915, %v2914
        %v2928 = vpack.c.bf16 %v2917, %v2916
        %v2929 = vpack.c.bf16 %v2919, %v2918
        %v2930 = vpack.c.bf16 %v2920, %v2920
        %v2931 = vld [vmem:[%s9] sm:$0xf]
        %v2932 = vld [vmem:[%s9 + $0x4] sm:$0xf]
        %v2933 = vld [vmem:[%s9 + $0x8] sm:$0xf]
        %v2934 = vld [vmem:[%s9 + $0xc] sm:$0xf]
        %v2935 = vld [vmem:[%s9 + $0x10] sm:$0xf]
        %v2936 = vld [vmem:[%s9 + $0x14] sm:$0xf]
        %v2937 = vld [vmem:[%s9 + $0x18] sm:$0xf]
        %v2938 = vld [vmem:[%s9 + $0x1c] sm:$0xf]
        %v2939 = vld [vmem:[%s12 + $0x8] sm:$0x1]
        %v2941 = vlaneseq
        %v2942 = vshrl.u32 %v2941, 7
        %v2943 = vsub.s32 0, %v2942
        %v2944 = vrot.slane %v2939, %v2943
        %v2954 = vunpack.c.l.b16 %v2931
        %v2955 = vunpack.c.l.b16 %v2932
        %v2956 = vunpack.c.l.b16 %v2933
        %v2957 = vunpack.c.l.b16 %v2934
        %v2958 = vunpack.c.l.b16 %v2935
        %v2959 = vunpack.c.l.b16 %v2936
        %v2960 = vunpack.c.l.b16 %v2937
        %v2961 = vunpack.c.l.b16 %v2938
        %v2962 = vpack.c.b16 %v2955, %v2954
        %v2963 = vpack.c.b16 %v2957, %v2956
        %v2964 = vpack.c.b16 %v2959, %v2958
        %v2965 = vpack.c.b16 %v2961, %v2960
        %v2971 = vsel %vm1973, %v2921, 0
        %v2974 = vsel %vm1973, %v2922, 0
        %v2977 = vsel %vm1973, %v2923, 0
        %v2980 = vsel %vm1973, %v2924, 0
        %v2983 = vsel %vm1973, %v2925, 0
        %v2986 = vsel %vm1973, %v2926, 0
        %v2989 = vsel %vm1973, %v2927, 0
        %v2992 = vsel %vm1973, %v2928, 0
        %v2995 = vsel %vm1973, %v2929, 0
        %v2998 = vsel %vm1973, %v2930, 0
        %3000 = vmatprep.subr.bf16.mxu0 0
        %3001 = vmatpush1.bf16.msra.mxu0 %v2962
        %3002 = vmatprep.subr.bf16.mxu0 0
        %3003 = vmatpush1.bf16.msra.mxu0 %v2963
        %3004 = vmatprep.subr.bf16.mxu0 0
        %3005 = vmatpush1.bf16.msra.mxu0 %v2964
        %3006 = vmatprep.subr.bf16.mxu0 0
        %3007 = vmatpush1.bf16.msra.mxu0 %v2965
        %3008 = vmatprep.subr.bf16.mxu0 0
        %3009 = vmatpush1.bf16.msra.mxu0 0
        %3010 = vmatprep.subr.bf16.mxu0 0
        %3011 = vmatpush1.bf16.msra.mxu0 0
        %3012 = vmatprep.subr.bf16.mxu0 0
        %3013 = vmatpush1.bf16.msra.mxu0 0
        %3014 = vmatprep.subr.bf16.mxu0 0
        %3015 = vmatpush1.bf16.msra.mxu0 0
        %3016 = vmatprep.subr.bf16.mxu0 0
        %3017 = vmatpush1.bf16.msra.mxu0 0
        %3018 = vmatprep.subr.bf16.mxu0 0
        %3019 = vmatpush1.bf16.msra.mxu0 0
        %3020 = vmatprep.subr.bf16.mxu0 0
        %3021 = vmatpush1.bf16.msra.mxu0 0
        %3022 = vmatprep.subr.bf16.mxu0 0
        %3023 = vmatpush1.bf16.msra.mxu0 0
        %3024 = vmatprep.subr.bf16.mxu0 0
        %3025 = vmatpush1.bf16.msra.mxu0 0
        %3026 = vmatprep.subr.bf16.mxu0 0
        %3027 = vmatpush1.bf16.msra.mxu0 0
        %3028 = vmatprep.subr.bf16.mxu0 0
        %3029 = vmatpush1.bf16.msra.mxu0 0
        %3030 = vmatprep.subr.bf16.mxu0 0
        %3031 = vmatpush1.bf16.msra.mxu0 0
        %3032 = vmatprep.mubr.bf16.mxu0 0
        %3033 = vmatmul.mubr.bf16.gmra.mrb[0].mxu0 %v2971
        %v3034 = vpop.f32.mrb[0].mxu0
        %v3035 = vadd.f32 %v2944, %v3034
        %v3036 = vpop.f32.mrb[0].mxu0
        %v3037 = vpop.f32.mrb[0].mxu0
        %v3038 = vadd.f32 %v2944, %v3037
        %v3039 = vpop.f32.mrb[0].mxu0
        %3040 = vmatprep.mubr.bf16.mxu0 0
        %3041 = vmatmul.mubr.bf16.gmra.mrb[0].mxu0 %v2974
        %v3042 = vpop.f32.mrb[0].mxu0
        %v3043 = vadd.f32 %v2944, %v3042
        %v3044 = vpop.f32.mrb[0].mxu0
        %v3045 = vpop.f32.mrb[0].mxu0
        %v3046 = vadd.f32 %v2944, %v3045
        %v3047 = vpop.f32.mrb[0].mxu0
        %3048 = vmatprep.mubr.bf16.mxu0 0
        %3049 = vmatmul.mubr.bf16.gmra.mrb[0].mxu0 %v2977
        %v3050 = vpop.f32.mrb[0].mxu0
        %v3051 = vadd.f32 %v2944, %v3050
        %v3052 = vpop.f32.mrb[0].mxu0
        %v3053 = vpop.f32.mrb[0].mxu0
        %v3054 = vadd.f32 %v2944, %v3053
        %v3055 = vpop.f32.mrb[0].mxu0
        %3056 = vmatprep.mubr.bf16.mxu0 0
        %3057 = vmatmul.mubr.bf16.gmra.mrb[0].mxu0 %v2980
        %v3058 = vpop.f32.mrb[0].mxu0
        %v3059 = vadd.f32 %v2944, %v3058
        %v3060 = vpop.f32.mrb[0].mxu0
        %v3061 = vpop.f32.mrb[0].mxu0
        %v3062 = vadd.f32 %v2944, %v3061
        %v3063 = vpop.f32.mrb[0].mxu0
        %3064 = vmatprep.mubr.bf16.mxu0 0
        %3065 = vmatmul.mubr.bf16.gmra.mrb[0].mxu0 %v2983
        %v3066 = vpop.f32.mrb[0].mxu0
        %v3067 = vadd.f32 %v2944, %v3066
        %v3068 = vpop.f32.mrb[0].mxu0
        %v3069 = vpop.f32.mrb[0].mxu0
        %v3070 = vadd.f32 %v2944, %v3069
        %v3071 = vpop.f32.mrb[0].mxu0
        %3072 = vmatprep.mubr.bf16.mxu0 0
        %3073 = vmatmul.mubr.bf16.gmra.mrb[0].mxu0 %v2986
        %v3074 = vpop.f32.mrb[0].mxu0
        %v3075 = vadd.f32 %v2944, %v3074
        %v3076 = vpop.f32.mrb[0].mxu0
        %v3077 = vpop.f32.mrb[0].mxu0
        %v3078 = vadd.f32 %v2944, %v3077
        %v3079 = vpop.f32.mrb[0].mxu0
        %3080 = vmatprep.mubr.bf16.mxu0 0
        %3081 = vmatmul.mubr.bf16.gmra.mrb[0].mxu0 %v2989
        %v3082 = vpop.f32.mrb[0].mxu0
        %v3083 = vadd.f32 %v2944, %v3082
        %v3084 = vpop.f32.mrb[0].mxu0
        %v3085 = vpop.f32.mrb[0].mxu0
        %v3086 = vadd.f32 %v2944, %v3085
        %v3087 = vpop.f32.mrb[0].mxu0
        %3088 = vmatprep.mubr.bf16.mxu0 0
        %3089 = vmatmul.mubr.bf16.gmra.mrb[0].mxu0 %v2992
        %v3090 = vpop.f32.mrb[0].mxu0
        %v3091 = vadd.f32 %v2944, %v3090
        %v3092 = vpop.f32.mrb[0].mxu0
        %v3093 = vpop.f32.mrb[0].mxu0
        %v3094 = vadd.f32 %v2944, %v3093
        %v3095 = vpop.f32.mrb[0].mxu0
        %3096 = vmatprep.mubr.bf16.mxu0 0
        %3097 = vmatmul.mubr.bf16.gmra.mrb[0].mxu0 %v2995
        %v3098 = vpop.f32.mrb[0].mxu0
        %v3099 = vadd.f32 %v2944, %v3098
        %v3100 = vpop.f32.mrb[0].mxu0
        %v3101 = vpop.f32.mrb[0].mxu0
        %v3102 = vadd.f32 %v2944, %v3101
        %v3103 = vpop.f32.mrb[0].mxu0
        %3104 = vmatprep.mubr.bf16.mxu0 0
        %3105 = vmatmul.mubr.bf16.gmra.mrb[0].mxu0 %v2998
        %v3106 = vpop.f32.mrb[0].mxu0
        %v3107 = vadd.f32 %v2944, %v3106
        %v3108 = vpop.f32.mrb[0].mxu0
        %v3109 = vpop.f32.mrb[0].mxu0
        %v3110 = vpop.f32.mrb[0].mxu0
        %3111 = vdwg.mxu0
        %v3112 = vmax.f32 %v3035, 0.0
        %v3113 = vmax.f32 %v3038, 0.0
        %v3114 = vmax.f32 %v3043, 0.0
        %v3115 = vmax.f32 %v3046, 0.0
        %v3116 = vmax.f32 %v3051, 0.0
        %v3117 = vmax.f32 %v3054, 0.0
        %v3118 = vmax.f32 %v3059, 0.0
        %v3119 = vmax.f32 %v3062, 0.0
        %v3120 = vmax.f32 %v3067, 0.0
        %v3121 = vmax.f32 %v3070, 0.0
        %v3122 = vmax.f32 %v3075, 0.0
        %v3123 = vmax.f32 %v3078, 0.0
        %v3124 = vmax.f32 %v3083, 0.0
        %v3125 = vmax.f32 %v3086, 0.0
        %v3126 = vmax.f32 %v3091, 0.0
        %v3127 = vmax.f32 %v3094, 0.0
        %v3128 = vmax.f32 %v3099, 0.0
        %v3129 = vmax.f32 %v3102, 0.0
        %v3130 = vmax.f32 %v3107, 0.0
        %v3131 = vpack.c.bf16 %v3113, %v3112
        %v3132 = vpack.c.bf16 %v3115, %v3114
        %v3133 = vpack.c.bf16 %v3117, %v3116
        %v3134 = vpack.c.bf16 %v3119, %v3118
        %v3135 = vpack.c.bf16 %v3121, %v3120
        %v3136 = vpack.c.bf16 %v3123, %v3122
        %v3137 = vpack.c.bf16 %v3125, %v3124
        %v3138 = vpack.c.bf16 %v3127, %v3126
        %v3139 = vpack.c.bf16 %v3129, %v3128
        %v3140 = vpack.c.bf16 %v3130, %v3130
        %v3141 = vld [vmem:[%s10] sm:$0xf]
        %v3142 = vld [vmem:[%s10 + $0x4] sm:$0xf]
        %v3143 = vld [vmem:[%s10 + $0x8] sm:$0xf]
        %v3144 = vld [vmem:[%s10 + $0xc] sm:$0xf]
        %v3145 = vld [vmem:[%s10 + $0x10] sm:$0xf]
        %v3146 = vld [vmem:[%s10 + $0x14] sm:$0xf]
        %v3147 = vld [vmem:[%s10 + $0x18] sm:$0xf]
        %v3148 = vld [vmem:[%s10 + $0x1c] sm:$0xf]
        %v3149 = vld [vmem:[%s10 + $0x20] sm:$0xf]
        %v3150 = vld [vmem:[%s10 + $0x24] sm:$0xf]
        %v3151 = vld [vmem:[%s10 + $0x28] sm:$0xf]
        %v3152 = vld [vmem:[%s10 + $0x2c] sm:$0xf]
        %v3153 = vld [vmem:[%s10 + $0x30] sm:$0xf]
        %v3154 = vld [vmem:[%s10 + $0x34] sm:$0xf]
        %v3155 = vld [vmem:[%s10 + $0x38] sm:$0xf]
        %v3156 = vld [vmem:[%s10 + $0x3c] sm:$0xf]
        %v3157 = vld [vmem:[%s12 + $0x9] sm:$0x1]
        %v3159 = vlaneseq
        %v3160 = vshrl.u32 %v3159, 7
        %v3161 = vsub.s32 0, %v3160
        %v3162 = vrot.slane %v3157, %v3161
        %v3180 = vunpack.c.l.b16 %v3141
        %v3181 = vunpack.c.l.b16 %v3142
        %v3182 = vunpack.c.l.b16 %v3143
        %v3183 = vunpack.c.l.b16 %v3144
        %v3184 = vunpack.c.l.b16 %v3145
        %v3185 = vunpack.c.l.b16 %v3146
        %v3186 = vunpack.c.l.b16 %v3147
        %v3187 = vunpack.c.l.b16 %v3148
        %v3188 = vunpack.c.l.b16 %v3149
        %v3189 = vunpack.c.l.b16 %v3150
        %v3190 = vunpack.c.l.b16 %v3151
        %v3191 = vunpack.c.l.b16 %v3152
        %v3192 = vunpack.c.l.b16 %v3153
        %v3193 = vunpack.c.l.b16 %v3154
        %v3194 = vunpack.c.l.b16 %v3155
        %v3195 = vunpack.c.l.b16 %v3156
        %v3196 = vpack.c.b16 %v3181, %v3180
        %v3197 = vpack.c.b16 %v3183, %v3182
        %v3198 = vpack.c.b16 %v3185, %v3184
        %v3199 = vpack.c.b16 %v3187, %v3186
        %v3200 = vpack.c.b16 %v3189, %v3188
        %v3201 = vpack.c.b16 %v3191, %v3190
        %v3202 = vpack.c.b16 %v3193, %v3192
        %v3203 = vpack.c.b16 %v3195, %v3194
        %3212 = vmatprep.subr.bf16.mxu0 0
        %3213 = vmatpush1.bf16.msra.mxu0 %v3196
        %3214 = vmatprep.subr.bf16.mxu0 0
        %3215 = vmatpush1.bf16.msra.mxu0 %v3197
        %3216 = vmatprep.subr.bf16.mxu0 0
        %3217 = vmatpush1.bf16.msra.mxu0 %v3198
        %3218 = vmatprep.subr.bf16.mxu0 0
        %3219 = vmatpush1.bf16.msra.mxu0 %v3199
        %3220 = vmatprep.subr.bf16.mxu0 0
        %3221 = vmatpush1.bf16.msra.mxu0 %v3200
        %3222 = vmatprep.subr.bf16.mxu0 0
        %3223 = vmatpush1.bf16.msra.mxu0 %v3201
        %3224 = vmatprep.subr.bf16.mxu0 0
        %3225 = vmatpush1.bf16.msra.mxu0 %v3202
        %3226 = vmatprep.subr.bf16.mxu0 0
        %3227 = vmatpush1.bf16.msra.mxu0 %v3203
        %3228 = vmatprep.subr.bf16.mxu0 0
        %3229 = vmatpush1.bf16.msra.mxu0 0
        %3230 = vmatprep.subr.bf16.mxu0 0
        %3231 = vmatpush1.bf16.msra.mxu0 0
        %3232 = vmatprep.subr.bf16.mxu0 0
        %3233 = vmatpush1.bf16.msra.mxu0 0
        %3234 = vmatprep.subr.bf16.mxu0 0
        %3235 = vmatpush1.bf16.msra.mxu0 0
        %3236 = vmatprep.subr.bf16.mxu0 0
        %3237 = vmatpush1.bf16.msra.mxu0 0
        %3238 = vmatprep.subr.bf16.mxu0 0
        %3239 = vmatpush1.bf16.msra.mxu0 0
        %3240 = vmatprep.subr.bf16.mxu0 0
        %3241 = vmatpush1.bf16.msra.mxu0 0
        %3242 = vmatprep.subr.bf16.mxu0 0
        %3243 = vmatpush1.bf16.msra.mxu0 0
        %3244 = vmatprep.mubr.bf16.mxu0 0
        %3245 = vmatmul.mubr.bf16.gmra.mrb[0].mxu0 %v3131
        %v3246 = vpop.f32.mrb[0].mxu0
        %v3247 = vadd.f32 %v3162, %v3246
        %v3248 = vpop.f32.mrb[0].mxu0
        %v3249 = vpop.f32.mrb[0].mxu0
        %v3250 = vadd.f32 %v3162, %v3249
        %v3251 = vpop.f32.mrb[0].mxu0
        %3252 = vmatprep.mubr.bf16.mxu0 0
        %3253 = vmatmul.mubr.bf16.gmra.mrb[0].mxu0 %v3132
        %v3254 = vpop.f32.mrb[0].mxu0
        %v3255 = vadd.f32 %v3162, %v3254
        %v3256 = vpop.f32.mrb[0].mxu0
        %v3257 = vpop.f32.mrb[0].mxu0
        %v3258 = vadd.f32 %v3162, %v3257
        %v3259 = vpop.f32.mrb[0].mxu0
        %3260 = vmatprep.mubr.bf16.mxu0 0
        %3261 = vmatmul.mubr.bf16.gmra.mrb[0].mxu0 %v3133
        %v3262 = vpop.f32.mrb[0].mxu0
        %v3263 = vadd.f32 %v3162, %v3262
        %v3264 = vpop.f32.mrb[0].mxu0
        %v3265 = vpop.f32.mrb[0].mxu0
        %v3266 = vadd.f32 %v3162, %v3265
        %v3267 = vpop.f32.mrb[0].mxu0
        %3268 = vmatprep.mubr.bf16.mxu0 0
        %3269 = vmatmul.mubr.bf16.gmra.mrb[0].mxu0 %v3134
        %v3270 = vpop.f32.mrb[0].mxu0
        %v3271 = vadd.f32 %v3162, %v3270
        %v3272 = vpop.f32.mrb[0].mxu0
        %v3273 = vpop.f32.mrb[0].mxu0
        %v3274 = vadd.f32 %v3162, %v3273
        %v3275 = vpop.f32.mrb[0].mxu0
        %3276 = vmatprep.mubr.bf16.mxu0 0
        %3277 = vmatmul.mubr.bf16.gmra.mrb[0].mxu0 %v3135
        %v3278 = vpop.f32.mrb[0].mxu0
        %v3279 = vadd.f32 %v3162, %v3278
        %v3280 = vpop.f32.mrb[0].mxu0
        %v3281 = vpop.f32.mrb[0].mxu0
        %v3282 = vadd.f32 %v3162, %v3281
        %v3283 = vpop.f32.mrb[0].mxu0
        %3284 = vmatprep.mubr.bf16.mxu0 0
        %3285 = vmatmul.mubr.bf16.gmra.mrb[0].mxu0 %v3136
        %v3286 = vpop.f32.mrb[0].mxu0
        %v3287 = vadd.f32 %v3162, %v3286
        %v3288 = vpop.f32.mrb[0].mxu0
        %v3289 = vpop.f32.mrb[0].mxu0
        %v3290 = vadd.f32 %v3162, %v3289
        %v3291 = vpop.f32.mrb[0].mxu0
        %3292 = vmatprep.mubr.bf16.mxu0 0
        %3293 = vmatmul.mubr.bf16.gmra.mrb[0].mxu0 %v3137
        %v3294 = vpop.f32.mrb[0].mxu0
        %v3295 = vadd.f32 %v3162, %v3294
        %v3296 = vpop.f32.mrb[0].mxu0
        %v3297 = vpop.f32.mrb[0].mxu0
        %v3298 = vadd.f32 %v3162, %v3297
        %v3299 = vpop.f32.mrb[0].mxu0
        %3300 = vmatprep.mubr.bf16.mxu0 0
        %3301 = vmatmul.mubr.bf16.gmra.mrb[0].mxu0 %v3138
        %v3302 = vpop.f32.mrb[0].mxu0
        %v3303 = vadd.f32 %v3162, %v3302
        %v3304 = vpop.f32.mrb[0].mxu0
        %v3305 = vpop.f32.mrb[0].mxu0
        %v3306 = vadd.f32 %v3162, %v3305
        %v3307 = vpop.f32.mrb[0].mxu0
        %3308 = vmatprep.mubr.bf16.mxu0 0
        %3309 = vmatmul.mubr.bf16.gmra.mrb[0].mxu0 %v3139
        %v3310 = vpop.f32.mrb[0].mxu0
        %v3311 = vadd.f32 %v3162, %v3310
        %v3312 = vpop.f32.mrb[0].mxu0
        %v3313 = vpop.f32.mrb[0].mxu0
        %v3314 = vadd.f32 %v3162, %v3313
        %v3315 = vpop.f32.mrb[0].mxu0
        %3316 = vmatprep.mubr.bf16.mxu0 0
        %3317 = vmatmul.mubr.bf16.gmra.mrb[0].mxu0 %v3140
        %v3318 = vpop.f32.mrb[0].mxu0
        %v3319 = vadd.f32 %v3162, %v3318
        %v3320 = vpop.f32.mrb[0].mxu0
        %v3321 = vpop.f32.mrb[0].mxu0
        %v3322 = vpop.f32.mrb[0].mxu0
        %3323 = vdwg.mxu0
        %v3324 = vmax.f32 %v3247, 0.0
        %v3325 = vmax.f32 %v3250, 0.0
        %v3326 = vmax.f32 %v3255, 0.0
        %v3327 = vmax.f32 %v3258, 0.0
        %v3328 = vmax.f32 %v3263, 0.0
        %v3329 = vmax.f32 %v3266, 0.0
        %v3330 = vmax.f32 %v3271, 0.0
        %v3331 = vmax.f32 %v3274, 0.0
        %v3332 = vmax.f32 %v3279, 0.0
        %v3333 = vmax.f32 %v3282, 0.0
        %v3334 = vmax.f32 %v3287, 0.0
        %v3335 = vmax.f32 %v3290, 0.0
        %v3336 = vmax.f32 %v3295, 0.0
        %v3337 = vmax.f32 %v3298, 0.0
        %v3338 = vmax.f32 %v3303, 0.0
        %v3339 = vmax.f32 %v3306, 0.0
        %v3340 = vmax.f32 %v3311, 0.0
        %v3341 = vmax.f32 %v3314, 0.0
        %v3342 = vmax.f32 %v3319, 0.0
        %v3343 = vpack.c.bf16 %v3325, %v3324
        %v3344 = vpack.c.bf16 %v3327, %v3326
        %v3345 = vpack.c.bf16 %v3329, %v3328
        %v3346 = vpack.c.bf16 %v3331, %v3330
        %v3347 = vpack.c.bf16 %v3333, %v3332
        %v3348 = vpack.c.bf16 %v3335, %v3334
        %v3349 = vpack.c.bf16 %v3337, %v3336
        %v3350 = vpack.c.bf16 %v3339, %v3338
        %v3351 = vpack.c.bf16 %v3341, %v3340
        %v3352 = vpack.c.bf16 %v3342, %v3342
        %v3353 = vld [vmem:[%s11] sm:$0xff]
        %v3354 = vld [vmem:[%s11 + $0x8] sm:$0xff]
        %v3355 = vld [vmem:[%s11 + $0x10] sm:$0xf]
        %v3356 = vld [vmem:[%s11 + $0x14] sm:$0xff]
        %v3357 = vld [vmem:[%s11 + $0x1c] sm:$0xff]
        %v3358 = vld [vmem:[%s11 + $0x24] sm:$0xf]
        %v3359 = vld [vmem:[%s11 + $0x28] sm:$0xff]
        %v3360 = vld [vmem:[%s11 + $0x30] sm:$0xff]
        %v3361 = vld [vmem:[%s11 + $0x38] sm:$0xf]
        %v3362 = vld [vmem:[%s11 + $0x3c] sm:$0xff]
        %v3363 = vld [vmem:[%s11 + $0x44] sm:$0xff]
        %v3364 = vld [vmem:[%s11 + $0x4c] sm:$0xf]
        %v3365 = vld [vmem:[%s11 + $0x50] sm:$0xff]
        %v3366 = vld [vmem:[%s11 + $0x58] sm:$0xff]
        %v3367 = vld [vmem:[%s11 + $0x60] sm:$0xf]
        %v3368 = vld [vmem:[%s11 + $0x64] sm:$0xff]
        %v3369 = vld [vmem:[%s11 + $0x6c] sm:$0xff]
        %v3370 = vld [vmem:[%s11 + $0x74] sm:$0xf]
        %v3371 = vld [vmem:[%s11 + $0x78] sm:$0xff]
        %v3372 = vld [vmem:[%s11 + $0x80] sm:$0xff]
        %v3373 = vld [vmem:[%s11 + $0x88] sm:$0xf]
        %v3374 = vld [vmem:[%s11 + $0x8c] sm:$0xff]
        %v3375 = vld [vmem:[%s11 + $0x94] sm:$0xff]
        %v3376 = vld [vmem:[%s11 + $0x9c] sm:$0xf]
        %v3377 = vld [vmem:[%s11 + $0xa0] sm:$0xff]
        %v3378 = vld [vmem:[%s11 + $0xa8] sm:$0xff]
        %v3379 = vld [vmem:[%s11 + $0xb0] sm:$0xf]
        %v3380 = vld [vmem:[%s11 + $0xb4] sm:$0xff]
        %v3381 = vld [vmem:[%s11 + $0xbc] sm:$0xff]
        %v3382 = vld [vmem:[%s11 + $0xc4] sm:$0xf]
        %v3383 = vld [vmem:[%s11 + $0xc8] sm:$0xff]
        %v3384 = vld [vmem:[%s11 + $0xd0] sm:$0xff]
        %v3385 = vld [vmem:[%s11 + $0xd8] sm:$0xf]
        %v3386 = vld [vmem:[%s11 + $0xdc] sm:$0xff]
        %v3387 = vld [vmem:[%s11 + $0xe4] sm:$0xff]
        %v3388 = vld [vmem:[%s11 + $0xec] sm:$0xf]
        %v3389 = vld [vmem:[%s11 + $0xf0] sm:$0xff]
        %v3390 = vld [vmem:[%s11 + $0xf8] sm:$0xff]
        %v3391 = vld [vmem:[%s11 + $0x100] sm:$0xf]
        %v3392 = vld [vmem:[%s11 + $0x104] sm:$0xff]
        %v3393 = vld [vmem:[%s11 + $0x10c] sm:$0xff]
        %v3394 = vld [vmem:[%s11 + $0x114] sm:$0xf]
        %v3395 = vld [vmem:[%s11 + $0x118] sm:$0xff]
        %v3396 = vld [vmem:[%s11 + $0x120] sm:$0xff]
        %v3397 = vld [vmem:[%s11 + $0x128] sm:$0xf]
        %v3398 = vld [vmem:[%s11 + $0x12c] sm:$0xff]
        %v3399 = vld [vmem:[%s11 + $0x134] sm:$0xff]
        %v3400 = vld [vmem:[%s11 + $0x13c] sm:$0xf]
        %v3401 = vld [vmem:[%s12 + $0xa] sm:$0x1f]
        %v3403 = vlaneseq
        %v3404 = vshrl.u32 %v3403, 7
        %v3405 = vsub.s32 0, %v3404
        %v3406 = vrot.slane %v3401, %v3405
        %v3407 = vlaneseq
        %v3408 = vshrl.u32 %v3407, 7
        %v3409 = vsub.s32 1, %v3408
        %v3410 = vrot.slane %v3401, %v3409
        %v3411 = vlaneseq
        %v3412 = vshrl.u32 %v3411, 7
        %v3413 = vsub.s32 2, %v3412
        %v3414 = vrot.slane %v3401, %v3413
        %v3415 = vlaneseq
        %v3416 = vshrl.u32 %v3415, 7
        %v3417 = vsub.s32 3, %v3416
        %v3418 = vrot.slane %v3401, %v3417
        %v3419 = vlaneseq
        %v3420 = vshrl.u32 %v3419, 7
        %v3421 = vsub.s32 4, %v3420
        %v3422 = vrot.slane %v3401, %v3421
        %v3476 = vunpack.c.l.b16 %v3353
        %v3477 = vunpack.c.h.b16 %v3353
        %v3478 = vunpack.c.l.b16 %v3354
        %v3479 = vunpack.c.h.b16 %v3354
        %v3480 = vunpack.c.l.b16 %v3355
        %v3481 = vunpack.c.l.b16 %v3356
        %v3482 = vunpack.c.h.b16 %v3356
        %v3483 = vunpack.c.l.b16 %v3357
        %v3484 = vunpack.c.h.b16 %v3357
        %v3485 = vunpack.c.l.b16 %v3358
        %v3486 = vunpack.c.l.b16 %v3359
        %v3487 = vunpack.c.h.b16 %v3359
        %v3488 = vunpack.c.l.b16 %v3360
        %v3489 = vunpack.c.h.b16 %v3360
        %v3490 = vunpack.c.l.b16 %v3361
        %v3491 = vunpack.c.l.b16 %v3362
        %v3492 = vunpack.c.h.b16 %v3362
        %v3493 = vunpack.c.l.b16 %v3363
        %v3494 = vunpack.c.h.b16 %v3363
        %v3495 = vunpack.c.l.b16 %v3364
        %v3496 = vunpack.c.l.b16 %v3365
        %v3497 = vunpack.c.h.b16 %v3365
        %v3498 = vunpack.c.l.b16 %v3366
        %v3499 = vunpack.c.h.b16 %v3366
        %v3500 = vunpack.c.l.b16 %v3367
        %v3501 = vunpack.c.l.b16 %v3368
        %v3502 = vunpack.c.h.b16 %v3368
        %v3503 = vunpack.c.l.b16 %v3369
        %v3504 = vunpack.c.h.b16 %v3369
        %v3505 = vunpack.c.l.b16 %v3370
        %v3506 = vunpack.c.l.b16 %v3371
        %v3507 = vunpack.c.h.b16 %v3371
        %v3508 = vunpack.c.l.b16 %v3372
        %v3509 = vunpack.c.h.b16 %v3372
        %v3510 = vunpack.c.l.b16 %v3373
        %v3511 = vunpack.c.l.b16 %v3374
        %v3512 = vunpack.c.h.b16 %v3374
        %v3513 = vunpack.c.l.b16 %v3375
        %v3514 = vunpack.c.h.b16 %v3375
        %v3515 = vunpack.c.l.b16 %v3376
        %v3516 = vunpack.c.l.b16 %v3377
        %v3517 = vunpack.c.h.b16 %v3377
        %v3518 = vunpack.c.l.b16 %v3378
        %v3519 = vunpack.c.h.b16 %v3378
        %v3520 = vunpack.c.l.b16 %v3379
        %v3521 = vunpack.c.l.b16 %v3380
        %v3522 = vunpack.c.h.b16 %v3380
        %v3523 = vunpack.c.l.b16 %v3381
        %v3524 = vunpack.c.h.b16 %v3381
        %v3525 = vunpack.c.l.b16 %v3382
        %v3526 = vunpack.c.l.b16 %v3383
        %v3527 = vunpack.c.h.b16 %v3383
        %v3528 = vunpack.c.l.b16 %v3384
        %v3529 = vunpack.c.h.b16 %v3384
        %v3530 = vunpack.c.l.b16 %v3385
        %v3531 = vunpack.c.l.b16 %v3386
        %v3532 = vunpack.c.h.b16 %v3386
        %v3533 = vunpack.c.l.b16 %v3387
        %v3534 = vunpack.c.h.b16 %v3387
        %v3535 = vunpack.c.l.b16 %v3388
        %v3536 = vunpack.c.l.b16 %v3389
        %v3537 = vunpack.c.h.b16 %v3389
        %v3538 = vunpack.c.l.b16 %v3390
        %v3539 = vunpack.c.h.b16 %v3390
        %v3540 = vunpack.c.l.b16 %v3391
        %v3541 = vunpack.c.l.b16 %v3392
        %v3542 = vunpack.c.h.b16 %v3392
        %v3543 = vunpack.c.l.b16 %v3393
        %v3544 = vunpack.c.h.b16 %v3393
        %v3545 = vunpack.c.l.b16 %v3394
        %v3546 = vunpack.c.l.b16 %v3395
        %v3547 = vunpack.c.h.b16 %v3395
        %v3548 = vunpack.c.l.b16 %v3396
        %v3549 = vunpack.c.h.b16 %v3396
        %v3550 = vunpack.c.l.b16 %v3397
        %v3551 = vunpack.c.l.b16 %v3398
        %v3552 = vunpack.c.h.b16 %v3398
        %v3553 = vunpack.c.l.b16 %v3399
        %v3554 = vunpack.c.h.b16 %v3399
        %v3555 = vunpack.c.l.b16 %v3400
        %v3556 = vpack.c.b16 %v3481, %v3476
        %v3557 = vpack.c.b16 %v3482, %v3477
        %v3558 = vpack.c.b16 %v3483, %v3478
        %v3559 = vpack.c.b16 %v3484, %v3479
        %v3560 = vpack.c.b16 %v3485, %v3480
        %v3561 = vpack.c.b16 %v3491, %v3486
        %v3562 = vpack.c.b16 %v3492, %v3487
        %v3563 = vpack.c.b16 %v3493, %v3488
        %v3564 = vpack.c.b16 %v3494, %v3489
        %v3565 = vpack.c.b16 %v3495, %v3490
        %v3566 = vpack.c.b16 %v3501, %v3496
        %v3567 = vpack.c.b16 %v3502, %v3497
        %v3568 = vpack.c.b16 %v3503, %v3498
        %v3569 = vpack.c.b16 %v3504, %v3499
        %v3570 = vpack.c.b16 %v3505, %v3500
        %v3571 = vpack.c.b16 %v3511, %v3506
        %v3572 = vpack.c.b16 %v3512, %v3507
        %v3573 = vpack.c.b16 %v3513, %v3508
        %v3574 = vpack.c.b16 %v3514, %v3509
        %v3575 = vpack.c.b16 %v3515, %v3510
        %v3576 = vpack.c.b16 %v3521, %v3516
        %v3577 = vpack.c.b16 %v3522, %v3517
        %v3578 = vpack.c.b16 %v3523, %v3518
        %v3579 = vpack.c.b16 %v3524, %v3519
        %v3580 = vpack.c.b16 %v3525, %v3520
        %v3581 = vpack.c.b16 %v3531, %v3526
        %v3582 = vpack.c.b16 %v3532, %v3527
        %v3583 = vpack.c.b16 %v3533, %v3528
        %v3584 = vpack.c.b16 %v3534, %v3529
        %v3585 = vpack.c.b16 %v3535, %v3530
        %v3586 = vpack.c.b16 %v3541, %v3536
        %v3587 = vpack.c.b16 %v3542, %v3537
        %v3588 = vpack.c.b16 %v3543, %v3538
        %v3589 = vpack.c.b16 %v3544, %v3539
        %v3590 = vpack.c.b16 %v3545, %v3540
        %v3591 = vpack.c.b16 %v3551, %v3546
        %v3592 = vpack.c.b16 %v3552, %v3547
        %v3593 = vpack.c.b16 %v3553, %v3548
        %v3594 = vpack.c.b16 %v3554, %v3549
        %v3595 = vpack.c.b16 %v3555, %v3550
        %3636 = vmatprep.subr.bf16.mxu0 %v3557
        %3637 = vmatpush1.bf16.msra.mxu0 %v3556
        %3638 = vmatprep.subr.bf16.mxu0 %v3562
        %3639 = vmatpush1.bf16.msra.mxu0 %v3561
        %3640 = vmatprep.subr.bf16.mxu0 %v3567
        %3641 = vmatpush1.bf16.msra.mxu0 %v3566
        %3642 = vmatprep.subr.bf16.mxu0 %v3572
        %3643 = vmatpush1.bf16.msra.mxu0 %v3571
        %3644 = vmatprep.subr.bf16.mxu0 %v3577
        %3645 = vmatpush1.bf16.msra.mxu0 %v3576
        %3646 = vmatprep.subr.bf16.mxu0 %v3582
        %3647 = vmatpush1.bf16.msra.mxu0 %v3581
        %3648 = vmatprep.subr.bf16.mxu0 %v3587
        %3649 = vmatpush1.bf16.msra.mxu0 %v3586
        %3650 = vmatprep.subr.bf16.mxu0 %v3592
        %3651 = vmatpush1.bf16.msra.mxu0 %v3591
        %3652 = vmatprep.subr.bf16.mxu0 0
        %3653 = vmatpush1.bf16.msra.mxu0 0
        %3654 = vmatprep.subr.bf16.mxu0 0
        %3655 = vmatpush1.bf16.msra.mxu0 0
        %3656 = vmatprep.subr.bf16.mxu0 0
        %3657 = vmatpush1.bf16.msra.mxu0 0
        %3658 = vmatprep.subr.bf16.mxu0 0
        %3659 = vmatpush1.bf16.msra.mxu0 0
        %3660 = vmatprep.subr.bf16.mxu0 0
        %3661 = vmatpush1.bf16.msra.mxu0 0
        %3662 = vmatprep.subr.bf16.mxu0 0
        %3663 = vmatpush1.bf16.msra.mxu0 0
        %3664 = vmatprep.subr.bf16.mxu0 0
        %3665 = vmatpush1.bf16.msra.mxu0 0
        %3666 = vmatprep.subr.bf16.mxu0 0
        %3667 = vmatpush1.bf16.msra.mxu0 0
        %3668 = vmatprep.mubr.bf16.mxu0 0
        %3669 = vmatmul.mubr.bf16.gmra.mrb[0].mxu0 %v3343
        %v3670 = vpop.f32.mrb[0].mxu0
        %v3671 = vadd.f32 %v3406, %v3670
        %v3672 = vpop.f32.mrb[0].mxu0
        %v3673 = vadd.f32 %v3410, %v3672
        %v3674 = vpop.f32.mrb[0].mxu0
        %v3675 = vadd.f32 %v3406, %v3674
        %v3676 = vpop.f32.mrb[0].mxu0
        %v3677 = vadd.f32 %v3410, %v3676
        %3678 = vmatprep.mubr.bf16.mxu0 0
        %3679 = vmatmul.mubr.bf16.gmra.mrb[0].mxu0 %v3344
        %v3680 = vpop.f32.mrb[0].mxu0
        %v3681 = vadd.f32 %v3406, %v3680
        %v3682 = vpop.f32.mrb[0].mxu0
        %v3683 = vadd.f32 %v3410, %v3682
        %v3684 = vpop.f32.mrb[0].mxu0
        %v3685 = vadd.f32 %v3406, %v3684
        %v3686 = vpop.f32.mrb[0].mxu0
        %v3687 = vadd.f32 %v3410, %v3686
        %3688 = vmatprep.mubr.bf16.mxu0 0
        %3689 = vmatmul.mubr.bf16.gmra.mrb[0].mxu0 %v3345
        %v3690 = vpop.f32.mrb[0].mxu0
        %v3691 = vadd.f32 %v3406, %v3690
        %v3692 = vpop.f32.mrb[0].mxu0
        %v3693 = vadd.f32 %v3410, %v3692
        %v3694 = vpop.f32.mrb[0].mxu0
        %v3695 = vadd.f32 %v3406, %v3694
        %v3696 = vpop.f32.mrb[0].mxu0
        %v3697 = vadd.f32 %v3410, %v3696
        %3698 = vmatprep.mubr.bf16.mxu0 0
        %3699 = vmatmul.mubr.bf16.gmra.mrb[0].mxu0 %v3346
        %v3700 = vpop.f32.mrb[0].mxu0
        %v3701 = vadd.f32 %v3406, %v3700
        %v3702 = vpop.f32.mrb[0].mxu0
        %v3703 = vadd.f32 %v3410, %v3702
        %v3704 = vpop.f32.mrb[0].mxu0
        %v3705 = vadd.f32 %v3406, %v3704
        %v3706 = vpop.f32.mrb[0].mxu0
        %v3707 = vadd.f32 %v3410, %v3706
        %3708 = vmatprep.mubr.bf16.mxu0 0
        %3709 = vmatmul.mubr.bf16.gmra.mrb[0].mxu0 %v3347
        %v3710 = vpop.f32.mrb[0].mxu0
        %v3711 = vadd.f32 %v3406, %v3710
        %v3712 = vpop.f32.mrb[0].mxu0
        %v3713 = vadd.f32 %v3410, %v3712
        %v3714 = vpop.f32.mrb[0].mxu0
        %v3715 = vadd.f32 %v3406, %v3714
        %v3716 = vpop.f32.mrb[0].mxu0
        %v3717 = vadd.f32 %v3410, %v3716
        %3718 = vmatprep.mubr.bf16.mxu0 0
        %3719 = vmatmul.mubr.bf16.gmra.mrb[0].mxu0 %v3348
        %v3720 = vpop.f32.mrb[0].mxu0
        %v3721 = vadd.f32 %v3406, %v3720
        %v3722 = vpop.f32.mrb[0].mxu0
        %v3723 = vadd.f32 %v3410, %v3722
        %v3724 = vpop.f32.mrb[0].mxu0
        %v3725 = vadd.f32 %v3406, %v3724
        %v3726 = vpop.f32.mrb[0].mxu0
        %v3727 = vadd.f32 %v3410, %v3726
        %3728 = vmatprep.mubr.bf16.mxu0 0
        %3729 = vmatmul.mubr.bf16.gmra.mrb[0].mxu0 %v3349
        %v3730 = vpop.f32.mrb[0].mxu0
        %v3731 = vadd.f32 %v3406, %v3730
        %v3732 = vpop.f32.mrb[0].mxu0
        %v3733 = vadd.f32 %v3410, %v3732
        %v3734 = vpop.f32.mrb[0].mxu0
        %v3735 = vadd.f32 %v3406, %v3734
        %v3736 = vpop.f32.mrb[0].mxu0
        %v3737 = vadd.f32 %v3410, %v3736
        %3738 = vmatprep.mubr.bf16.mxu0 0
        %3739 = vmatmul.mubr.bf16.gmra.mrb[0].mxu0 %v3350
        %v3740 = vpop.f32.mrb[0].mxu0
        %v3741 = vadd.f32 %v3406, %v3740
        %v3742 = vpop.f32.mrb[0].mxu0
        %v3743 = vadd.f32 %v3410, %v3742
        %v3744 = vpop.f32.mrb[0].mxu0
        %v3745 = vadd.f32 %v3406, %v3744
        %v3746 = vpop.f32.mrb[0].mxu0
        %v3747 = vadd.f32 %v3410, %v3746
        %3748 = vmatprep.mubr.bf16.mxu0 0
        %3749 = vmatmul.mubr.bf16.gmra.mrb[0].mxu0 %v3351
        %v3750 = vpop.f32.mrb[0].mxu0
        %v3751 = vadd.f32 %v3406, %v3750
        %v3752 = vpop.f32.mrb[0].mxu0
        %v3753 = vadd.f32 %v3410, %v3752
        %v3754 = vpop.f32.mrb[0].mxu0
        %v3755 = vadd.f32 %v3406, %v3754
        %v3756 = vpop.f32.mrb[0].mxu0
        %v3757 = vadd.f32 %v3410, %v3756
        %3758 = vmatprep.mubr.bf16.mxu0 0
        %3759 = vmatmul.mubr.bf16.gmra.mrb[0].mxu0 %v3352
        %v3760 = vpop.f32.mrb[0].mxu0
        %v3761 = vadd.f32 %v3406, %v3760
        %v3762 = vpop.f32.mrb[0].mxu0
        %v3763 = vadd.f32 %v3410, %v3762
        %v3764 = vpop.f32.mrb[0].mxu0
        %v3765 = vpop.f32.mrb[0].mxu0
        %3766 = vdwg.mxu0
        %3767 = vmatprep.subr.bf16.mxu0 %v3559
        %3768 = vmatpush1.bf16.msra.mxu0 %v3558
        %3769 = vmatprep.subr.bf16.mxu0 %v3564
        %3770 = vmatpush1.bf16.msra.mxu0 %v3563
        %3771 = vmatprep.subr.bf16.mxu0 %v3569
        %3772 = vmatpush1.bf16.msra.mxu0 %v3568
        %3773 = vmatprep.subr.bf16.mxu0 %v3574
        %3774 = vmatpush1.bf16.msra.mxu0 %v3573
        %3775 = vmatprep.subr.bf16.mxu0 %v3579
        %3776 = vmatpush1.bf16.msra.mxu0 %v3578
        %3777 = vmatprep.subr.bf16.mxu0 %v3584
        %3778 = vmatpush1.bf16.msra.mxu0 %v3583
        %3779 = vmatprep.subr.bf16.mxu0 %v3589
        %3780 = vmatpush1.bf16.msra.mxu0 %v3588
        %3781 = vmatprep.subr.bf16.mxu0 %v3594
        %3782 = vmatpush1.bf16.msra.mxu0 %v3593
        %3783 = vmatprep.subr.bf16.mxu0 0
        %3784 = vmatpush1.bf16.msra.mxu0 0
        %3785 = vmatprep.subr.bf16.mxu0 0
        %3786 = vmatpush1.bf16.msra.mxu0 0
        %3787 = vmatprep.subr.bf16.mxu0 0
        %3788 = vmatpush1.bf16.msra.mxu0 0
        %3789 = vmatprep.subr.bf16.mxu0 0
        %3790 = vmatpush1.bf16.msra.mxu0 0
        %3791 = vmatprep.subr.bf16.mxu0 0
        %3792 = vmatpush1.bf16.msra.mxu0 0
        %3793 = vmatprep.subr.bf16.mxu0 0
        %3794 = vmatpush1.bf16.msra.mxu0 0
        %3795 = vmatprep.subr.bf16.mxu0 0
        %3796 = vmatpush1.bf16.msra.mxu0 0
        %3797 = vmatprep.subr.bf16.mxu0 0
        %3798 = vmatpush1.bf16.msra.mxu0 0
        %3799 = vmatprep.mubr.bf16.mxu0 0
        %3800 = vmatmul.mubr.bf16.gmra.mrb[0].mxu0 %v3343
        %v3801 = vpop.f32.mrb[0].mxu0
        %v3802 = vadd.f32 %v3414, %v3801
        %v3803 = vpop.f32.mrb[0].mxu0
        %v3804 = vadd.f32 %v3418, %v3803
        %v3805 = vpop.f32.mrb[0].mxu0
        %v3806 = vadd.f32 %v3414, %v3805
        %v3807 = vpop.f32.mrb[0].mxu0
        %v3808 = vadd.f32 %v3418, %v3807
        %3809 = vmatprep.mubr.bf16.mxu0 0
        %3810 = vmatmul.mubr.bf16.gmra.mrb[0].mxu0 %v3344
        %v3811 = vpop.f32.mrb[0].mxu0
        %v3812 = vadd.f32 %v3414, %v3811
        %v3813 = vpop.f32.mrb[0].mxu0
        %v3814 = vadd.f32 %v3418, %v3813
        %v3815 = vpop.f32.mrb[0].mxu0
        %v3816 = vadd.f32 %v3414, %v3815
        %v3817 = vpop.f32.mrb[0].mxu0
        %v3818 = vadd.f32 %v3418, %v3817
        %3819 = vmatprep.mubr.bf16.mxu0 0
        %3820 = vmatmul.mubr.bf16.gmra.mrb[0].mxu0 %v3345
        %v3821 = vpop.f32.mrb[0].mxu0
        %v3822 = vadd.f32 %v3414, %v3821
        %v3823 = vpop.f32.mrb[0].mxu0
        %v3824 = vadd.f32 %v3418, %v3823
        %v3825 = vpop.f32.mrb[0].mxu0
        %v3826 = vadd.f32 %v3414, %v3825
        %v3827 = vpop.f32.mrb[0].mxu0
        %v3828 = vadd.f32 %v3418, %v3827
        %3829 = vmatprep.mubr.bf16.mxu0 0
        %3830 = vmatmul.mubr.bf16.gmra.mrb[0].mxu0 %v3346
        %v3831 = vpop.f32.mrb[0].mxu0
        %v3832 = vadd.f32 %v3414, %v3831
        %v3833 = vpop.f32.mrb[0].mxu0
        %v3834 = vadd.f32 %v3418, %v3833
        %v3835 = vpop.f32.mrb[0].mxu0
        %v3836 = vadd.f32 %v3414, %v3835
        %v3837 = vpop.f32.mrb[0].mxu0
        %v3838 = vadd.f32 %v3418, %v3837
        %3839 = vmatprep.mubr.bf16.mxu0 0
        %3840 = vmatmul.mubr.bf16.gmra.mrb[0].mxu0 %v3347
        %v3841 = vpop.f32.mrb[0].mxu0
        %v3842 = vadd.f32 %v3414, %v3841
        %v3843 = vpop.f32.mrb[0].mxu0
        %v3844 = vadd.f32 %v3418, %v3843
        %v3845 = vpop.f32.mrb[0].mxu0
        %v3846 = vadd.f32 %v3414, %v3845
        %v3847 = vpop.f32.mrb[0].mxu0
        %v3848 = vadd.f32 %v3418, %v3847
        %3849 = vmatprep.mubr.bf16.mxu0 0
        %3850 = vmatmul.mubr.bf16.gmra.mrb[0].mxu0 %v3348
        %v3851 = vpop.f32.mrb[0].mxu0
        %v3852 = vadd.f32 %v3414, %v3851
        %v3853 = vpop.f32.mrb[0].mxu0
        %v3854 = vadd.f32 %v3418, %v3853
        %v3855 = vpop.f32.mrb[0].mxu0
        %v3856 = vadd.f32 %v3414, %v3855
        %v3857 = vpop.f32.mrb[0].mxu0
        %v3858 = vadd.f32 %v3418, %v3857
        %3859 = vmatprep.mubr.bf16.mxu0 0
        %3860 = vmatmul.mubr.bf16.gmra.mrb[0].mxu0 %v3349
        %v3861 = vpop.f32.mrb[0].mxu0
        %v3862 = vadd.f32 %v3414, %v3861
        %v3863 = vpop.f32.mrb[0].mxu0
        %v3864 = vadd.f32 %v3418, %v3863
        %v3865 = vpop.f32.mrb[0].mxu0
        %v3866 = vadd.f32 %v3414, %v3865
        %v3867 = vpop.f32.mrb[0].mxu0
        %v3868 = vadd.f32 %v3418, %v3867
        %3869 = vmatprep.mubr.bf16.mxu0 0
        %3870 = vmatmul.mubr.bf16.gmra.mrb[0].mxu0 %v3350
        %v3871 = vpop.f32.mrb[0].mxu0
        %v3872 = vadd.f32 %v3414, %v3871
        %v3873 = vpop.f32.mrb[0].mxu0
        %v3874 = vadd.f32 %v3418, %v3873
        %v3875 = vpop.f32.mrb[0].mxu0
        %v3876 = vadd.f32 %v3414, %v3875
        %v3877 = vpop.f32.mrb[0].mxu0
        %v3878 = vadd.f32 %v3418, %v3877
        %3879 = vmatprep.mubr.bf16.mxu0 0
        %3880 = vmatmul.mubr.bf16.gmra.mrb[0].mxu0 %v3351
        %v3881 = vpop.f32.mrb[0].mxu0
        %v3882 = vadd.f32 %v3414, %v3881
        %v3883 = vpop.f32.mrb[0].mxu0
        %v3884 = vadd.f32 %v3418, %v3883
        %v3885 = vpop.f32.mrb[0].mxu0
        %v3886 = vadd.f32 %v3414, %v3885
        %v3887 = vpop.f32.mrb[0].mxu0
        %v3888 = vadd.f32 %v3418, %v3887
        %3889 = vmatprep.mubr.bf16.mxu0 0
        %3890 = vmatmul.mubr.bf16.gmra.mrb[0].mxu0 %v3352
        %v3891 = vpop.f32.mrb[0].mxu0
        %v3892 = vadd.f32 %v3414, %v3891
        %v3893 = vpop.f32.mrb[0].mxu0
        %v3894 = vadd.f32 %v3418, %v3893
        %v3895 = vpop.f32.mrb[0].mxu0
        %v3896 = vpop.f32.mrb[0].mxu0
        %3897 = vdwg.mxu0
        %3898 = vmatprep.subr.bf16.mxu0 0
        %3899 = vmatpush1.bf16.msra.mxu0 %v3560
        %3900 = vmatprep.subr.bf16.mxu0 0
        %3901 = vmatpush1.bf16.msra.mxu0 %v3565
        %3902 = vmatprep.subr.bf16.mxu0 0
        %3903 = vmatpush1.bf16.msra.mxu0 %v3570
        %3904 = vmatprep.subr.bf16.mxu0 0
        %3905 = vmatpush1.bf16.msra.mxu0 %v3575
        %3906 = vmatprep.subr.bf16.mxu0 0
        %3907 = vmatpush1.bf16.msra.mxu0 %v3580
        %3908 = vmatprep.subr.bf16.mxu0 0
        %3909 = vmatpush1.bf16.msra.mxu0 %v3585
        %3910 = vmatprep.subr.bf16.mxu0 0
        %3911 = vmatpush1.bf16.msra.mxu0 %v3590
        %3912 = vmatprep.subr.bf16.mxu0 0
        %3913 = vmatpush1.bf16.msra.mxu0 %v3595
        %3914 = vmatprep.subr.bf16.mxu0 0
        %3915 = vmatpush1.bf16.msra.mxu0 0
        %3916 = vmatprep.subr.bf16.mxu0 0
        %3917 = vmatpush1.bf16.msra.mxu0 0
        %3918 = vmatprep.subr.bf16.mxu0 0
        %3919 = vmatpush1.bf16.msra.mxu0 0
        %3920 = vmatprep.subr.bf16.mxu0 0
        %3921 = vmatpush1.bf16.msra.mxu0 0
        %3922 = vmatprep.subr.bf16.mxu0 0
        %3923 = vmatpush1.bf16.msra.mxu0 0
        %3924 = vmatprep.subr.bf16.mxu0 0
        %3925 = vmatpush1.bf16.msra.mxu0 0
        %3926 = vmatprep.subr.bf16.mxu0 0
        %3927 = vmatpush1.bf16.msra.mxu0 0
        %3928 = vmatprep.subr.bf16.mxu0 0
        %3929 = vmatpush1.bf16.msra.mxu0 0
        %3930 = vmatprep.mubr.bf16.mxu0 0
        %3931 = vmatmul.mubr.bf16.gmra.mrb[0].mxu0 %v3343
        %v3932 = vpop.f32.mrb[0].mxu0
        %v3933 = vadd.f32 %v3422, %v3932
        %v3934 = vpop.f32.mrb[0].mxu0
        %v3935 = vpop.f32.mrb[0].mxu0
        %v3936 = vadd.f32 %v3422, %v3935
        %v3937 = vpop.f32.mrb[0].mxu0
        %3938 = vmatprep.mubr.bf16.mxu0 0
        %3939 = vmatmul.mubr.bf16.gmra.mrb[0].mxu0 %v3344
        %v3940 = vpop.f32.mrb[0].mxu0
        %v3941 = vadd.f32 %v3422, %v3940
        %v3942 = vpop.f32.mrb[0].mxu0
        %v3943 = vpop.f32.mrb[0].mxu0
        %v3944 = vadd.f32 %v3422, %v3943
        %v3945 = vpop.f32.mrb[0].mxu0
        %3946 = vmatprep.mubr.bf16.mxu0 0
        %3947 = vmatmul.mubr.bf16.gmra.mrb[0].mxu0 %v3345
        %v3948 = vpop.f32.mrb[0].mxu0
        %v3949 = vadd.f32 %v3422, %v3948
        %v3950 = vpop.f32.mrb[0].mxu0
        %v3951 = vpop.f32.mrb[0].mxu0
        %v3952 = vadd.f32 %v3422, %v3951
        %v3953 = vpop.f32.mrb[0].mxu0
        %3954 = vmatprep.mubr.bf16.mxu0 0
        %3955 = vmatmul.mubr.bf16.gmra.mrb[0].mxu0 %v3346
        %v3956 = vpop.f32.mrb[0].mxu0
        %v3957 = vadd.f32 %v3422, %v3956
        %v3958 = vpop.f32.mrb[0].mxu0
        %v3959 = vpop.f32.mrb[0].mxu0
        %v3960 = vadd.f32 %v3422, %v3959
        %v3961 = vpop.f32.mrb[0].mxu0
        %3962 = vmatprep.mubr.bf16.mxu0 0
        %3963 = vmatmul.mubr.bf16.gmra.mrb[0].mxu0 %v3347
        %v3964 = vpop.f32.mrb[0].mxu0
        %v3965 = vadd.f32 %v3422, %v3964
        %v3966 = vpop.f32.mrb[0].mxu0
        %v3967 = vpop.f32.mrb[0].mxu0
        %v3968 = vadd.f32 %v3422, %v3967
        %v3969 = vpop.f32.mrb[0].mxu0
        %3970 = vmatprep.mubr.bf16.mxu0 0
        %3971 = vmatmul.mubr.bf16.gmra.mrb[0].mxu0 %v3348
        %v3972 = vpop.f32.mrb[0].mxu0
        %v3973 = vadd.f32 %v3422, %v3972
        %v3974 = vpop.f32.mrb[0].mxu0
        %v3975 = vpop.f32.mrb[0].mxu0
        %v3976 = vadd.f32 %v3422, %v3975
        %v3977 = vpop.f32.mrb[0].mxu0
        %3978 = vmatprep.mubr.bf16.mxu0 0
        %3979 = vmatmul.mubr.bf16.gmra.mrb[0].mxu0 %v3349
        %v3980 = vpop.f32.mrb[0].mxu0
        %v3981 = vadd.f32 %v3422, %v3980
        %v3982 = vpop.f32.mrb[0].mxu0
        %v3983 = vpop.f32.mrb[0].mxu0
        %v3984 = vadd.f32 %v3422, %v3983
        %v3985 = vpop.f32.mrb[0].mxu0
        %3986 = vmatprep.mubr.bf16.mxu0 0
        %3987 = vmatmul.mubr.bf16.gmra.mrb[0].mxu0 %v3350
        %v3988 = vpop.f32.mrb[0].mxu0
        %v3989 = vadd.f32 %v3422, %v3988
        %v3990 = vpop.f32.mrb[0].mxu0
        %v3991 = vpop.f32.mrb[0].mxu0
        %v3992 = vadd.f32 %v3422, %v3991
        %v3993 = vpop.f32.mrb[0].mxu0
        %3994 = vmatprep.mubr.bf16.mxu0 0
        %3995 = vmatmul.mubr.bf16.gmra.mrb[0].mxu0 %v3351
        %v3996 = vpop.f32.mrb[0].mxu0
        %v3997 = vadd.f32 %v3422, %v3996
        %v3998 = vpop.f32.mrb[0].mxu0
        %v3999 = vpop.f32.mrb[0].mxu0
        %v4000 = vadd.f32 %v3422, %v3999
        %v4001 = vpop.f32.mrb[0].mxu0
        %4002 = vmatprep.mubr.bf16.mxu0 0
        %4003 = vmatmul.mubr.bf16.gmra.mrb[0].mxu0 %v3352
        %v4004 = vpop.f32.mrb[0].mxu0
        %v4005 = vadd.f32 %v3422, %v4004
        %v4006 = vpop.f32.mrb[0].mxu0
        %v4007 = vpop.f32.mrb[0].mxu0
        %v4008 = vpop.f32.mrb[0].mxu0
        %4009 = vdwg.mxu0
        %v4010 = vpack.c.bf16 %v3675, %v3671
        %v4011 = vpack.c.bf16 %v3677, %v3673
        %v4012 = vpack.c.bf16 %v3806, %v3802
        %v4013 = vpack.c.bf16 %v3808, %v3804
        %v4014 = vpack.c.bf16 %v3936, %v3933
        %v4015 = vpack.c.bf16 %v3685, %v3681
        %v4016 = vpack.c.bf16 %v3687, %v3683
        %v4017 = vpack.c.bf16 %v3816, %v3812
        %v4018 = vpack.c.bf16 %v3818, %v3814
        %v4019 = vpack.c.bf16 %v3944, %v3941
        %v4020 = vpack.c.bf16 %v3695, %v3691
        %v4021 = vpack.c.bf16 %v3697, %v3693
        %v4022 = vpack.c.bf16 %v3826, %v3822
        %v4023 = vpack.c.bf16 %v3828, %v3824
        %v4024 = vpack.c.bf16 %v3952, %v3949
        %v4025 = vpack.c.bf16 %v3705, %v3701
        %v4026 = vpack.c.bf16 %v3707, %v3703
        %v4027 = vpack.c.bf16 %v3836, %v3832
        %v4028 = vpack.c.bf16 %v3838, %v3834
        %v4029 = vpack.c.bf16 %v3960, %v3957
        %v4030 = vpack.c.bf16 %v3715, %v3711
        %v4031 = vpack.c.bf16 %v3717, %v3713
        %v4032 = vpack.c.bf16 %v3846, %v3842
        %v4033 = vpack.c.bf16 %v3848, %v3844
        %v4034 = vpack.c.bf16 %v3968, %v3965
        %v4035 = vpack.c.bf16 %v3725, %v3721
        %v4036 = vpack.c.bf16 %v3727, %v3723
        %v4037 = vpack.c.bf16 %v3856, %v3852
        %v4038 = vpack.c.bf16 %v3858, %v3854
        %v4039 = vpack.c.bf16 %v3976, %v3973
        %v4040 = vpack.c.bf16 %v3735, %v3731
        %v4041 = vpack.c.bf16 %v3737, %v3733
        %v4042 = vpack.c.bf16 %v3866, %v3862
        %v4043 = vpack.c.bf16 %v3868, %v3864
        %v4044 = vpack.c.bf16 %v3984, %v3981
        %v4045 = vpack.c.bf16 %v3745, %v3741
        %v4046 = vpack.c.bf16 %v3747, %v3743
        %v4047 = vpack.c.bf16 %v3876, %v3872
        %v4048 = vpack.c.bf16 %v3878, %v3874
        %v4049 = vpack.c.bf16 %v3992, %v3989
        %v4050 = vpack.c.bf16 %v3755, %v3751
        %v4051 = vpack.c.bf16 %v3757, %v3753
        %v4052 = vpack.c.bf16 %v3886, %v3882
        %v4053 = vpack.c.bf16 %v3888, %v3884
        %v4054 = vpack.c.bf16 %v4000, %v3997
        %v4055 = vpack.c.bf16 %v3761, %v3761
        %v4056 = vpack.c.bf16 %v3763, %v3763
        %v4057 = vpack.c.bf16 %v3892, %v3892
        %v4058 = vpack.c.bf16 %v3894, %v3894
        %v4059 = vpack.c.bf16 %v4005, %v4005
        %v4110 = vunpack.c.l.b16 %v4010
        %v4111 = vunpack.c.l.b16 %v4011
        %v4112 = vunpack.c.l.b16 %v4012
        %v4113 = vunpack.c.l.b16 %v4013
        %v4114 = vunpack.c.l.b16 %v4014
        %v4115 = vunpack.c.h.b16 %v4010
        %v4116 = vunpack.c.h.b16 %v4011
        %v4117 = vunpack.c.h.b16 %v4012
        %v4118 = vunpack.c.h.b16 %v4013
        %v4119 = vunpack.c.h.b16 %v4014
        %v4120 = vunpack.c.l.b16 %v4015
        %v4121 = vunpack.c.l.b16 %v4016
        %v4122 = vunpack.c.l.b16 %v4017
        %v4123 = vunpack.c.l.b16 %v4018
        %v4124 = vunpack.c.l.b16 %v4019
        %v4125 = vunpack.c.h.b16 %v4015
        %v4126 = vunpack.c.h.b16 %v4016
        %v4127 = vunpack.c.h.b16 %v4017
        %v4128 = vunpack.c.h.b16 %v4018
        %v4129 = vunpack.c.h.b16 %v4019
        %v4130 = vunpack.c.l.b16 %v4020
        %v4131 = vunpack.c.l.b16 %v4021
        %v4132 = vunpack.c.l.b16 %v4022
        %v4133 = vunpack.c.l.b16 %v4023
        %v4134 = vunpack.c.l.b16 %v4024
        %v4135 = vunpack.c.h.b16 %v4020
        %v4136 = vunpack.c.h.b16 %v4021
        %v4137 = vunpack.c.h.b16 %v4022
        %v4138 = vunpack.c.h.b16 %v4023
        %v4139 = vunpack.c.h.b16 %v4024
        %v4140 = vunpack.c.l.b16 %v4025
        %v4141 = vunpack.c.l.b16 %v4026
        %v4142 = vunpack.c.l.b16 %v4027
        %v4143 = vunpack.c.l.b16 %v4028
        %v4144 = vunpack.c.l.b16 %v4029
        %v4145 = vunpack.c.h.b16 %v4025
        %v4146 = vunpack.c.h.b16 %v4026
        %v4147 = vunpack.c.h.b16 %v4027
        %v4148 = vunpack.c.h.b16 %v4028
        %v4149 = vunpack.c.h.b16 %v4029
        %v4150 = vunpack.c.l.b16 %v4030
        %v4151 = vunpack.c.l.b16 %v4031
        %v4152 = vunpack.c.l.b16 %v4032
        %v4153 = vunpack.c.l.b16 %v4033
        %v4154 = vunpack.c.l.b16 %v4034
        %v4155 = vunpack.c.h.b16 %v4030
        %v4156 = vunpack.c.h.b16 %v4031
        %v4157 = vunpack.c.h.b16 %v4032
        %v4158 = vunpack.c.h.b16 %v4033
        %v4159 = vunpack.c.h.b16 %v4034
        %v4160 = vunpack.c.l.b16 %v4035
        %v4161 = vunpack.c.l.b16 %v4036
        %v4162 = vunpack.c.l.b16 %v4037
        %v4163 = vunpack.c.l.b16 %v4038
        %v4164 = vunpack.c.l.b16 %v4039
        %v4165 = vunpack.c.h.b16 %v4035
        %v4166 = vunpack.c.h.b16 %v4036
        %v4167 = vunpack.c.h.b16 %v4037
        %v4168 = vunpack.c.h.b16 %v4038
        %v4169 = vunpack.c.h.b16 %v4039
        %v4170 = vunpack.c.l.b16 %v4040
        %v4171 = vunpack.c.l.b16 %v4041
        %v4172 = vunpack.c.l.b16 %v4042
        %v4173 = vunpack.c.l.b16 %v4043
        %v4174 = vunpack.c.l.b16 %v4044
        %v4175 = vunpack.c.h.b16 %v4040
        %v4176 = vunpack.c.h.b16 %v4041
        %v4177 = vunpack.c.h.b16 %v4042
        %v4178 = vunpack.c.h.b16 %v4043
        %v4179 = vunpack.c.h.b16 %v4044
        %v4180 = vunpack.c.l.b16 %v4045
        %v4181 = vunpack.c.l.b16 %v4046
        %v4182 = vunpack.c.l.b16 %v4047
        %v4183 = vunpack.c.l.b16 %v4048
        %v4184 = vunpack.c.l.b16 %v4049
        %v4185 = vunpack.c.h.b16 %v4045
        %v4186 = vunpack.c.h.b16 %v4046
        %v4187 = vunpack.c.h.b16 %v4047
        %v4188 = vunpack.c.h.b16 %v4048
        %v4189 = vunpack.c.h.b16 %v4049
        %v4190 = vunpack.c.l.b16 %v4050
        %v4191 = vunpack.c.l.b16 %v4051
        %v4192 = vunpack.c.l.b16 %v4052
        %v4193 = vunpack.c.l.b16 %v4053
        %v4194 = vunpack.c.l.b16 %v4054
        %v4195 = vunpack.c.h.b16 %v4050
        %v4196 = vunpack.c.h.b16 %v4051
        %v4197 = vunpack.c.h.b16 %v4052
        %v4198 = vunpack.c.h.b16 %v4053
        %v4199 = vunpack.c.h.b16 %v4054
        %v4200 = vunpack.c.l.b16 %v4055
        %v4201 = vunpack.c.l.b16 %v4056
        %v4202 = vunpack.c.l.b16 %v4057
        %v4203 = vunpack.c.l.b16 %v4058
        %v4204 = vunpack.c.l.b16 %v4059
        %v4205 = vpack.c.b16 %v4111, %v4110
        %v4206 = vpack.c.b16 %v4113, %v4112
        %v4207 = vpack.c.b16 %v4114, %v4114
        %v4208 = vpack.c.b16 %v4116, %v4115
        %v4209 = vpack.c.b16 %v4118, %v4117
        %v4210 = vpack.c.b16 %v4119, %v4119
        %v4211 = vpack.c.b16 %v4121, %v4120
        %v4212 = vpack.c.b16 %v4123, %v4122
        %v4213 = vpack.c.b16 %v4124, %v4124
        %v4214 = vpack.c.b16 %v4126, %v4125
        %v4215 = vpack.c.b16 %v4128, %v4127
        %v4216 = vpack.c.b16 %v4129, %v4129
        %v4217 = vpack.c.b16 %v4131, %v4130
        %v4218 = vpack.c.b16 %v4133, %v4132
        %v4219 = vpack.c.b16 %v4134, %v4134
        %v4220 = vpack.c.b16 %v4136, %v4135
        %v4221 = vpack.c.b16 %v4138, %v4137
        %v4222 = vpack.c.b16 %v4139, %v4139
        %v4223 = vpack.c.b16 %v4141, %v4140
        %v4224 = vpack.c.b16 %v4143, %v4142
        %v4225 = vpack.c.b16 %v4144, %v4144
        %v4226 = vpack.c.b16 %v4146, %v4145
        %v4227 = vpack.c.b16 %v4148, %v4147
        %v4228 = vpack.c.b16 %v4149, %v4149
        %v4229 = vpack.c.b16 %v4151, %v4150
        %v4230 = vpack.c.b16 %v4153, %v4152
        %v4231 = vpack.c.b16 %v4154, %v4154
        %v4232 = vpack.c.b16 %v4156, %v4155
        %v4233 = vpack.c.b16 %v4158, %v4157
        %v4234 = vpack.c.b16 %v4159, %v4159
        %v4235 = vpack.c.b16 %v4161, %v4160
        %v4236 = vpack.c.b16 %v4163, %v4162
        %v4237 = vpack.c.b16 %v4164, %v4164
        %v4238 = vpack.c.b16 %v4166, %v4165
        %v4239 = vpack.c.b16 %v4168, %v4167
        %v4240 = vpack.c.b16 %v4169, %v4169
        %v4241 = vpack.c.b16 %v4171, %v4170
        %v4242 = vpack.c.b16 %v4173, %v4172
        %v4243 = vpack.c.b16 %v4174, %v4174
        %v4244 = vpack.c.b16 %v4176, %v4175
        %v4245 = vpack.c.b16 %v4178, %v4177
        %v4246 = vpack.c.b16 %v4179, %v4179
        %v4247 = vpack.c.b16 %v4181, %v4180
        %v4248 = vpack.c.b16 %v4183, %v4182
        %v4249 = vpack.c.b16 %v4184, %v4184
        %v4250 = vpack.c.b16 %v4186, %v4185
        %v4251 = vpack.c.b16 %v4188, %v4187
        %v4252 = vpack.c.b16 %v4189, %v4189
        %v4253 = vpack.c.b16 %v4191, %v4190
        %v4254 = vpack.c.b16 %v4193, %v4192
        %v4255 = vpack.c.b16 %v4194, %v4194
        %v4256 = vpack.c.b16 %v4196, %v4195
        %v4257 = vpack.c.b16 %v4198, %v4197
        %v4258 = vpack.c.b16 %v4199, %v4199
        %v4259 = vpack.c.b16 %v4201, %v4200
        %v4260 = vpack.c.b16 %v4203, %v4202
        %v4261 = vpack.c.b16 %v4204, %v4204
        %4319 = vst [vmem:[%s480] sm:$0xff] %v4205
        %4320 = vst [vmem:[%s480 + $0x8] sm:$0xff] %v4206
        %4321 = vst [vmem:[%s480 + $0x10] sm:$0xf] %v4207
        %4322 = vst [vmem:[%s480 + $0x14] sm:$0xff] %v4208
        %4323 = vst [vmem:[%s480 + $0x1c] sm:$0xff] %v4209
        %4324 = vst [vmem:[%s480 + $0x24] sm:$0xf] %v4210
        %4325 = vst [vmem:[%s480 + $0x28] sm:$0xff] %v4211
        %4326 = vst [vmem:[%s480 + $0x30] sm:$0xff] %v4212
        %4327 = vst [vmem:[%s480 + $0x38] sm:$0xf] %v4213
        %4328 = vst [vmem:[%s480 + $0x3c] sm:$0xff] %v4214
        %4329 = vst [vmem:[%s480 + $0x44] sm:$0xff] %v4215
        %4330 = vst [vmem:[%s480 + $0x4c] sm:$0xf] %v4216
        %4331 = vst [vmem:[%s480 + $0x50] sm:$0xff] %v4217
        %4332 = vst [vmem:[%s480 + $0x58] sm:$0xff] %v4218
        %4333 = vst [vmem:[%s480 + $0x60] sm:$0xf] %v4219
        %4334 = vst [vmem:[%s480 + $0x64] sm:$0xff] %v4220
        %4335 = vst [vmem:[%s480 + $0x6c] sm:$0xff] %v4221
        %4336 = vst [vmem:[%s480 + $0x74] sm:$0xf] %v4222
        %4337 = vst [vmem:[%s480 + $0x78] sm:$0xff] %v4223
        %4338 = vst [vmem:[%s480 + $0x80] sm:$0xff] %v4224
        %4339 = vst [vmem:[%s480 + $0x88] sm:$0xf] %v4225
        %4340 = vst [vmem:[%s480 + $0x8c] sm:$0xff] %v4226
        %4341 = vst [vmem:[%s480 + $0x94] sm:$0xff] %v4227
        %4342 = vst [vmem:[%s480 + $0x9c] sm:$0xf] %v4228
        %4343 = vst [vmem:[%s480 + $0xa0] sm:$0xff] %v4229
        %4344 = vst [vmem:[%s480 + $0xa8] sm:$0xff] %v4230
        %4345 = vst [vmem:[%s480 + $0xb0] sm:$0xf] %v4231
        %4346 = vst [vmem:[%s480 + $0xb4] sm:$0xff] %v4232
        %4347 = vst [vmem:[%s480 + $0xbc] sm:$0xff] %v4233
        %4348 = vst [vmem:[%s480 + $0xc4] sm:$0xf] %v4234
        %4349 = vst [vmem:[%s480 + $0xc8] sm:$0xff] %v4235
        %4350 = vst [vmem:[%s480 + $0xd0] sm:$0xff] %v4236
        %4351 = vst [vmem:[%s480 + $0xd8] sm:$0xf] %v4237
        %4352 = vst [vmem:[%s480 + $0xdc] sm:$0xff] %v4238
        %4353 = vst [vmem:[%s480 + $0xe4] sm:$0xff] %v4239
        %4354 = vst [vmem:[%s480 + $0xec] sm:$0xf] %v4240
        %4355 = vst [vmem:[%s480 + $0xf0] sm:$0xff] %v4241
        %4356 = vst [vmem:[%s480 + $0xf8] sm:$0xff] %v4242
        %4357 = vst [vmem:[%s480 + $0x100] sm:$0xf] %v4243
        %4358 = vst [vmem:[%s480 + $0x104] sm:$0xff] %v4244
        %4359 = vst [vmem:[%s480 + $0x10c] sm:$0xff] %v4245
        %4360 = vst [vmem:[%s480 + $0x114] sm:$0xf] %v4246
        %4361 = vst [vmem:[%s480 + $0x118] sm:$0xff] %v4247
        %4362 = vst [vmem:[%s480 + $0x120] sm:$0xff] %v4248
        %4363 = vst [vmem:[%s480 + $0x128] sm:$0xf] %v4249
        %4364 = vst [vmem:[%s480 + $0x12c] sm:$0xff] %v4250
        %4365 = vst [vmem:[%s480 + $0x134] sm:$0xff] %v4251
        %4366 = vst [vmem:[%s480 + $0x13c] sm:$0xf] %v4252
        %4367 = vst [vmem:[%s480 + $0x140] sm:$0xff] %v4253
        %4368 = vst [vmem:[%s480 + $0x148] sm:$0xff] %v4254
        %4369 = vst [vmem:[%s480 + $0x150] sm:$0xf] %v4255
        %4370 = vst [vmem:[%s480 + $0x154] sm:$0xff] %v4256
        %4371 = vst [vmem:[%s480 + $0x15c] sm:$0xff] %v4257
        %4372 = vst [vmem:[%s480 + $0x164] sm:$0xf] %v4258
        %4373 = vst [vmem:[%s480 + $0x168] sm:$0xff] %v4259
        %4374 = vst [vmem:[%s480 + $0x170] sm:$0xff] %v4260
        %4375 = vst [vmem:[%s480 + $0x178] sm:$0xf] %v4261
        %4395 = vrot.lane.b32.xlu0 %v2270, 30
        %v4396 = vpop.permute.xlu0 %4395
        %4397 = vrot.lane.b32.xlu0 %v2274, 30
        %v4398 = vpop.permute.xlu0 %4397
        %4399 = vrot.lane.b32.xlu0 %v2280, 30
        %v4400 = vpop.permute.xlu0 %4399
        %4401 = vrot.lane.b32.xlu0 %v2284, 30
        %v4402 = vpop.permute.xlu0 %4401
        %4403 = vrot.lane.b32.xlu0 %v2290, 30
        %v4404 = vpop.permute.xlu0 %4403
        %4405 = vrot.lane.b32.xlu0 %v2294, 30
        %v4406 = vpop.permute.xlu0 %4405
        %4407 = vrot.lane.b32.xlu0 %v2300, 30
        %v4408 = vpop.permute.xlu0 %4407
        %4409 = vrot.lane.b32.xlu0 %v2304, 30
        %v4410 = vpop.permute.xlu0 %4409
        %4411 = vrot.lane.b32.xlu0 %v2310, 30
        %v4412 = vpop.permute.xlu0 %4411
        %4413 = vrot.lane.b32.xlu0 %v2314, 30
        %v4414 = vpop.permute.xlu0 %4413
        %4415 = vrot.lane.b32.xlu0 %v2320, 30
        %v4416 = vpop.permute.xlu0 %4415
        %4417 = vrot.lane.b32.xlu0 %v2324, 30
        %v4418 = vpop.permute.xlu0 %4417
        %4419 = vrot.lane.b32.xlu0 %v2330, 30
        %v4420 = vpop.permute.xlu0 %4419
        %4421 = vrot.lane.b32.xlu0 %v2334, 30
        %v4422 = vpop.permute.xlu0 %4421
        %4423 = vrot.lane.b32.xlu0 %v2340, 30
        %v4424 = vpop.permute.xlu0 %4423
        %4425 = vrot.lane.b32.xlu0 %v2344, 30
        %v4426 = vpop.permute.xlu0 %4425
        %4427 = vrot.lane.b32.xlu0 %v2350, 30
        %v4428 = vpop.permute.xlu0 %4427
        %4429 = vrot.lane.b32.xlu0 %v2354, 30
        %v4430 = vpop.permute.xlu0 %4429
        %4431 = vrot.lane.b32.xlu0 %v2360, 30
        %v4432 = vpop.permute.xlu0 %4431
        %4471 = vrot.lane.b32.xlu0 %v2272, 60
        %v4472 = vpop.permute.xlu0 %4471
        %4473 = vrot.lane.b32.xlu0 %v2276, 60
        %v4474 = vpop.permute.xlu0 %4473
        %4475 = vrot.lane.b32.xlu0 %v2282, 60
        %v4476 = vpop.permute.xlu0 %4475
        %4477 = vrot.lane.b32.xlu0 %v2286, 60
        %v4478 = vpop.permute.xlu0 %4477
        %4479 = vrot.lane.b32.xlu0 %v2292, 60
        %v4480 = vpop.permute.xlu0 %4479
        %4481 = vrot.lane.b32.xlu0 %v2296, 60
        %v4482 = vpop.permute.xlu0 %4481
        %4483 = vrot.lane.b32.xlu0 %v2302, 60
        %v4484 = vpop.permute.xlu0 %4483
        %4485 = vrot.lane.b32.xlu0 %v2306, 60
        %v4486 = vpop.permute.xlu0 %4485
        %4487 = vrot.lane.b32.xlu0 %v2312, 60
        %v4488 = vpop.permute.xlu0 %4487
        %4489 = vrot.lane.b32.xlu0 %v2316, 60
        %v4490 = vpop.permute.xlu0 %4489
        %4491 = vrot.lane.b32.xlu0 %v2322, 60
        %v4492 = vpop.permute.xlu0 %4491
        %4493 = vrot.lane.b32.xlu0 %v2326, 60
        %v4494 = vpop.permute.xlu0 %4493
        %4495 = vrot.lane.b32.xlu0 %v2332, 60
        %v4496 = vpop.permute.xlu0 %4495
        %4497 = vrot.lane.b32.xlu0 %v2336, 60
        %v4498 = vpop.permute.xlu0 %4497
        %4499 = vrot.lane.b32.xlu0 %v2342, 60
        %v4500 = vpop.permute.xlu0 %4499
        %4501 = vrot.lane.b32.xlu0 %v2346, 60
        %v4502 = vpop.permute.xlu0 %4501
        %4503 = vrot.lane.b32.xlu0 %v2352, 60
        %v4504 = vpop.permute.xlu0 %4503
        %4505 = vrot.lane.b32.xlu0 %v2356, 60
        %v4506 = vpop.permute.xlu0 %4505
        %4507 = vrot.lane.b32.xlu0 %v2362, 60
        %v4508 = vpop.permute.xlu0 %4507
        %vm4528 = vcmask 244736
        %v4529 = vsel %vm4528, %v2480, %v4396
        %v4530 = vsel %vm4528, %v2481, %v4398
        %v4531 = vsel %vm4528, %v2482, %v4400
        %v4532 = vsel %vm4528, %v2483, %v4402
        %v4533 = vsel %vm4528, %v2484, %v4404
        %v4534 = vsel %vm4528, %v2485, %v4406
        %v4535 = vsel %vm4528, %v2486, %v4408
        %v4536 = vsel %vm4528, %v2487, %v4410
        %v4537 = vsel %vm4528, %v2488, %v4412
        %v4538 = vsel %vm4528, %v2489, %v4414
        %v4539 = vsel %vm4528, %v2490, %v4416
        %v4540 = vsel %vm4528, %v2491, %v4418
        %v4541 = vsel %vm4528, %v2492, %v4420
        %v4542 = vsel %vm4528, %v2493, %v4422
        %v4543 = vsel %vm4528, %v2494, %v4424
        %v4544 = vsel %vm4528, %v2495, %v4426
        %v4545 = vsel %vm4528, %v2496, %v4428
        %v4546 = vsel %vm4528, %v2497, %v4430
        %v4547 = vsel %vm4528, %v2498, %v4432
        %vm4548 = vcmask 490496
        %v4549 = vsel %vm4548, %v4529, %v4472
        %v4550 = vsel %vm4548, %v4530, %v4474
        %v4551 = vsel %vm4548, %v4531, %v4476
        %v4552 = vsel %vm4548, %v4532, %v4478
        %v4553 = vsel %vm4548, %v4533, %v4480
        %v4554 = vsel %vm4548, %v4534, %v4482
        %v4555 = vsel %vm4548, %v4535, %v4484
        %v4556 = vsel %vm4548, %v4536, %v4486
        %v4557 = vsel %vm4548, %v4537, %v4488
        %v4558 = vsel %vm4548, %v4538, %v4490
        %v4559 = vsel %vm4548, %v4539, %v4492
        %v4560 = vsel %vm4548, %v4540, %v4494
        %v4561 = vsel %vm4548, %v4541, %v4496
        %v4562 = vsel %vm4548, %v4542, %v4498
        %v4563 = vsel %vm4548, %v4543, %v4500
        %v4564 = vsel %vm4548, %v4544, %v4502
        %v4565 = vsel %vm4548, %v4545, %v4504
        %v4566 = vsel %vm4548, %v4546, %v4506
        %v4567 = vsel %vm4548, %v4547, %v4508
        %vm4568 = vcmask 736256
        %v4569 = vsel %vm4568, %v4549, 0.0
        %v4570 = vsel %vm4568, %v4550, 0.0
        %v4571 = vsel %vm4568, %v4551, 0.0
        %v4572 = vsel %vm4568, %v4552, 0.0
        %v4573 = vsel %vm4568, %v4553, 0.0
        %v4574 = vsel %vm4568, %v4554, 0.0
        %v4575 = vsel %vm4568, %v4555, 0.0
        %v4576 = vsel %vm4568, %v4556, 0.0
        %v4577 = vsel %vm4568, %v4557, 0.0
        %v4578 = vsel %vm4568, %v4558, 0.0
        %v4579 = vsel %vm4568, %v4559, 0.0
        %v4580 = vsel %vm4568, %v4560, 0.0
        %v4581 = vsel %vm4568, %v4561, 0.0
        %v4582 = vsel %vm4568, %v4562, 0.0
        %v4583 = vsel %vm4568, %v4563, 0.0
        %v4584 = vsel %vm4568, %v4564, 0.0
        %v4585 = vsel %vm4568, %v4565, 0.0
        %v4586 = vsel %vm4568, %v4566, 0.0
        %v4587 = vsel %vm4568, %v4567, 0.0
        %4588 = vst [vmem:[%s506] sm:$0xff] %v4569
        %4589 = vst [vmem:[%s506 + $0x8] sm:$0xff] %v4570
        %4590 = vst [vmem:[%s506 + $0x10] sm:$0xff] %v4571
        %4591 = vst [vmem:[%s506 + $0x18] sm:$0xff] %v4572
        %4592 = vst [vmem:[%s506 + $0x20] sm:$0xff] %v4573
        %4593 = vst [vmem:[%s506 + $0x28] sm:$0xff] %v4574
        %4594 = vst [vmem:[%s506 + $0x30] sm:$0xff] %v4575
        %4595 = vst [vmem:[%s506 + $0x38] sm:$0xff] %v4576
        %4596 = vst [vmem:[%s506 + $0x40] sm:$0xff] %v4577
        %4597 = vst [vmem:[%s506 + $0x48] sm:$0xff] %v4578
        %4598 = vst [vmem:[%s506 + $0x50] sm:$0xff] %v4579
        %4599 = vst [vmem:[%s506 + $0x58] sm:$0xff] %v4580
        %4600 = vst [vmem:[%s506 + $0x60] sm:$0xff] %v4581
        %4601 = vst [vmem:[%s506 + $0x68] sm:$0xff] %v4582
        %4602 = vst [vmem:[%s506 + $0x70] sm:$0xff] %v4583
        %4603 = vst [vmem:[%s506 + $0x78] sm:$0xff] %v4584
        %4604 = vst [vmem:[%s506 + $0x80] sm:$0xff] %v4585
        %4605 = vst [vmem:[%s506 + $0x88] sm:$0xff] %v4586
        %4606 = vst [vmem:[%s506 + $0x90] sm:$0xff] %v4587
        %s4607 = sand.u32 %s320, 1
        %s4608 = scalar_lea.sflag [#allocation3], %s4607
        %s4609 = sand.u32 %s320, 1
        %s4610 = smul.addr %s4609, 380
        %s4611 = scalar_lea.vmem [#allocation2], %s4610
        %s4612 = smul.u32 19, %s29
        %p4613 = scmp.lt.s32.totalorder %s4612, 37
        %s4614 = scalar_select %p4613, %s4612, 37
        %s4615 = smul.addr %s4614, 8
        %s4616 = scalar_lea.vmem %s14, %s4615
        // Predicated region
        $region73: #{autoencoder_forward.1} parent=71 // pred_check
          %p4617 = pneg %p330
        $region74: #{autoencoder_forward.1} parent=71 // pred_check_branch
          %4619 = sbr.rel (%p4617) target = $region76
        $region75: #{autoencoder_forward.1} parent=71 // pred_region
          %s4620 = smul.u32 19, %s29
          %s4622 = ssub.s32 6080, 6080
          %4623 = vsyncadd %s4608, %s4622
          %s4624 = smul.addr %s4620, 5
          %s4625 = smul.addr %s4624, 64
          %s4626 = scalar_lea.hbm %s13, %s4625
          %s4627 = sshll.u32 %s4611, 4
          %s4628 = int_to_ptr.vmem [resolvable:$true] %s4627
          %4633 = dma.vmem_to_hbm [thread:$0]  %s4628, 6080, %s4626, %s4608, 320, 320, 20
        $region76: #{autoencoder_forward.1} parent=71 // pred_fallthru
          _
        // Predicated region
        $region77: #{autoencoder_forward.1} parent=71 // pred_check
          %p4634 = pneg %p356
        $region78: #{autoencoder_forward.1} parent=71 // pred_check_branch
          %4636 = sbr.rel (%p4634) target = $region80
        $region79: #{autoencoder_forward.1} parent=71 // pred_region
          %s4637 = smul.u32 19, %s29
        $region80: #{autoencoder_forward.1} parent=71 // pred_fallthru
          _
      $region72: #{autoencoder_forward.1} parent=5 // pred_fallthru
        _
      %p4638 = scmp.le.s32.totalorder 2, %s24
      // Predicated region
      $region81: #{autoencoder_forward.1} parent=5 // pred_check
        %p4639 = pneg %p4638
      $region82: #{autoencoder_forward.1} parent=5 // pred_check_branch
        %4641 = sbr.rel (%p4639) target = $region84
      $region83: #{autoencoder_forward.1} parent=5 // pred_region
        %s4642 = ssub.s32 %s24, 2
        // Predicated region
        $region85: #{autoencoder_forward.1} parent=83 // pred_check
          %p4643 = pneg %p336
        $region86: #{autoencoder_forward.1} parent=83 // pred_check_branch
          %4645 = sbr.rel (%p4643) target = $region88
        $region87: #{autoencoder_forward.1} parent=83 // pred_region
          %s4646 = sand.u32 %s321, 1
          %s4647 = scalar_lea.sflag [#allocation3], %s4646
          %s4648 = sand.u32 %s321, 1
          %s4649 = smul.addr %s4648, 380
          %s4650 = scalar_lea.vmem [#allocation2], %s4649
          %4651 = dma.done %s4647, 6080
        $region88: #{autoencoder_forward.1} parent=83 // pred_fallthru
          _
        // Predicated region
        $region89: #{autoencoder_forward.1} parent=83 // pred_check
          %p4652 = pneg %p362
        $region90: #{autoencoder_forward.1} parent=83 // pred_check_branch
          %4654 = sbr.rel (%p4652) target = $region92
        $region91: #{autoencoder_forward.1} parent=83 // pred_region
          %s4655 = smul.u32 19, %s30
          %p4656 = scmp.lt.s32.totalorder %s4655, 37
          %s4657 = scalar_select %p4656, %s4655, 37
          %s4658 = smul.addr %s4657, 8
          %s4659 = scalar_lea.vmem %s14, %s4658
        $region92: #{autoencoder_forward.1} parent=83 // pred_fallthru
          _
      $region84: #{autoencoder_forward.1} parent=5 // pred_fallthru
        _
    $region6: #{autoencoder_forward.1} parent=1 // loop_footer
      %s28 = sadd.s32 1, %s24
    $region7: #{autoencoder_forward.1} parent=1 // loop_footer_branch
      %23 = sbr.rel target = $region3
    $region8: #{autoencoder_forward.1} parent=1 // loop_exit
      _
    %4660 = vsyncpa [#allocation3], 1
    %s4661 = scalar_lea.sflag [#allocation3], 1
    %4662 = vsyncpa %s4661, 1

</llo_original>
